<compile_context>
chip_gen: v7x
topology: tpu7x:2x2x1
jax: 0.10.0
libtpu: 0.0.40
codegen_flags: <defaults>
</compile_context>

<pallas_src>
import functools

import jax
import jax.numpy as jnp
import numpy as np
from jax import lax
from jax.experimental import pallas as pl
from jax.experimental.pallas import tpu as pltpu

# ------------------------- small, module-consistent sizes -------------------
HIDDEN = 32           # hidden_size (scaled down from 256)
INPUT_FEATURES = 8    # input_features (scaled down from 22)
N_LAYERS = 3          # n_layers
BATCH = 4             # batch_size (scaled down from 128)
SEQ_FIRST = 8         # seq len of first_input
MAX_N_TRACKS = 6      # seq len of second_input (scaled down from 12)


# ----------------------------- Pallas kernel --------------------------------
def gru_fused_kernel(x_ref, wih0_ref, wihr_ref, whh_ref, bih_ref, bhh_ref,
                     y_ref, hn_ref, gi_scr,
                     *, seq_len_1, seq_len_2, batch_1, n_layers):
    """Fused multi-layer GRU over a combined batch of two sequences.

    x_ref   : (S*BC, Din)  time-major input flattened as row = t*BC + b;
                           rows [0, batch_1) are seq 1, the rest seq 2
                           (the shorter sequence is zero-padded in time).
    wih0_ref: (Din, 3H)    layer-0 W_ih^T, gates packed along lanes (r|z|n).
    wihr_ref: (L-1, H, 3H) W_ih^T for layers 1..L-1, gate-packed.
    whh_ref : (L, H, 3H)   W_hh^T per layer, gate-packed.
    bih_ref : (L, 1, 3H)   b_ih per layer, gate-packed.
    bhh_ref : (L, 1, 3H)   b_hh per layer, gate-packed.
    y_ref   : (S*BC, H)    last-layer output; also reused as the VMEM
                           activation workspace between layers.
    hn_ref  : (L, BC, H)   final hidden state per layer.
    gi_scr  : (S*BC, 3H)   hoisted gate-packed input projections (scratch).
    """
    n_l, BC, H = hn_ref.shape
    S = y_ref.shape[0] // BC
    H2, H3 = 2 * H, 3 * H
    assert n_l == n_layers

    # Static row masks for the two (different-length) sequences, hoisted
    # and pre-broadcast to (BC, H) so the unrolled loop emits no broadcasts.
    row_ids = lax.broadcasted_iota(jnp.int32, (BC, H), 0)
    seq1_rows = row_ids < batch_1      # (BC, H) bool
    seq2_rows = row_ids >= batch_1

    for l in range(n_layers):
        # --- hoisted input projection: ONE packed matmul for all steps ---
        a = x_ref[...] if l == 0 else y_ref[...]
        wih = wih0_ref[...] if l == 0 else wihr_ref[l - 1]
        gi_scr[...] = (jnp.dot(a, wih, preferred_element_type=jnp.float32)
                       + bih_ref[l])

        whh = whh_ref[l]                                   # (H, 3H)
        bhh_b = jnp.broadcast_to(bhh_ref[l], (BC, H3))     # hoisted broadcast

        # --- sequential recurrence, fully unrolled (S is small & static) ---
        h = jnp.zeros((BC, H), jnp.float32)       # PyTorch default h_0 = 0
        for t in range(S):
            # ONE packed (BC, H) @ (H, 3H) matmul on the serial path.
            gh = jnp.dot(h, whh, preferred_element_type=jnp.float32) + bhh_b
            gi = gi_scr[pl.ds(t * BC, BC), :]              # (BC, 3H)
            # r and z share one EUP sigmoid pass over 2H lanes.
            rz = jax.nn.sigmoid(gi[:, :H2] + gh[:, :H2])
            r = rz[:, :H]
            z = rz[:, H:]
            n = jnp.tanh(gi[:, H2:] + r * gh[:, H2:])
            h_cand = (1.0 - z) * n + z * h
            # Per-sequence length masking (decided statically per step):
            # rows whose sequence already ended keep h unchanged so that
            # their h_n equals the state after their last real step.
            if t < seq_len_1 and t < seq_len_2:
                h = h_cand
            elif t < seq_len_1:
                h = jnp.where(seq1_rows, h_cand, h)
            else:
                h = jnp.where(seq2_rows, h_cand, h)
            y_ref[pl.ds(t * BC, BC), :] = h
        hn_ref[l] = h


# ----------------------------- wrapper ---------------------------------------
def rnn_module_forward(first_input, second_input, params):
    """Mirrors RNN.forward: (out1, h_n1, out2, h_n2) with one fused kernel."""
    S1, B1, Din = first_input.shape
    S2, B2, _ = second_input.shape
    S = max(S1, S2)
    BC = B1 + B2
    H = params[0][1].shape[1]          # w_hh: (3H, H)
    L = len(params)

    # Batch the two sequences together (zero-pad the shorter one in time).
    x1 = jnp.pad(first_input, ((0, S - S1), (0, 0), (0, 0)))
    x2 = jnp.pad(second_input, ((0, S - S2), (0, 0), (0, 0)))
    x2d = jnp.concatenate([x1, x2], axis=1).reshape(S * BC, Din)

    # PyTorch GRU weights are gate-stacked along rows (r; z; n), so a plain
    # transpose already gives the lane-packed (in, 3H) layout the kernel uses.
    wih0 = jnp.transpose(params[0][0])                                # (Din, 3H)
    if L > 1:
        wihr = jnp.stack([jnp.transpose(p[0]) for p in params[1:]])   # (L-1, H, 3H)
    else:
        wihr = jnp.zeros((1, H, 3 * H), jnp.float32)
    whh = jnp.stack([jnp.transpose(p[1]) for p in params])            # (L, H, 3H)
    bih = jnp.stack([p[2].reshape(1, 3 * H) for p in params])         # (L, 1, 3H)
    bhh = jnp.stack([p[3].reshape(1, 3 * H) for p in params])         # (L, 1, 3H)

    kernel = functools.partial(gru_fused_kernel,
                               seq_len_1=S1, seq_len_2=S2,
                               batch_1=B1, n_layers=L)

    y_flat, hn = pl.pallas_call(
        kernel,
        out_shape=(jax.ShapeDtypeStruct((S * BC, H), jnp.float32),
                   jax.ShapeDtypeStruct((L, BC, H), jnp.float32)),
        in_specs=[pl.BlockSpec(memory_space=pltpu.MemorySpace.VMEM)
                  for _ in range(6)],
        out_specs=(pl.BlockSpec(memory_space=pltpu.MemorySpace.VMEM),
                   pl.BlockSpec(memory_space=pltpu.MemorySpace.VMEM)),
        scratch_shapes=[pltpu.VMEM((S * BC, 3 * H), jnp.float32)],
    )(x2d, wih0, wihr, whh, bih, bhh)

    y = y_flat.reshape(S, BC, H)
    out1, hn1 = y[:S1, :B1], hn[:, :B1]
    out2, hn2 = y[:S2, B1:], hn[:, B1:]
    return out1, hn1, out2, hn2


# ----------------------------- pure-JAX reference ---------------------------
def gru_forward_ref(x, params):
    inp = x
    h_ns = []
    for (w_ih, w_hh, b_ih, b_hh) in params:
        H = w_hh.shape[1]

        def step(h, x_t):
            gi = x_t @ w_ih.T + b_ih
            gh = h @ w_hh.T + b_hh
            r = jax.nn.sigmoid(gi[:, :H] + gh[:, :H])
            z = jax.nn.sigmoid(gi[:, H:2 * H] + gh[:, H:2 * H])
            n = jnp.tanh(gi[:, 2 * H:] + r * gh[:, 2 * H:])
            h_new = (1.0 - z) * n + z * h
            return h_new, h_new

        h0 = jnp.zeros((inp.shape[1], H), jnp.float32)
        h_T, ys = lax.scan(step, h0, inp)
        h_ns.append(h_T)
        inp = ys
    return inp, jnp.stack(h_ns, axis=0)


# ----------------------------- parameter init -------------------------------
def init_gru_params(key, input_size, hidden_size, num_layers):
    params = []
    bound = 1.0 / np.sqrt(hidden_size)
    for layer in range(num_layers):
        d_in = input_size if layer == 0 else hidden_size
        key, k1, k2, k3, k4 = jax.random.split(key, 5)
        w_ih = jax.random.uniform(k1, (3 * hidden_size, d_in),
                                  jnp.float32, -bound, bound)
        w_hh = jax.random.uniform(k2, (3 * hidden_size, hidden_size),
                                  jnp.float32, -bound, bound)
        b_ih = jax.random.uniform(k3, (3 * hidden_size,),
                                  jnp.float32, -bound, bound)
        b_hh = jax.random.uniform(k4, (3 * hidden_size,),
                                  jnp.float32, -bound, bound)
        params.append((w_ih, w_hh, b_ih, b_hh))
    return params


# ---------------------------------- main -------------------------------------
if __name__ == "__main__":
    key = jax.random.PRNGKey(0)
    key, k_x = jax.random.split(key)

    # first_input: (seq, batch, features); second_input: zeros Parameter
    first_input = jax.random.normal(
        k_x, (SEQ_FIRST, BATCH, INPUT_FEATURES), jnp.float32)
    second_input = jnp.zeros(
        (MAX_N_TRACKS, BATCH, INPUT_FEATURES), jnp.float32)

    params = init_gru_params(key, INPUT_FEATURES, HIDDEN, N_LAYERS)

    fwd = jax.jit(functools.partial(rnn_module_forward, params=params))
    out1, hn1, out2, hn2 = fwd(first_input, second_input)
    jax.block_until_ready((out1, hn1, out2, hn2))

    # correctness check against pure-JAX reference
    r_out1, r_hn1 = gru_forward_ref(first_input, params)
    r_out2, r_hn2 = gru_forward_ref(second_input, params)
    np.testing.assert_allclose(np.asarray(out1), np.asarray(r_out1),
                               rtol=1e-5, atol=1e-5)
    np.testing.assert_allclose(np.asarray(hn1), np.asarray(r_hn1),
                               rtol=1e-5, atol=1e-5)
    np.testing.assert_allclose(np.asarray(out2), np.asarray(r_out2),
                               rtol=1e-5, atol=1e-5)
    np.testing.assert_allclose(np.asarray(hn2), np.asarray(r_hn2),
                               rtol=1e-5, atol=1e-5)

    assert out1.shape == (SEQ_FIRST, BATCH, HIDDEN)
    assert hn1.shape == (N_LAYERS, BATCH, HIDDEN)
    assert out2.shape == (MAX_N_TRACKS, BATCH, HIDDEN)
    assert hn2.shape == (N_LAYERS, BATCH, HIDDEN)

    print("KERNEL_OK")
</pallas_src>

<mosaic_0001>
module attributes {stable_mosaic.version = 11 : i64} {
  func.func @gru_fused_kernel(%arg0: memref<64x8xf32, #tpu.memory_space<vmem>>, %arg1: memref<8x96xf32, #tpu.memory_space<vmem>>, %arg2: memref<2x32x96xf32, #tpu.memory_space<vmem>>, %arg3: memref<3x32x96xf32, #tpu.memory_space<vmem>>, %arg4: memref<3x1x96xf32, #tpu.memory_space<vmem>>, %arg5: memref<3x1x96xf32, #tpu.memory_space<vmem>>, %arg6: memref<64x32xf32, #tpu.memory_space<vmem>>, %arg7: memref<3x8x32xf32, #tpu.memory_space<vmem>>, %arg8: memref<64x96xf32, #tpu.memory_space<vmem>>) attributes {dimension_semantics = [], scalar_prefetch = 0 : i64, scratch_operands = 1 : i64, tpu.core_type = #tpu.core_type<tc>} {
    %0 = tpu.iota {dimensions = array<i32: 0>} : vector<8x32xi32>
    %c4_i32 = arith.constant 4 : i32
    %1 = vector.broadcast %c4_i32 : i32 to vector<8x32xi32>
    %2 = arith.cmpi slt, %0, %1 : vector<8x32xi32>
    %c0 = arith.constant 0 : index
    %c0_0 = arith.constant 0 : index
    %3 = vector.load %arg0[%c0, %c0_0] : memref<64x8xf32, #tpu.memory_space<vmem>>, vector<64x8xf32>
    %c0_1 = arith.constant 0 : index
    %c0_2 = arith.constant 0 : index
    %4 = vector.load %arg1[%c0_1, %c0_2] : memref<8x96xf32, #tpu.memory_space<vmem>>, vector<8x96xf32>
    %cst = arith.constant dense<0.000000e+00> : vector<64x96xf32>
    %5 = tpu.matmul %3, %4, %cst {dimension_numbers = #tpu.dot_dimension_numbers<[1], [0], [0], [1], [0, 0, 1, 1], [], []>} : vector<64x8xf32>, vector<8x96xf32>, vector<64x96xf32> -> vector<64x96xf32>
    %c0_3 = arith.constant 0 : index
    %c0_4 = arith.constant 0 : index
    %c0_5 = arith.constant 0 : index
    %6 = vector.load %arg4[%c0_3, %c0_4, %c0_5] : memref<3x1x96xf32, #tpu.memory_space<vmem>>, vector<1x1x96xf32>
    %7 = vector.shape_cast %6 : vector<1x1x96xf32> to vector<1x96xf32>
    %8 = vector.broadcast %7 : vector<1x96xf32> to vector<64x96xf32>
    %9 = arith.addf %5, %8 : vector<64x96xf32>
    %c0_6 = arith.constant 0 : index
    %c0_7 = arith.constant 0 : index
    %10 = vector.load %arg8[%c0_6, %c0_7] : memref<64x96xf32, #tpu.memory_space<vmem>>, vector<64x96xf32>
    tpu.vector_store %arg8[%c0_6, %c0_7], %9 {strides = array<i32>} : memref<64x96xf32, #tpu.memory_space<vmem>>, vector<64x96xf32>,
    %c0_8 = arith.constant 0 : index
    %c0_9 = arith.constant 0 : index
    %c0_10 = arith.constant 0 : index
    %11 = vector.load %arg3[%c0_8, %c0_9, %c0_10] : memref<3x32x96xf32, #tpu.memory_space<vmem>>, vector<1x32x96xf32>
    %12 = vector.shape_cast %11 : vector<1x32x96xf32> to vector<32x96xf32>
    %c0_11 = arith.constant 0 : index
    %c0_12 = arith.constant 0 : index
    %c0_13 = arith.constant 0 : index
    %13 = vector.load %arg5[%c0_11, %c0_12, %c0_13] : memref<3x1x96xf32, #tpu.memory_space<vmem>>, vector<1x1x96xf32>
    %14 = vector.shape_cast %13 : vector<1x1x96xf32> to vector<1x96xf32>
    %15 = vector.shape_cast %14 : vector<1x96xf32> to vector<1x96xf32>
    %16 = vector.broadcast %15 : vector<1x96xf32> to vector<8x96xf32>
    %cst_14 = arith.constant 0.000000e+00 : f32
    %17 = vector.broadcast %cst_14 : f32 to vector<8x32xf32>
    %cst_15 = arith.constant dense<0.000000e+00> : vector<8x96xf32>
    %18 = tpu.matmul %17, %12, %cst_15 {dimension_numbers = #tpu.dot_dimension_numbers<[1], [0], [0], [1], [0, 0, 1, 1], [], []>} : vector<8x32xf32>, vector<32x96xf32>, vector<8x96xf32> -> vector<8x96xf32>
    %19 = arith.addf %18, %16 : vector<8x96xf32>
    %c0_16 = arith.constant 0 : index
    %c0_17 = arith.constant 0 : index
    %20 = vector.load %arg8[%c0_16, %c0_17] : memref<64x96xf32, #tpu.memory_space<vmem>>, vector<8x96xf32>
    %21 = vector.extract_strided_slice %20 {offsets = [0, 0], sizes = [8, 64], strides = [1, 1]} : vector<8x96xf32> to vector<8x64xf32>
    %22 = vector.extract_strided_slice %19 {offsets = [0, 0], sizes = [8, 64], strides = [1, 1]} : vector<8x96xf32> to vector<8x64xf32>
    %23 = arith.addf %21, %22 : vector<8x64xf32>
    %24 = arith.negf %23 : vector<8x64xf32>
    %25 = math.exp %24 : vector<8x64xf32>
    %cst_18 = arith.constant 1.000000e+00 : f32
    %26 = vector.broadcast %cst_18 : f32 to vector<8x64xf32>
    %27 = arith.addf %26, %25 : vector<8x64xf32>
    %28 = arith.divf %26, %27 : vector<8x64xf32>
    %29 = vector.extract_strided_slice %28 {offsets = [0, 0], sizes = [8, 32], strides = [1, 1]} : vector<8x64xf32> to vector<8x32xf32>
    %30 = vector.extract_strided_slice %28 {offsets = [0, 32], sizes = [8, 32], strides = [1, 1]} : vector<8x64xf32> to vector<8x32xf32>
    %31 = vector.extract_strided_slice %20 {offsets = [0, 64], sizes = [8, 32], strides = [1, 1]} : vector<8x96xf32> to vector<8x32xf32>
    %32 = vector.extract_strided_slice %19 {offsets = [0, 64], sizes = [8, 32], strides = [1, 1]} : vector<8x96xf32> to vector<8x32xf32>
    %33 = arith.mulf %29, %32 : vector<8x32xf32>
    %34 = arith.addf %31, %33 : vector<8x32xf32>
    %35 = math.tanh %34 : vector<8x32xf32>
    %cst_19 = arith.constant 1.000000e+00 : f32
    %36 = vector.broadcast %cst_19 : f32 to vector<8x32xf32>
    %37 = arith.subf %36, %30 : vector<8x32xf32>
    %38 = arith.mulf %37, %35 : vector<8x32xf32>
    %39 = arith.mulf %30, %17 : vector<8x32xf32>
    %40 = arith.addf %38, %39 : vector<8x32xf32>
    %c0_20 = arith.constant 0 : index
    %c0_21 = arith.constant 0 : index
    %41 = vector.load %arg6[%c0_20, %c0_21] : memref<64x32xf32, #tpu.memory_space<vmem>>, vector<8x32xf32>
    tpu.vector_store %arg6[%c0_20, %c0_21], %40 {strides = array<i32>} : memref<64x32xf32, #tpu.memory_space<vmem>>, vector<8x32xf32>,
    %cst_22 = arith.constant dense<0.000000e+00> : vector<8x96xf32>
    %42 = tpu.matmul %40, %12, %cst_22 {dimension_numbers = #tpu.dot_dimension_numbers<[1], [0], [0], [1], [0, 0, 1, 1], [], []>} : vector<8x32xf32>, vector<32x96xf32>, vector<8x96xf32> -> vector<8x96xf32>
    %43 = arith.addf %42, %16 : vector<8x96xf32>
    %c8 = arith.constant 8 : index
    %c0_23 = arith.constant 0 : index
    %44 = vector.load %arg8[%c8, %c0_23] : memref<64x96xf32, #tpu.memory_space<vmem>>, vector<8x96xf32>
    %45 = vector.extract_strided_slice %44 {offsets = [0, 0], sizes = [8, 64], strides = [1, 1]} : vector<8x96xf32> to vector<8x64xf32>
    %46 = vector.extract_strided_slice %43 {offsets = [0, 0], sizes = [8, 64], strides = [1, 1]} : vector<8x96xf32> to vector<8x64xf32>
    %47 = arith.addf %45, %46 : vector<8x64xf32>
    %48 = arith.negf %47 : vector<8x64xf32>
    %49 = math.exp %48 : vector<8x64xf32>
    %cst_24 = arith.constant 1.000000e+00 : f32
    %50 = vector.broadcast %cst_24 : f32 to vector<8x64xf32>
    %51 = arith.addf %50, %49 : vector<8x64xf32>
    %52 = arith.divf %50, %51 : vector<8x64xf32>
    %53 = vector.extract_strided_slice %52 {offsets = [0, 0], sizes = [8, 32], strides = [1, 1]} : vector<8x64xf32> to vector<8x32xf32>
    %54 = vector.extract_strided_slice %52 {offsets = [0, 32], sizes = [8, 32], strides = [1, 1]} : vector<8x64xf32> to vector<8x32xf32>
    %55 = vector.extract_strided_slice %44 {offsets = [0, 64], sizes = [8, 32], strides = [1, 1]} : vector<8x96xf32> to vector<8x32xf32>
    %56 = vector.extract_strided_slice %43 {offsets = [0, 64], sizes = [8, 32], strides = [1, 1]} : vector<8x96xf32> to vector<8x32xf32>
    %57 = arith.mulf %53, %56 : vector<8x32xf32>
    %58 = arith.addf %55, %57 : vector<8x32xf32>
    %59 = math.tanh %58 : vector<8x32xf32>
    %cst_25 = arith.constant 1.000000e+00 : f32
    %60 = vector.broadcast %cst_25 : f32 to vector<8x32xf32>
    %61 = arith.subf %60, %54 : vector<8x32xf32>
    %62 = arith.mulf %61, %59 : vector<8x32xf32>
    %63 = arith.mulf %54, %40 : vector<8x32xf32>
    %64 = arith.addf %62, %63 : vector<8x32xf32>
    %c8_26 = arith.constant 8 : index
    %c0_27 = arith.constant 0 : index
    %65 = vector.load %arg6[%c8_26, %c0_27] : memref<64x32xf32, #tpu.memory_space<vmem>>, vector<8x32xf32>
    tpu.vector_store %arg6[%c8_26, %c0_27], %64 {strides = array<i32>} : memref<64x32xf32, #tpu.memory_space<vmem>>, vector<8x32xf32>,
    %cst_28 = arith.constant dense<0.000000e+00> : vector<8x96xf32>
    %66 = tpu.matmul %64, %12, %cst_28 {dimension_numbers = #tpu.dot_dimension_numbers<[1], [0], [0], [1], [0, 0, 1, 1], [], []>} : vector<8x32xf32>, vector<32x96xf32>, vector<8x96xf32> -> vector<8x96xf32>
    %67 = arith.addf %66, %16 : vector<8x96xf32>
    %c16 = arith.constant 16 : index
    %c0_29 = arith.constant 0 : index
    %68 = vector.load %arg8[%c16, %c0_29] : memref<64x96xf32, #tpu.memory_space<vmem>>, vector<8x96xf32>
    %69 = vector.extract_strided_slice %68 {offsets = [0, 0], sizes = [8, 64], strides = [1, 1]} : vector<8x96xf32> to vector<8x64xf32>
    %70 = vector.extract_strided_slice %67 {offsets = [0, 0], sizes = [8, 64], strides = [1, 1]} : vector<8x96xf32> to vector<8x64xf32>
    %71 = arith.addf %69, %70 : vector<8x64xf32>
    %72 = arith.negf %71 : vector<8x64xf32>
    %73 = math.exp %72 : vector<8x64xf32>
    %cst_30 = arith.constant 1.000000e+00 : f32
    %74 = vector.broadcast %cst_30 : f32 to vector<8x64xf32>
    %75 = arith.addf %74, %73 : vector<8x64xf32>
    %76 = arith.divf %74, %75 : vector<8x64xf32>
    %77 = vector.extract_strided_slice %76 {offsets = [0, 0], sizes = [8, 32], strides = [1, 1]} : vector<8x64xf32> to vector<8x32xf32>
    %78 = vector.extract_strided_slice %76 {offsets = [0, 32], sizes = [8, 32], strides = [1, 1]} : vector<8x64xf32> to vector<8x32xf32>
    %79 = vector.extract_strided_slice %68 {offsets = [0, 64], sizes = [8, 32], strides = [1, 1]} : vector<8x96xf32> to vector<8x32xf32>
    %80 = vector.extract_strided_slice %67 {offsets = [0, 64], sizes = [8, 32], strides = [1, 1]} : vector<8x96xf32> to vector<8x32xf32>
    %81 = arith.mulf %77, %80 : vector<8x32xf32>
    %82 = arith.addf %79, %81 : vector<8x32xf32>
    %83 = math.tanh %82 : vector<8x32xf32>
    %cst_31 = arith.constant 1.000000e+00 : f32
    %84 = vector.broadcast %cst_31 : f32 to vector<8x32xf32>
    %85 = arith.subf %84, %78 : vector<8x32xf32>
    %86 = arith.mulf %85, %83 : vector<8x32xf32>
    %87 = arith.mulf %78, %64 : vector<8x32xf32>
    %88 = arith.addf %86, %87 : vector<8x32xf32>
    %c16_32 = arith.constant 16 : index
    %c0_33 = arith.constant 0 : index
    %89 = vector.load %arg6[%c16_32, %c0_33] : memref<64x32xf32, #tpu.memory_space<vmem>>, vector<8x32xf32>
    tpu.vector_store %arg6[%c16_32, %c0_33], %88 {strides = array<i32>} : memref<64x32xf32, #tpu.memory_space<vmem>>, vector<8x32xf32>,
    %cst_34 = arith.constant dense<0.000000e+00> : vector<8x96xf32>
    %90 = tpu.matmul %88, %12, %cst_34 {dimension_numbers = #tpu.dot_dimension_numbers<[1], [0], [0], [1], [0, 0, 1, 1], [], []>} : vector<8x32xf32>, vector<32x96xf32>, vector<8x96xf32> -> vector<8x96xf32>
    %91 = arith.addf %90, %16 : vector<8x96xf32>
    %c24 = arith.constant 24 : index
    %c0_35 = arith.constant 0 : index
    %92 = vector.load %arg8[%c24, %c0_35] : memref<64x96xf32, #tpu.memory_space<vmem>>, vector<8x96xf32>
    %93 = vector.extract_strided_slice %92 {offsets = [0, 0], sizes = [8, 64], strides = [1, 1]} : vector<8x96xf32> to vector<8x64xf32>
    %94 = vector.extract_strided_slice %91 {offsets = [0, 0], sizes = [8, 64], strides = [1, 1]} : vector<8x96xf32> to vector<8x64xf32>
    %95 = arith.addf %93, %94 : vector<8x64xf32>
    %96 = arith.negf %95 : vector<8x64xf32>
    %97 = math.exp %96 : vector<8x64xf32>
    %cst_36 = arith.constant 1.000000e+00 : f32
    %98 = vector.broadcast %cst_36 : f32 to vector<8x64xf32>
    %99 = arith.addf %98, %97 : vector<8x64xf32>
    %100 = arith.divf %98, %99 : vector<8x64xf32>
    %101 = vector.extract_strided_slice %100 {offsets = [0, 0], sizes = [8, 32], strides = [1, 1]} : vector<8x64xf32> to vector<8x32xf32>
    %102 = vector.extract_strided_slice %100 {offsets = [0, 32], sizes = [8, 32], strides = [1, 1]} : vector<8x64xf32> to vector<8x32xf32>
    %103 = vector.extract_strided_slice %92 {offsets = [0, 64], sizes = [8, 32], strides = [1, 1]} : vector<8x96xf32> to vector<8x32xf32>
    %104 = vector.extract_strided_slice %91 {offsets = [0, 64], sizes = [8, 32], strides = [1, 1]} : vector<8x96xf32> to vector<8x32xf32>
    %105 = arith.mulf %101, %104 : vector<8x32xf32>
    %106 = arith.addf %103, %105 : vector<8x32xf32>
    %107 = math.tanh %106 : vector<8x32xf32>
    %cst_37 = arith.constant 1.000000e+00 : f32
    %108 = vector.broadcast %cst_37 : f32 to vector<8x32xf32>
    %109 = arith.subf %108, %102 : vector<8x32xf32>
    %110 = arith.mulf %109, %107 : vector<8x32xf32>
    %111 = arith.mulf %102, %88 : vector<8x32xf32>
    %112 = arith.addf %110, %111 : vector<8x32xf32>
    %c24_38 = arith.constant 24 : index
    %c0_39 = arith.constant 0 : index
    %113 = vector.load %arg6[%c24_38, %c0_39] : memref<64x32xf32, #tpu.memory_space<vmem>>, vector<8x32xf32>
    tpu.vector_store %arg6[%c24_38, %c0_39], %112 {strides = array<i32>} : memref<64x32xf32, #tpu.memory_space<vmem>>, vector<8x32xf32>,
    %cst_40 = arith.constant dense<0.000000e+00> : vector<8x96xf32>
    %114 = tpu.matmul %112, %12, %cst_40 {dimension_numbers = #tpu.dot_dimension_numbers<[1], [0], [0], [1], [0, 0, 1, 1], [], []>} : vector<8x32xf32>, vector<32x96xf32>, vector<8x96xf32> -> vector<8x96xf32>
    %115 = arith.addf %114, %16 : vector<8x96xf32>
    %c32 = arith.constant 32 : index
    %c0_41 = arith.constant 0 : index
    %116 = vector.load %arg8[%c32, %c0_41] : memref<64x96xf32, #tpu.memory_space<vmem>>, vector<8x96xf32>
    %117 = vector.extract_strided_slice %116 {offsets = [0, 0], sizes = [8, 64], strides = [1, 1]} : vector<8x96xf32> to vector<8x64xf32>
    %118 = vector.extract_strided_slice %115 {offsets = [0, 0], sizes = [8, 64], strides = [1, 1]} : vector<8x96xf32> to vector<8x64xf32>
    %119 = arith.addf %117, %118 : vector<8x64xf32>
    %120 = arith.negf %119 : vector<8x64xf32>
    %121 = math.exp %120 : vector<8x64xf32>
    %cst_42 = arith.constant 1.000000e+00 : f32
    %122 = vector.broadcast %cst_42 : f32 to vector<8x64xf32>
    %123 = arith.addf %122, %121 : vector<8x64xf32>
    %124 = arith.divf %122, %123 : vector<8x64xf32>
    %125 = vector.extract_strided_slice %124 {offsets = [0, 0], sizes = [8, 32], strides = [1, 1]} : vector<8x64xf32> to vector<8x32xf32>
    %126 = vector.extract_strided_slice %124 {offsets = [0, 32], sizes = [8, 32], strides = [1, 1]} : vector<8x64xf32> to vector<8x32xf32>
    %127 = vector.extract_strided_slice %116 {offsets = [0, 64], sizes = [8, 32], strides = [1, 1]} : vector<8x96xf32> to vector<8x32xf32>
    %128 = vector.extract_strided_slice %115 {offsets = [0, 64], sizes = [8, 32], strides = [1, 1]} : vector<8x96xf32> to vector<8x32xf32>
    %129 = arith.mulf %125, %128 : vector<8x32xf32>
    %130 = arith.addf %127, %129 : vector<8x32xf32>
    %131 = math.tanh %130 : vector<8x32xf32>
    %cst_43 = arith.constant 1.000000e+00 : f32
    %132 = vector.broadcast %cst_43 : f32 to vector<8x32xf32>
    %133 = arith.subf %132, %126 : vector<8x32xf32>
    %134 = arith.mulf %133, %131 : vector<8x32xf32>
    %135 = arith.mulf %126, %112 : vector<8x32xf32>
    %136 = arith.addf %134, %135 : vector<8x32xf32>
    %c32_44 = arith.constant 32 : index
    %c0_45 = arith.constant 0 : index
    %137 = vector.load %arg6[%c32_44, %c0_45] : memref<64x32xf32, #tpu.memory_space<vmem>>, vector<8x32xf32>
    tpu.vector_store %arg6[%c32_44, %c0_45], %136 {strides = array<i32>} : memref<64x32xf32, #tpu.memory_space<vmem>>, vector<8x32xf32>,
    %cst_46 = arith.constant dense<0.000000e+00> : vector<8x96xf32>
    %138 = tpu.matmul %136, %12, %cst_46 {dimension_numbers = #tpu.dot_dimension_numbers<[1], [0], [0], [1], [0, 0, 1, 1], [], []>} : vector<8x32xf32>, vector<32x96xf32>, vector<8x96xf32> -> vector<8x96xf32>
    %139 = arith.addf %138, %16 : vector<8x96xf32>
    %c40 = arith.constant 40 : index
    %c0_47 = arith.constant 0 : index
    %140 = vector.load %arg8[%c40, %c0_47] : memref<64x96xf32, #tpu.memory_space<vmem>>, vector<8x96xf32>
    %141 = vector.extract_strided_slice %140 {offsets = [0, 0], sizes = [8, 64], strides = [1, 1]} : vector<8x96xf32> to vector<8x64xf32>
    %142 = vector.extract_strided_slice %139 {offsets = [0, 0], sizes = [8, 64], strides = [1, 1]} : vector<8x96xf32> to vector<8x64xf32>
    %143 = arith.addf %141, %142 : vector<8x64xf32>
    %144 = arith.negf %143 : vector<8x64xf32>
    %145 = math.exp %144 : vector<8x64xf32>
    %cst_48 = arith.constant 1.000000e+00 : f32
    %146 = vector.broadcast %cst_48 : f32 to vector<8x64xf32>
    %147 = arith.addf %146, %145 : vector<8x64xf32>
    %148 = arith.divf %146, %147 : vector<8x64xf32>
    %149 = vector.extract_strided_slice %148 {offsets = [0, 0], sizes = [8, 32], strides = [1, 1]} : vector<8x64xf32> to vector<8x32xf32>
    %150 = vector.extract_strided_slice %148 {offsets = [0, 32], sizes = [8, 32], strides = [1, 1]} : vector<8x64xf32> to vector<8x32xf32>
    %151 = vector.extract_strided_slice %140 {offsets = [0, 64], sizes = [8, 32], strides = [1, 1]} : vector<8x96xf32> to vector<8x32xf32>
    %152 = vector.extract_strided_slice %139 {offsets = [0, 64], sizes = [8, 32], strides = [1, 1]} : vector<8x96xf32> to vector<8x32xf32>
    %153 = arith.mulf %149, %152 : vector<8x32xf32>
    %154 = arith.addf %151, %153 : vector<8x32xf32>
    %155 = math.tanh %154 : vector<8x32xf32>
    %cst_49 = arith.constant 1.000000e+00 : f32
    %156 = vector.broadcast %cst_49 : f32 to vector<8x32xf32>
    %157 = arith.subf %156, %150 : vector<8x32xf32>
    %158 = arith.mulf %157, %155 : vector<8x32xf32>
    %159 = arith.mulf %150, %136 : vector<8x32xf32>
    %160 = arith.addf %158, %159 : vector<8x32xf32>
    %c40_50 = arith.constant 40 : index
    %c0_51 = arith.constant 0 : index
    %161 = vector.load %arg6[%c40_50, %c0_51] : memref<64x32xf32, #tpu.memory_space<vmem>>, vector<8x32xf32>
    tpu.vector_store %arg6[%c40_50, %c0_51], %160 {strides = array<i32>} : memref<64x32xf32, #tpu.memory_space<vmem>>, vector<8x32xf32>,
    %cst_52 = arith.constant dense<0.000000e+00> : vector<8x96xf32>
    %162 = tpu.matmul %160, %12, %cst_52 {dimension_numbers = #tpu.dot_dimension_numbers<[1], [0], [0], [1], [0, 0, 1, 1], [], []>} : vector<8x32xf32>, vector<32x96xf32>, vector<8x96xf32> -> vector<8x96xf32>
    %163 = arith.addf %162, %16 : vector<8x96xf32>
    %c48 = arith.constant 48 : index
    %c0_53 = arith.constant 0 : index
    %164 = vector.load %arg8[%c48, %c0_53] : memref<64x96xf32, #tpu.memory_space<vmem>>, vector<8x96xf32>
    %165 = vector.extract_strided_slice %164 {offsets = [0, 0], sizes = [8, 64], strides = [1, 1]} : vector<8x96xf32> to vector<8x64xf32>
    %166 = vector.extract_strided_slice %163 {offsets = [0, 0], sizes = [8, 64], strides = [1, 1]} : vector<8x96xf32> to vector<8x64xf32>
    %167 = arith.addf %165, %166 : vector<8x64xf32>
    %168 = arith.negf %167 : vector<8x64xf32>
    %169 = math.exp %168 : vector<8x64xf32>
    %cst_54 = arith.constant 1.000000e+00 : f32
    %170 = vector.broadcast %cst_54 : f32 to vector<8x64xf32>
    %171 = arith.addf %170, %169 : vector<8x64xf32>
    %172 = arith.divf %170, %171 : vector<8x64xf32>
    %173 = vector.extract_strided_slice %172 {offsets = [0, 0], sizes = [8, 32], strides = [1, 1]} : vector<8x64xf32> to vector<8x32xf32>
    %174 = vector.extract_strided_slice %172 {offsets = [0, 32], sizes = [8, 32], strides = [1, 1]} : vector<8x64xf32> to vector<8x32xf32>
    %175 = vector.extract_strided_slice %164 {offsets = [0, 64], sizes = [8, 32], strides = [1, 1]} : vector<8x96xf32> to vector<8x32xf32>
    %176 = vector.extract_strided_slice %163 {offsets = [0, 64], sizes = [8, 32], strides = [1, 1]} : vector<8x96xf32> to vector<8x32xf32>
    %177 = arith.mulf %173, %176 : vector<8x32xf32>
    %178 = arith.addf %175, %177 : vector<8x32xf32>
    %179 = math.tanh %178 : vector<8x32xf32>
    %cst_55 = arith.constant 1.000000e+00 : f32
    %180 = vector.broadcast %cst_55 : f32 to vector<8x32xf32>
    %181 = arith.subf %180, %174 : vector<8x32xf32>
    %182 = arith.mulf %181, %179 : vector<8x32xf32>
    %183 = arith.mulf %174, %160 : vector<8x32xf32>
    %184 = arith.addf %182, %183 : vector<8x32xf32>
    %185 = arith.select %2, %184, %160 : vector<8x32xi1>, vector<8x32xf32>
    %c48_56 = arith.constant 48 : index
    %c0_57 = arith.constant 0 : index
    %186 = vector.load %arg6[%c48_56, %c0_57] : memref<64x32xf32, #tpu.memory_space<vmem>>, vector<8x32xf32>
    tpu.vector_store %arg6[%c48_56, %c0_57], %185 {strides = array<i32>} : memref<64x32xf32, #tpu.memory_space<vmem>>, vector<8x32xf32>,
    %cst_58 = arith.constant dense<0.000000e+00> : vector<8x96xf32>
    %187 = tpu.matmul %185, %12, %cst_58 {dimension_numbers = #tpu.dot_dimension_numbers<[1], [0], [0], [1], [0, 0, 1, 1], [], []>} : vector<8x32xf32>, vector<32x96xf32>, vector<8x96xf32> -> vector<8x96xf32>
    %188 = arith.addf %187, %16 : vector<8x96xf32>
    %c56 = arith.constant 56 : index
    %c0_59 = arith.constant 0 : index
    %189 = vector.load %arg8[%c56, %c0_59] : memref<64x96xf32, #tpu.memory_space<vmem>>, vector<8x96xf32>
    %190 = vector.extract_strided_slice %189 {offsets = [0, 0], sizes = [8, 64], strides = [1, 1]} : vector<8x96xf32> to vector<8x64xf32>
    %191 = vector.extract_strided_slice %188 {offsets = [0, 0], sizes = [8, 64], strides = [1, 1]} : vector<8x96xf32> to vector<8x64xf32>
    %192 = arith.addf %190, %191 : vector<8x64xf32>
    %193 = arith.negf %192 : vector<8x64xf32>
    %194 = math.exp %193 : vector<8x64xf32>
    %cst_60 = arith.constant 1.000000e+00 : f32
    %195 = vector.broadcast %cst_60 : f32 to vector<8x64xf32>
    %196 = arith.addf %195, %194 : vector<8x64xf32>
    %197 = arith.divf %195, %196 : vector<8x64xf32>
    %198 = vector.extract_strided_slice %197 {offsets = [0, 0], sizes = [8, 32], strides = [1, 1]} : vector<8x64xf32> to vector<8x32xf32>
    %199 = vector.extract_strided_slice %197 {offsets = [0, 32], sizes = [8, 32], strides = [1, 1]} : vector<8x64xf32> to vector<8x32xf32>
    %200 = vector.extract_strided_slice %189 {offsets = [0, 64], sizes = [8, 32], strides = [1, 1]} : vector<8x96xf32> to vector<8x32xf32>
    %201 = vector.extract_strided_slice %188 {offsets = [0, 64], sizes = [8, 32], strides = [1, 1]} : vector<8x96xf32> to vector<8x32xf32>
    %202 = arith.mulf %198, %201 : vector<8x32xf32>
    %203 = arith.addf %200, %202 : vector<8x32xf32>
    %204 = math.tanh %203 : vector<8x32xf32>
    %cst_61 = arith.constant 1.000000e+00 : f32
    %205 = vector.broadcast %cst_61 : f32 to vector<8x32xf32>
    %206 = arith.subf %205, %199 : vector<8x32xf32>
    %207 = arith.mulf %206, %204 : vector<8x32xf32>
    %208 = arith.mulf %199, %185 : vector<8x32xf32>
    %209 = arith.addf %207, %208 : vector<8x32xf32>
    %210 = arith.select %2, %209, %185 : vector<8x32xi1>, vector<8x32xf32>
    %c56_62 = arith.constant 56 : index
    %c0_63 = arith.constant 0 : index
    %211 = vector.load %arg6[%c56_62, %c0_63] : memref<64x32xf32, #tpu.memory_space<vmem>>, vector<8x32xf32>
    tpu.vector_store %arg6[%c56_62, %c0_63], %210 {strides = array<i32>} : memref<64x32xf32, #tpu.memory_space<vmem>>, vector<8x32xf32>,
    %c0_64 = arith.constant 0 : index
    %c0_65 = arith.constant 0 : index
    %c0_66 = arith.constant 0 : index
    %212 = vector.load %arg7[%c0_64, %c0_65, %c0_66] : memref<3x8x32xf32, #tpu.memory_space<vmem>>, vector<1x8x32xf32>
    %213 = vector.shape_cast %212 : vector<1x8x32xf32> to vector<8x32xf32>
    %214 = vector.shape_cast %210 : vector<8x32xf32> to vector<1x8x32xf32>
    tpu.vector_store %arg7[%c0_64, %c0_65, %c0_66], %214 {strides = array<i32>} : memref<3x8x32xf32, #tpu.memory_space<vmem>>, vector<1x8x32xf32>,
    %c0_67 = arith.constant 0 : index
    %c0_68 = arith.constant 0 : index
    %215 = vector.load %arg6[%c0_67, %c0_68] : memref<64x32xf32, #tpu.memory_space<vmem>>, vector<64x32xf32>
    %c0_69 = arith.constant 0 : index
    %c0_70 = arith.constant 0 : index
    %c0_71 = arith.constant 0 : index
    %216 = vector.load %arg2[%c0_69, %c0_70, %c0_71] : memref<2x32x96xf32, #tpu.memory_space<vmem>>, vector<1x32x96xf32>
    %217 = vector.shape_cast %216 : vector<1x32x96xf32> to vector<32x96xf32>
    %cst_72 = arith.constant dense<0.000000e+00> : vector<64x96xf32>
    %218 = tpu.matmul %215, %217, %cst_72 {dimension_numbers = #tpu.dot_dimension_numbers<[1], [0], [0], [1], [0, 0, 1, 1], [], []>} : vector<64x32xf32>, vector<32x96xf32>, vector<64x96xf32> -> vector<64x96xf32>
    %c1 = arith.constant 1 : index
    %c0_73 = arith.constant 0 : index
    %c0_74 = arith.constant 0 : index
    %219 = vector.load %arg4[%c1, %c0_73, %c0_74] : memref<3x1x96xf32, #tpu.memory_space<vmem>>, vector<1x1x96xf32>
    %220 = vector.shape_cast %219 : vector<1x1x96xf32> to vector<1x96xf32>
    %221 = vector.broadcast %220 : vector<1x96xf32> to vector<64x96xf32>
    %222 = arith.addf %218, %221 : vector<64x96xf32>
    %c0_75 = arith.constant 0 : index
    %c0_76 = arith.constant 0 : index
    %223 = vector.load %arg8[%c0_75, %c0_76] : memref<64x96xf32, #tpu.memory_space<vmem>>, vector<64x96xf32>
    tpu.vector_store %arg8[%c0_75, %c0_76], %222 {strides = array<i32>} : memref<64x96xf32, #tpu.memory_space<vmem>>, vector<64x96xf32>,
    %c1_77 = arith.constant 1 : index
    %c0_78 = arith.constant 0 : index
    %c0_79 = arith.constant 0 : index
    %224 = vector.load %arg3[%c1_77, %c0_78, %c0_79] : memref<3x32x96xf32, #tpu.memory_space<vmem>>, vector<1x32x96xf32>
    %225 = vector.shape_cast %224 : vector<1x32x96xf32> to vector<32x96xf32>
    %c1_80 = arith.constant 1 : index
    %c0_81 = arith.constant 0 : index
    %c0_82 = arith.constant 0 : index
    %226 = vector.load %arg5[%c1_80, %c0_81, %c0_82] : memref<3x1x96xf32, #tpu.memory_space<vmem>>, vector<1x1x96xf32>
    %227 = vector.shape_cast %226 : vector<1x1x96xf32> to vector<1x96xf32>
    %228 = vector.shape_cast %227 : vector<1x96xf32> to vector<1x96xf32>
    %229 = vector.broadcast %228 : vector<1x96xf32> to vector<8x96xf32>
    %cst_83 = arith.constant 0.000000e+00 : f32
    %230 = vector.broadcast %cst_83 : f32 to vector<8x32xf32>
    %cst_84 = arith.constant dense<0.000000e+00> : vector<8x96xf32>
    %231 = tpu.matmul %230, %225, %cst_84 {dimension_numbers = #tpu.dot_dimension_numbers<[1], [0], [0], [1], [0, 0, 1, 1], [], []>} : vector<8x32xf32>, vector<32x96xf32>, vector<8x96xf32> -> vector<8x96xf32>
    %232 = arith.addf %231, %229 : vector<8x96xf32>
    %c0_85 = arith.constant 0 : index
    %c0_86 = arith.constant 0 : index
    %233 = vector.load %arg8[%c0_85, %c0_86] : memref<64x96xf32, #tpu.memory_space<vmem>>, vector<8x96xf32>
    %234 = vector.extract_strided_slice %233 {offsets = [0, 0], sizes = [8, 64], strides = [1, 1]} : vector<8x96xf32> to vector<8x64xf32>
    %235 = vector.extract_strided_slice %232 {offsets = [0, 0], sizes = [8, 64], strides = [1, 1]} : vector<8x96xf32> to vector<8x64xf32>
    %236 = arith.addf %234, %235 : vector<8x64xf32>
    %237 = arith.negf %236 : vector<8x64xf32>
    %238 = math.exp %237 : vector<8x64xf32>
    %cst_87 = arith.constant 1.000000e+00 : f32
    %239 = vector.broadcast %cst_87 : f32 to vector<8x64xf32>
    %240 = arith.addf %239, %238 : vector<8x64xf32>
    %241 = arith.divf %239, %240 : vector<8x64xf32>
    %242 = vector.extract_strided_slice %241 {offsets = [0, 0], sizes = [8, 32], strides = [1, 1]} : vector<8x64xf32> to vector<8x32xf32>
    %243 = vector.extract_strided_slice %241 {offsets = [0, 32], sizes = [8, 32], strides = [1, 1]} : vector<8x64xf32> to vector<8x32xf32>
    %244 = vector.extract_strided_slice %233 {offsets = [0, 64], sizes = [8, 32], strides = [1, 1]} : vector<8x96xf32> to vector<8x32xf32>
    %245 = vector.extract_strided_slice %232 {offsets = [0, 64], sizes = [8, 32], strides = [1, 1]} : vector<8x96xf32> to vector<8x32xf32>
    %246 = arith.mulf %242, %245 : vector<8x32xf32>
    %247 = arith.addf %244, %246 : vector<8x32xf32>
    %248 = math.tanh %247 : vector<8x32xf32>
    %cst_88 = arith.constant 1.000000e+00 : f32
    %249 = vector.broadcast %cst_88 : f32 to vector<8x32xf32>
    %250 = arith.subf %249, %243 : vector<8x32xf32>
    %251 = arith.mulf %250, %248 : vector<8x32xf32>
    %252 = arith.mulf %243, %230 : vector<8x32xf32>
    %253 = arith.addf %251, %252 : vector<8x32xf32>
    %c0_89 = arith.constant 0 : index
    %c0_90 = arith.constant 0 : index
    %254 = vector.load %arg6[%c0_89, %c0_90] : memref<64x32xf32, #tpu.memory_space<vmem>>, vector<8x32xf32>
    tpu.vector_store %arg6[%c0_89, %c0_90], %253 {strides = array<i32>} : memref<64x32xf32, #tpu.memory_space<vmem>>, vector<8x32xf32>,
    %cst_91 = arith.constant dense<0.000000e+00> : vector<8x96xf32>
    %255 = tpu.matmul %253, %225, %cst_91 {dimension_numbers = #tpu.dot_dimension_numbers<[1], [0], [0], [1], [0, 0, 1, 1], [], []>} : vector<8x32xf32>, vector<32x96xf32>, vector<8x96xf32> -> vector<8x96xf32>
    %256 = arith.addf %255, %229 : vector<8x96xf32>
    %c8_92 = arith.constant 8 : index
    %c0_93 = arith.constant 0 : index
    %257 = vector.load %arg8[%c8_92, %c0_93] : memref<64x96xf32, #tpu.memory_space<vmem>>, vector<8x96xf32>
    %258 = vector.extract_strided_slice %257 {offsets = [0, 0], sizes = [8, 64], strides = [1, 1]} : vector<8x96xf32> to vector<8x64xf32>
    %259 = vector.extract_strided_slice %256 {offsets = [0, 0], sizes = [8, 64], strides = [1, 1]} : vector<8x96xf32> to vector<8x64xf32>
    %260 = arith.addf %258, %259 : vector<8x64xf32>
    %261 = arith.negf %260 : vector<8x64xf32>
    %262 = math.exp %261 : vector<8x64xf32>
    %cst_94 = arith.constant 1.000000e+00 : f32
    %263 = vector.broadcast %cst_94 : f32 to vector<8x64xf32>
    %264 = arith.addf %263, %262 : vector<8x64xf32>
    %265 = arith.divf %263, %264 : vector<8x64xf32>
    %266 = vector.extract_strided_slice %265 {offsets = [0, 0], sizes = [8, 32], strides = [1, 1]} : vector<8x64xf32> to vector<8x32xf32>
    %267 = vector.extract_strided_slice %265 {offsets = [0, 32], sizes = [8, 32], strides = [1, 1]} : vector<8x64xf32> to vector<8x32xf32>
    %268 = vector.extract_strided_slice %257 {offsets = [0, 64], sizes = [8, 32], strides = [1, 1]} : vector<8x96xf32> to vector<8x32xf32>
    %269 = vector.extract_strided_slice %256 {offsets = [0, 64], sizes = [8, 32], strides = [1, 1]} : vector<8x96xf32> to vector<8x32xf32>
    %270 = arith.mulf %266, %269 : vector<8x32xf32>
    %271 = arith.addf %268, %270 : vector<8x32xf32>
    %272 = math.tanh %271 : vector<8x32xf32>
    %cst_95 = arith.constant 1.000000e+00 : f32
    %273 = vector.broadcast %cst_95 : f32 to vector<8x32xf32>
    %274 = arith.subf %273, %267 : vector<8x32xf32>
    %275 = arith.mulf %274, %272 : vector<8x32xf32>
    %276 = arith.mulf %267, %253 : vector<8x32xf32>
    %277 = arith.addf %275, %276 : vector<8x32xf32>
    %c8_96 = arith.constant 8 : index
    %c0_97 = arith.constant 0 : index
    %278 = vector.load %arg6[%c8_96, %c0_97] : memref<64x32xf32, #tpu.memory_space<vmem>>, vector<8x32xf32>
    tpu.vector_store %arg6[%c8_96, %c0_97], %277 {strides = array<i32>} : memref<64x32xf32, #tpu.memory_space<vmem>>, vector<8x32xf32>,
    %cst_98 = arith.constant dense<0.000000e+00> : vector<8x96xf32>
    %279 = tpu.matmul %277, %225, %cst_98 {dimension_numbers = #tpu.dot_dimension_numbers<[1], [0], [0], [1], [0, 0, 1, 1], [], []>} : vector<8x32xf32>, vector<32x96xf32>, vector<8x96xf32> -> vector<8x96xf32>
    %280 = arith.addf %279, %229 : vector<8x96xf32>
    %c16_99 = arith.constant 16 : index
    %c0_100 = arith.constant 0 : index
    %281 = vector.load %arg8[%c16_99, %c0_100] : memref<64x96xf32, #tpu.memory_space<vmem>>, vector<8x96xf32>
    %282 = vector.extract_strided_slice %281 {offsets = [0, 0], sizes = [8, 64], strides = [1, 1]} : vector<8x96xf32> to vector<8x64xf32>
    %283 = vector.extract_strided_slice %280 {offsets = [0, 0], sizes = [8, 64], strides = [1, 1]} : vector<8x96xf32> to vector<8x64xf32>
    %284 = arith.addf %282, %283 : vector<8x64xf32>
    %285 = arith.negf %284 : vector<8x64xf32>
    %286 = math.exp %285 : vector<8x64xf32>
    %cst_101 = arith.constant 1.000000e+00 : f32
    %287 = vector.broadcast %cst_101 : f32 to vector<8x64xf32>
    %288 = arith.addf %287, %286 : vector<8x64xf32>
    %289 = arith.divf %287, %288 : vector<8x64xf32>
    %290 = vector.extract_strided_slice %289 {offsets = [0, 0], sizes = [8, 32], strides = [1, 1]} : vector<8x64xf32> to vector<8x32xf32>
    %291 = vector.extract_strided_slice %289 {offsets = [0, 32], sizes = [8, 32], strides = [1, 1]} : vector<8x64xf32> to vector<8x32xf32>
    %292 = vector.extract_strided_slice %281 {offsets = [0, 64], sizes = [8, 32], strides = [1, 1]} : vector<8x96xf32> to vector<8x32xf32>
    %293 = vector.extract_strided_slice %280 {offsets = [0, 64], sizes = [8, 32], strides = [1, 1]} : vector<8x96xf32> to vector<8x32xf32>
    %294 = arith.mulf %290, %293 : vector<8x32xf32>
    %295 = arith.addf %292, %294 : vector<8x32xf32>
    %296 = math.tanh %295 : vector<8x32xf32>
    %cst_102 = arith.constant 1.000000e+00 : f32
    %297 = vector.broadcast %cst_102 : f32 to vector<8x32xf32>
    %298 = arith.subf %297, %291 : vector<8x32xf32>
    %299 = arith.mulf %298, %296 : vector<8x32xf32>
    %300 = arith.mulf %291, %277 : vector<8x32xf32>
    %301 = arith.addf %299, %300 : vector<8x32xf32>
    %c16_103 = arith.constant 16 : index
    %c0_104 = arith.constant 0 : index
    %302 = vector.load %arg6[%c16_103, %c0_104] : memref<64x32xf32, #tpu.memory_space<vmem>>, vector<8x32xf32>
    tpu.vector_store %arg6[%c16_103, %c0_104], %301 {strides = array<i32>} : memref<64x32xf32, #tpu.memory_space<vmem>>, vector<8x32xf32>,
    %cst_105 = arith.constant dense<0.000000e+00> : vector<8x96xf32>
    %303 = tpu.matmul %301, %225, %cst_105 {dimension_numbers = #tpu.dot_dimension_numbers<[1], [0], [0], [1], [0, 0, 1, 1], [], []>} : vector<8x32xf32>, vector<32x96xf32>, vector<8x96xf32> -> vector<8x96xf32>
    %304 = arith.addf %303, %229 : vector<8x96xf32>
    %c24_106 = arith.constant 24 : index
    %c0_107 = arith.constant 0 : index
    %305 = vector.load %arg8[%c24_106, %c0_107] : memref<64x96xf32, #tpu.memory_space<vmem>>, vector<8x96xf32>
    %306 = vector.extract_strided_slice %305 {offsets = [0, 0], sizes = [8, 64], strides = [1, 1]} : vector<8x96xf32> to vector<8x64xf32>
    %307 = vector.extract_strided_slice %304 {offsets = [0, 0], sizes = [8, 64], strides = [1, 1]} : vector<8x96xf32> to vector<8x64xf32>
    %308 = arith.addf %306, %307 : vector<8x64xf32>
    %309 = arith.negf %308 : vector<8x64xf32>
    %310 = math.exp %309 : vector<8x64xf32>
    %cst_108 = arith.constant 1.000000e+00 : f32
    %311 = vector.broadcast %cst_108 : f32 to vector<8x64xf32>
    %312 = arith.addf %311, %310 : vector<8x64xf32>
    %313 = arith.divf %311, %312 : vector<8x64xf32>
    %314 = vector.extract_strided_slice %313 {offsets = [0, 0], sizes = [8, 32], strides = [1, 1]} : vector<8x64xf32> to vector<8x32xf32>
    %315 = vector.extract_strided_slice %313 {offsets = [0, 32], sizes = [8, 32], strides = [1, 1]} : vector<8x64xf32> to vector<8x32xf32>
    %316 = vector.extract_strided_slice %305 {offsets = [0, 64], sizes = [8, 32], strides = [1, 1]} : vector<8x96xf32> to vector<8x32xf32>
    %317 = vector.extract_strided_slice %304 {offsets = [0, 64], sizes = [8, 32], strides = [1, 1]} : vector<8x96xf32> to vector<8x32xf32>
    %318 = arith.mulf %314, %317 : vector<8x32xf32>
    %319 = arith.addf %316, %318 : vector<8x32xf32>
    %320 = math.tanh %319 : vector<8x32xf32>
    %cst_109 = arith.constant 1.000000e+00 : f32
    %321 = vector.broadcast %cst_109 : f32 to vector<8x32xf32>
    %322 = arith.subf %321, %315 : vector<8x32xf32>
    %323 = arith.mulf %322, %320 : vector<8x32xf32>
    %324 = arith.mulf %315, %301 : vector<8x32xf32>
    %325 = arith.addf %323, %324 : vector<8x32xf32>
    %c24_110 = arith.constant 24 : index
    %c0_111 = arith.constant 0 : index
    %326 = vector.load %arg6[%c24_110, %c0_111] : memref<64x32xf32, #tpu.memory_space<vmem>>, vector<8x32xf32>
    tpu.vector_store %arg6[%c24_110, %c0_111], %325 {strides = array<i32>} : memref<64x32xf32, #tpu.memory_space<vmem>>, vector<8x32xf32>,
    %cst_112 = arith.constant dense<0.000000e+00> : vector<8x96xf32>
    %327 = tpu.matmul %325, %225, %cst_112 {dimension_numbers = #tpu.dot_dimension_numbers<[1], [0], [0], [1], [0, 0, 1, 1], [], []>} : vector<8x32xf32>, vector<32x96xf32>, vector<8x96xf32> -> vector<8x96xf32>
    %328 = arith.addf %327, %229 : vector<8x96xf32>
    %c32_113 = arith.constant 32 : index
    %c0_114 = arith.constant 0 : index
    %329 = vector.load %arg8[%c32_113, %c0_114] : memref<64x96xf32, #tpu.memory_space<vmem>>, vector<8x96xf32>
    %330 = vector.extract_strided_slice %329 {offsets = [0, 0], sizes = [8, 64], strides = [1, 1]} : vector<8x96xf32> to vector<8x64xf32>
    %331 = vector.extract_strided_slice %328 {offsets = [0, 0], sizes = [8, 64], strides = [1, 1]} : vector<8x96xf32> to vector<8x64xf32>
    %332 = arith.addf %330, %331 : vector<8x64xf32>
    %333 = arith.negf %332 : vector<8x64xf32>
    %334 = math.exp %333 : vector<8x64xf32>
    %cst_115 = arith.constant 1.000000e+00 : f32
    %335 = vector.broadcast %cst_115 : f32 to vector<8x64xf32>
    %336 = arith.addf %335, %334 : vector<8x64xf32>
    %337 = arith.divf %335, %336 : vector<8x64xf32>
    %338 = vector.extract_strided_slice %337 {offsets = [0, 0], sizes = [8, 32], strides = [1, 1]} : vector<8x64xf32> to vector<8x32xf32>
    %339 = vector.extract_strided_slice %337 {offsets = [0, 32], sizes = [8, 32], strides = [1, 1]} : vector<8x64xf32> to vector<8x32xf32>
    %340 = vector.extract_strided_slice %329 {offsets = [0, 64], sizes = [8, 32], strides = [1, 1]} : vector<8x96xf32> to vector<8x32xf32>
    %341 = vector.extract_strided_slice %328 {offsets = [0, 64], sizes = [8, 32], strides = [1, 1]} : vector<8x96xf32> to vector<8x32xf32>
    %342 = arith.mulf %338, %341 : vector<8x32xf32>
    %343 = arith.addf %340, %342 : vector<8x32xf32>
    %344 = math.tanh %343 : vector<8x32xf32>
    %cst_116 = arith.constant 1.000000e+00 : f32
    %345 = vector.broadcast %cst_116 : f32 to vector<8x32xf32>
    %346 = arith.subf %345, %339 : vector<8x32xf32>
    %347 = arith.mulf %346, %344 : vector<8x32xf32>
    %348 = arith.mulf %339, %325 : vector<8x32xf32>
    %349 = arith.addf %347, %348 : vector<8x32xf32>
    %c32_117 = arith.constant 32 : index
    %c0_118 = arith.constant 0 : index
    %350 = vector.load %arg6[%c32_117, %c0_118] : memref<64x32xf32, #tpu.memory_space<vmem>>, vector<8x32xf32>
    tpu.vector_store %arg6[%c32_117, %c0_118], %349 {strides = array<i32>} : memref<64x32xf32, #tpu.memory_space<vmem>>, vector<8x32xf32>,
    %cst_119 = arith.constant dense<0.000000e+00> : vector<8x96xf32>
    %351 = tpu.matmul %349, %225, %cst_119 {dimension_numbers = #tpu.dot_dimension_numbers<[1], [0], [0], [1], [0, 0, 1, 1], [], []>} : vector<8x32xf32>, vector<32x96xf32>, vector<8x96xf32> -> vector<8x96xf32>
    %352 = arith.addf %351, %229 : vector<8x96xf32>
    %c40_120 = arith.constant 40 : index
    %c0_121 = arith.constant 0 : index
    %353 = vector.load %arg8[%c40_120, %c0_121] : memref<64x96xf32, #tpu.memory_space<vmem>>, vector<8x96xf32>
    %354 = vector.extract_strided_slice %353 {offsets = [0, 0], sizes = [8, 64], strides = [1, 1]} : vector<8x96xf32> to vector<8x64xf32>
    %355 = vector.extract_strided_slice %352 {offsets = [0, 0], sizes = [8, 64], strides = [1, 1]} : vector<8x96xf32> to vector<8x64xf32>
    %356 = arith.addf %354, %355 : vector<8x64xf32>
    %357 = arith.negf %356 : vector<8x64xf32>
    %358 = math.exp %357 : vector<8x64xf32>
    %cst_122 = arith.constant 1.000000e+00 : f32
    %359 = vector.broadcast %cst_122 : f32 to vector<8x64xf32>
    %360 = arith.addf %359, %358 : vector<8x64xf32>
    %361 = arith.divf %359, %360 : vector<8x64xf32>
    %362 = vector.extract_strided_slice %361 {offsets = [0, 0], sizes = [8, 32], strides = [1, 1]} : vector<8x64xf32> to vector<8x32xf32>
    %363 = vector.extract_strided_slice %361 {offsets = [0, 32], sizes = [8, 32], strides = [1, 1]} : vector<8x64xf32> to vector<8x32xf32>
    %364 = vector.extract_strided_slice %353 {offsets = [0, 64], sizes = [8, 32], strides = [1, 1]} : vector<8x96xf32> to vector<8x32xf32>
    %365 = vector.extract_strided_slice %352 {offsets = [0, 64], sizes = [8, 32], strides = [1, 1]} : vector<8x96xf32> to vector<8x32xf32>
    %366 = arith.mulf %362, %365 : vector<8x32xf32>
    %367 = arith.addf %364, %366 : vector<8x32xf32>
    %368 = math.tanh %367 : vector<8x32xf32>
    %cst_123 = arith.constant 1.000000e+00 : f32
    %369 = vector.broadcast %cst_123 : f32 to vector<8x32xf32>
    %370 = arith.subf %369, %363 : vector<8x32xf32>
    %371 = arith.mulf %370, %368 : vector<8x32xf32>
    %372 = arith.mulf %363, %349 : vector<8x32xf32>
    %373 = arith.addf %371, %372 : vector<8x32xf32>
    %c40_124 = arith.constant 40 : index
    %c0_125 = arith.constant 0 : index
    %374 = vector.load %arg6[%c40_124, %c0_125] : memref<64x32xf32, #tpu.memory_space<vmem>>, vector<8x32xf32>
    tpu.vector_store %arg6[%c40_124, %c0_125], %373 {strides = array<i32>} : memref<64x32xf32, #tpu.memory_space<vmem>>, vector<8x32xf32>,
    %cst_126 = arith.constant dense<0.000000e+00> : vector<8x96xf32>
    %375 = tpu.matmul %373, %225, %cst_126 {dimension_numbers = #tpu.dot_dimension_numbers<[1], [0], [0], [1], [0, 0, 1, 1], [], []>} : vector<8x32xf32>, vector<32x96xf32>, vector<8x96xf32> -> vector<8x96xf32>
    %376 = arith.addf %375, %229 : vector<8x96xf32>
    %c48_127 = arith.constant 48 : index
    %c0_128 = arith.constant 0 : index
    %377 = vector.load %arg8[%c48_127, %c0_128] : memref<64x96xf32, #tpu.memory_space<vmem>>, vector<8x96xf32>
    %378 = vector.extract_strided_slice %377 {offsets = [0, 0], sizes = [8, 64], strides = [1, 1]} : vector<8x96xf32> to vector<8x64xf32>
    %379 = vector.extract_strided_slice %376 {offsets = [0, 0], sizes = [8, 64], strides = [1, 1]} : vector<8x96xf32> to vector<8x64xf32>
    %380 = arith.addf %378, %379 : vector<8x64xf32>
    %381 = arith.negf %380 : vector<8x64xf32>
    %382 = math.exp %381 : vector<8x64xf32>
    %cst_129 = arith.constant 1.000000e+00 : f32
    %383 = vector.broadcast %cst_129 : f32 to vector<8x64xf32>
    %384 = arith.addf %383, %382 : vector<8x64xf32>
    %385 = arith.divf %383, %384 : vector<8x64xf32>
    %386 = vector.extract_strided_slice %385 {offsets = [0, 0], sizes = [8, 32], strides = [1, 1]} : vector<8x64xf32> to vector<8x32xf32>
    %387 = vector.extract_strided_slice %385 {offsets = [0, 32], sizes = [8, 32], strides = [1, 1]} : vector<8x64xf32> to vector<8x32xf32>
    %388 = vector.extract_strided_slice %377 {offsets = [0, 64], sizes = [8, 32], strides = [1, 1]} : vector<8x96xf32> to vector<8x32xf32>
    %389 = vector.extract_strided_slice %376 {offsets = [0, 64], sizes = [8, 32], strides = [1, 1]} : vector<8x96xf32> to vector<8x32xf32>
    %390 = arith.mulf %386, %389 : vector<8x32xf32>
    %391 = arith.addf %388, %390 : vector<8x32xf32>
    %392 = math.tanh %391 : vector<8x32xf32>
    %cst_130 = arith.constant 1.000000e+00 : f32
    %393 = vector.broadcast %cst_130 : f32 to vector<8x32xf32>
    %394 = arith.subf %393, %387 : vector<8x32xf32>
    %395 = arith.mulf %394, %392 : vector<8x32xf32>
    %396 = arith.mulf %387, %373 : vector<8x32xf32>
    %397 = arith.addf %395, %396 : vector<8x32xf32>
    %398 = arith.select %2, %397, %373 : vector<8x32xi1>, vector<8x32xf32>
    %c48_131 = arith.constant 48 : index
    %c0_132 = arith.constant 0 : index
    %399 = vector.load %arg6[%c48_131, %c0_132] : memref<64x32xf32, #tpu.memory_space<vmem>>, vector<8x32xf32>
    tpu.vector_store %arg6[%c48_131, %c0_132], %398 {strides = array<i32>} : memref<64x32xf32, #tpu.memory_space<vmem>>, vector<8x32xf32>,
    %cst_133 = arith.constant dense<0.000000e+00> : vector<8x96xf32>
    %400 = tpu.matmul %398, %225, %cst_133 {dimension_numbers = #tpu.dot_dimension_numbers<[1], [0], [0], [1], [0, 0, 1, 1], [], []>} : vector<8x32xf32>, vector<32x96xf32>, vector<8x96xf32> -> vector<8x96xf32>
    %401 = arith.addf %400, %229 : vector<8x96xf32>
    %c56_134 = arith.constant 56 : index
    %c0_135 = arith.constant 0 : index
    %402 = vector.load %arg8[%c56_134, %c0_135] : memref<64x96xf32, #tpu.memory_space<vmem>>, vector<8x96xf32>
    %403 = vector.extract_strided_slice %402 {offsets = [0, 0], sizes = [8, 64], strides = [1, 1]} : vector<8x96xf32> to vector<8x64xf32>
    %404 = vector.extract_strided_slice %401 {offsets = [0, 0], sizes = [8, 64], strides = [1, 1]} : vector<8x96xf32> to vector<8x64xf32>
    %405 = arith.addf %403, %404 : vector<8x64xf32>
    %406 = arith.negf %405 : vector<8x64xf32>
    %407 = math.exp %406 : vector<8x64xf32>
    %cst_136 = arith.constant 1.000000e+00 : f32
    %408 = vector.broadcast %cst_136 : f32 to vector<8x64xf32>
    %409 = arith.addf %408, %407 : vector<8x64xf32>
    %410 = arith.divf %408, %409 : vector<8x64xf32>
    %411 = vector.extract_strided_slice %410 {offsets = [0, 0], sizes = [8, 32], strides = [1, 1]} : vector<8x64xf32> to vector<8x32xf32>
    %412 = vector.extract_strided_slice %410 {offsets = [0, 32], sizes = [8, 32], strides = [1, 1]} : vector<8x64xf32> to vector<8x32xf32>
    %413 = vector.extract_strided_slice %402 {offsets = [0, 64], sizes = [8, 32], strides = [1, 1]} : vector<8x96xf32> to vector<8x32xf32>
    %414 = vector.extract_strided_slice %401 {offsets = [0, 64], sizes = [8, 32], strides = [1, 1]} : vector<8x96xf32> to vector<8x32xf32>
    %415 = arith.mulf %411, %414 : vector<8x32xf32>
    %416 = arith.addf %413, %415 : vector<8x32xf32>
    %417 = math.tanh %416 : vector<8x32xf32>
    %cst_137 = arith.constant 1.000000e+00 : f32
    %418 = vector.broadcast %cst_137 : f32 to vector<8x32xf32>
    %419 = arith.subf %418, %412 : vector<8x32xf32>
    %420 = arith.mulf %419, %417 : vector<8x32xf32>
    %421 = arith.mulf %412, %398 : vector<8x32xf32>
    %422 = arith.addf %420, %421 : vector<8x32xf32>
    %423 = arith.select %2, %422, %398 : vector<8x32xi1>, vector<8x32xf32>
    %c56_138 = arith.constant 56 : index
    %c0_139 = arith.constant 0 : index
    %424 = vector.load %arg6[%c56_138, %c0_139] : memref<64x32xf32, #tpu.memory_space<vmem>>, vector<8x32xf32>
    tpu.vector_store %arg6[%c56_138, %c0_139], %423 {strides = array<i32>} : memref<64x32xf32, #tpu.memory_space<vmem>>, vector<8x32xf32>,
    %c1_140 = arith.constant 1 : index
    %c0_141 = arith.constant 0 : index
    %c0_142 = arith.constant 0 : index
    %425 = vector.load %arg7[%c1_140, %c0_141, %c0_142] : memref<3x8x32xf32, #tpu.memory_space<vmem>>, vector<1x8x32xf32>
    %426 = vector.shape_cast %425 : vector<1x8x32xf32> to vector<8x32xf32>
    %427 = vector.shape_cast %423 : vector<8x32xf32> to vector<1x8x32xf32>
    tpu.vector_store %arg7[%c1_140, %c0_141, %c0_142], %427 {strides = array<i32>} : memref<3x8x32xf32, #tpu.memory_space<vmem>>, vector<1x8x32xf32>,
    %c0_143 = arith.constant 0 : index
    %c0_144 = arith.constant 0 : index
    %428 = vector.load %arg6[%c0_143, %c0_144] : memref<64x32xf32, #tpu.memory_space<vmem>>, vector<64x32xf32>
    %c1_145 = arith.constant 1 : index
    %c0_146 = arith.constant 0 : index
    %c0_147 = arith.constant 0 : index
    %429 = vector.load %arg2[%c1_145, %c0_146, %c0_147] : memref<2x32x96xf32, #tpu.memory_space<vmem>>, vector<1x32x96xf32>
    %430 = vector.shape_cast %429 : vector<1x32x96xf32> to vector<32x96xf32>
    %cst_148 = arith.constant dense<0.000000e+00> : vector<64x96xf32>
    %431 = tpu.matmul %428, %430, %cst_148 {dimension_numbers = #tpu.dot_dimension_numbers<[1], [0], [0], [1], [0, 0, 1, 1], [], []>} : vector<64x32xf32>, vector<32x96xf32>, vector<64x96xf32> -> vector<64x96xf32>
    %c2 = arith.constant 2 : index
    %c0_149 = arith.constant 0 : index
    %c0_150 = arith.constant 0 : index
    %432 = vector.load %arg4[%c2, %c0_149, %c0_150] : memref<3x1x96xf32, #tpu.memory_space<vmem>>, vector<1x1x96xf32>
    %433 = vector.shape_cast %432 : vector<1x1x96xf32> to vector<1x96xf32>
    %434 = vector.broadcast %433 : vector<1x96xf32> to vector<64x96xf32>
    %435 = arith.addf %431, %434 : vector<64x96xf32>
    %c0_151 = arith.constant 0 : index
    %c0_152 = arith.constant 0 : index
    %436 = vector.load %arg8[%c0_151, %c0_152] : memref<64x96xf32, #tpu.memory_space<vmem>>, vector<64x96xf32>
    tpu.vector_store %arg8[%c0_151, %c0_152], %435 {strides = array<i32>} : memref<64x96xf32, #tpu.memory_space<vmem>>, vector<64x96xf32>,
    %c2_153 = arith.constant 2 : index
    %c0_154 = arith.constant 0 : index
    %c0_155 = arith.constant 0 : index
    %437 = vector.load %arg3[%c2_153, %c0_154, %c0_155] : memref<3x32x96xf32, #tpu.memory_space<vmem>>, vector<1x32x96xf32>
    %438 = vector.shape_cast %437 : vector<1x32x96xf32> to vector<32x96xf32>
    %c2_156 = arith.constant 2 : index
    %c0_157 = arith.constant 0 : index
    %c0_158 = arith.constant 0 : index
    %439 = vector.load %arg5[%c2_156, %c0_157, %c0_158] : memref<3x1x96xf32, #tpu.memory_space<vmem>>, vector<1x1x96xf32>
    %440 = vector.shape_cast %439 : vector<1x1x96xf32> to vector<1x96xf32>
    %441 = vector.shape_cast %440 : vector<1x96xf32> to vector<1x96xf32>
    %442 = vector.broadcast %441 : vector<1x96xf32> to vector<8x96xf32>
    %cst_159 = arith.constant 0.000000e+00 : f32
    %443 = vector.broadcast %cst_159 : f32 to vector<8x32xf32>
    %cst_160 = arith.constant dense<0.000000e+00> : vector<8x96xf32>
    %444 = tpu.matmul %443, %438, %cst_160 {dimension_numbers = #tpu.dot_dimension_numbers<[1], [0], [0], [1], [0, 0, 1, 1], [], []>} : vector<8x32xf32>, vector<32x96xf32>, vector<8x96xf32> -> vector<8x96xf32>
    %445 = arith.addf %444, %442 : vector<8x96xf32>
    %c0_161 = arith.constant 0 : index
    %c0_162 = arith.constant 0 : index
    %446 = vector.load %arg8[%c0_161, %c0_162] : memref<64x96xf32, #tpu.memory_space<vmem>>, vector<8x96xf32>
    %447 = vector.extract_strided_slice %446 {offsets = [0, 0], sizes = [8, 64], strides = [1, 1]} : vector<8x96xf32> to vector<8x64xf32>
    %448 = vector.extract_strided_slice %445 {offsets = [0, 0], sizes = [8, 64], strides = [1, 1]} : vector<8x96xf32> to vector<8x64xf32>
    %449 = arith.addf %447, %448 : vector<8x64xf32>
    %450 = arith.negf %449 : vector<8x64xf32>
    %451 = math.exp %450 : vector<8x64xf32>
    %cst_163 = arith.constant 1.000000e+00 : f32
    %452 = vector.broadcast %cst_163 : f32 to vector<8x64xf32>
    %453 = arith.addf %452, %451 : vector<8x64xf32>
    %454 = arith.divf %452, %453 : vector<8x64xf32>
    %455 = vector.extract_strided_slice %454 {offsets = [0, 0], sizes = [8, 32], strides = [1, 1]} : vector<8x64xf32> to vector<8x32xf32>
    %456 = vector.extract_strided_slice %454 {offsets = [0, 32], sizes = [8, 32], strides = [1, 1]} : vector<8x64xf32> to vector<8x32xf32>
    %457 = vector.extract_strided_slice %446 {offsets = [0, 64], sizes = [8, 32], strides = [1, 1]} : vector<8x96xf32> to vector<8x32xf32>
    %458 = vector.extract_strided_slice %445 {offsets = [0, 64], sizes = [8, 32], strides = [1, 1]} : vector<8x96xf32> to vector<8x32xf32>
    %459 = arith.mulf %455, %458 : vector<8x32xf32>
    %460 = arith.addf %457, %459 : vector<8x32xf32>
    %461 = math.tanh %460 : vector<8x32xf32>
    %cst_164 = arith.constant 1.000000e+00 : f32
    %462 = vector.broadcast %cst_164 : f32 to vector<8x32xf32>
    %463 = arith.subf %462, %456 : vector<8x32xf32>
    %464 = arith.mulf %463, %461 : vector<8x32xf32>
    %465 = arith.mulf %456, %443 : vector<8x32xf32>
    %466 = arith.addf %464, %465 : vector<8x32xf32>
    %c0_165 = arith.constant 0 : index
    %c0_166 = arith.constant 0 : index
    %467 = vector.load %arg6[%c0_165, %c0_166] : memref<64x32xf32, #tpu.memory_space<vmem>>, vector<8x32xf32>
    tpu.vector_store %arg6[%c0_165, %c0_166], %466 {strides = array<i32>} : memref<64x32xf32, #tpu.memory_space<vmem>>, vector<8x32xf32>,
    %cst_167 = arith.constant dense<0.000000e+00> : vector<8x96xf32>
    %468 = tpu.matmul %466, %438, %cst_167 {dimension_numbers = #tpu.dot_dimension_numbers<[1], [0], [0], [1], [0, 0, 1, 1], [], []>} : vector<8x32xf32>, vector<32x96xf32>, vector<8x96xf32> -> vector<8x96xf32>
    %469 = arith.addf %468, %442 : vector<8x96xf32>
    %c8_168 = arith.constant 8 : index
    %c0_169 = arith.constant 0 : index
    %470 = vector.load %arg8[%c8_168, %c0_169] : memref<64x96xf32, #tpu.memory_space<vmem>>, vector<8x96xf32>
    %471 = vector.extract_strided_slice %470 {offsets = [0, 0], sizes = [8, 64], strides = [1, 1]} : vector<8x96xf32> to vector<8x64xf32>
    %472 = vector.extract_strided_slice %469 {offsets = [0, 0], sizes = [8, 64], strides = [1, 1]} : vector<8x96xf32> to vector<8x64xf32>
    %473 = arith.addf %471, %472 : vector<8x64xf32>
    %474 = arith.negf %473 : vector<8x64xf32>
    %475 = math.exp %474 : vector<8x64xf32>
    %cst_170 = arith.constant 1.000000e+00 : f32
    %476 = vector.broadcast %cst_170 : f32 to vector<8x64xf32>
    %477 = arith.addf %476, %475 : vector<8x64xf32>
    %478 = arith.divf %476, %477 : vector<8x64xf32>
    %479 = vector.extract_strided_slice %478 {offsets = [0, 0], sizes = [8, 32], strides = [1, 1]} : vector<8x64xf32> to vector<8x32xf32>
    %480 = vector.extract_strided_slice %478 {offsets = [0, 32], sizes = [8, 32], strides = [1, 1]} : vector<8x64xf32> to vector<8x32xf32>
    %481 = vector.extract_strided_slice %470 {offsets = [0, 64], sizes = [8, 32], strides = [1, 1]} : vector<8x96xf32> to vector<8x32xf32>
    %482 = vector.extract_strided_slice %469 {offsets = [0, 64], sizes = [8, 32], strides = [1, 1]} : vector<8x96xf32> to vector<8x32xf32>
    %483 = arith.mulf %479, %482 : vector<8x32xf32>
    %484 = arith.addf %481, %483 : vector<8x32xf32>
    %485 = math.tanh %484 : vector<8x32xf32>
    %cst_171 = arith.constant 1.000000e+00 : f32
    %486 = vector.broadcast %cst_171 : f32 to vector<8x32xf32>
    %487 = arith.subf %486, %480 : vector<8x32xf32>
    %488 = arith.mulf %487, %485 : vector<8x32xf32>
    %489 = arith.mulf %480, %466 : vector<8x32xf32>
    %490 = arith.addf %488, %489 : vector<8x32xf32>
    %c8_172 = arith.constant 8 : index
    %c0_173 = arith.constant 0 : index
    %491 = vector.load %arg6[%c8_172, %c0_173] : memref<64x32xf32, #tpu.memory_space<vmem>>, vector<8x32xf32>
    tpu.vector_store %arg6[%c8_172, %c0_173], %490 {strides = array<i32>} : memref<64x32xf32, #tpu.memory_space<vmem>>, vector<8x32xf32>,
    %cst_174 = arith.constant dense<0.000000e+00> : vector<8x96xf32>
    %492 = tpu.matmul %490, %438, %cst_174 {dimension_numbers = #tpu.dot_dimension_numbers<[1], [0], [0], [1], [0, 0, 1, 1], [], []>} : vector<8x32xf32>, vector<32x96xf32>, vector<8x96xf32> -> vector<8x96xf32>
    %493 = arith.addf %492, %442 : vector<8x96xf32>
    %c16_175 = arith.constant 16 : index
    %c0_176 = arith.constant 0 : index
    %494 = vector.load %arg8[%c16_175, %c0_176] : memref<64x96xf32, #tpu.memory_space<vmem>>, vector<8x96xf32>
    %495 = vector.extract_strided_slice %494 {offsets = [0, 0], sizes = [8, 64], strides = [1, 1]} : vector<8x96xf32> to vector<8x64xf32>
    %496 = vector.extract_strided_slice %493 {offsets = [0, 0], sizes = [8, 64], strides = [1, 1]} : vector<8x96xf32> to vector<8x64xf32>
    %497 = arith.addf %495, %496 : vector<8x64xf32>
    %498 = arith.negf %497 : vector<8x64xf32>
    %499 = math.exp %498 : vector<8x64xf32>
    %cst_177 = arith.constant 1.000000e+00 : f32
    %500 = vector.broadcast %cst_177 : f32 to vector<8x64xf32>
    %501 = arith.addf %500, %499 : vector<8x64xf32>
    %502 = arith.divf %500, %501 : vector<8x64xf32>
    %503 = vector.extract_strided_slice %502 {offsets = [0, 0], sizes = [8, 32], strides = [1, 1]} : vector<8x64xf32> to vector<8x32xf32>
    %504 = vector.extract_strided_slice %502 {offsets = [0, 32], sizes = [8, 32], strides = [1, 1]} : vector<8x64xf32> to vector<8x32xf32>
    %505 = vector.extract_strided_slice %494 {offsets = [0, 64], sizes = [8, 32], strides = [1, 1]} : vector<8x96xf32> to vector<8x32xf32>
    %506 = vector.extract_strided_slice %493 {offsets = [0, 64], sizes = [8, 32], strides = [1, 1]} : vector<8x96xf32> to vector<8x32xf32>
    %507 = arith.mulf %503, %506 : vector<8x32xf32>
    %508 = arith.addf %505, %507 : vector<8x32xf32>
    %509 = math.tanh %508 : vector<8x32xf32>
    %cst_178 = arith.constant 1.000000e+00 : f32
    %510 = vector.broadcast %cst_178 : f32 to vector<8x32xf32>
    %511 = arith.subf %510, %504 : vector<8x32xf32>
    %512 = arith.mulf %511, %509 : vector<8x32xf32>
    %513 = arith.mulf %504, %490 : vector<8x32xf32>
    %514 = arith.addf %512, %513 : vector<8x32xf32>
    %c16_179 = arith.constant 16 : index
    %c0_180 = arith.constant 0 : index
    %515 = vector.load %arg6[%c16_179, %c0_180] : memref<64x32xf32, #tpu.memory_space<vmem>>, vector<8x32xf32>
    tpu.vector_store %arg6[%c16_179, %c0_180], %514 {strides = array<i32>} : memref<64x32xf32, #tpu.memory_space<vmem>>, vector<8x32xf32>,
    %cst_181 = arith.constant dense<0.000000e+00> : vector<8x96xf32>
    %516 = tpu.matmul %514, %438, %cst_181 {dimension_numbers = #tpu.dot_dimension_numbers<[1], [0], [0], [1], [0, 0, 1, 1], [], []>} : vector<8x32xf32>, vector<32x96xf32>, vector<8x96xf32> -> vector<8x96xf32>
    %517 = arith.addf %516, %442 : vector<8x96xf32>
    %c24_182 = arith.constant 24 : index
    %c0_183 = arith.constant 0 : index
    %518 = vector.load %arg8[%c24_182, %c0_183] : memref<64x96xf32, #tpu.memory_space<vmem>>, vector<8x96xf32>
    %519 = vector.extract_strided_slice %518 {offsets = [0, 0], sizes = [8, 64], strides = [1, 1]} : vector<8x96xf32> to vector<8x64xf32>
    %520 = vector.extract_strided_slice %517 {offsets = [0, 0], sizes = [8, 64], strides = [1, 1]} : vector<8x96xf32> to vector<8x64xf32>
    %521 = arith.addf %519, %520 : vector<8x64xf32>
    %522 = arith.negf %521 : vector<8x64xf32>
    %523 = math.exp %522 : vector<8x64xf32>
    %cst_184 = arith.constant 1.000000e+00 : f32
    %524 = vector.broadcast %cst_184 : f32 to vector<8x64xf32>
    %525 = arith.addf %524, %523 : vector<8x64xf32>
    %526 = arith.divf %524, %525 : vector<8x64xf32>
    %527 = vector.extract_strided_slice %526 {offsets = [0, 0], sizes = [8, 32], strides = [1, 1]} : vector<8x64xf32> to vector<8x32xf32>
    %528 = vector.extract_strided_slice %526 {offsets = [0, 32], sizes = [8, 32], strides = [1, 1]} : vector<8x64xf32> to vector<8x32xf32>
    %529 = vector.extract_strided_slice %518 {offsets = [0, 64], sizes = [8, 32], strides = [1, 1]} : vector<8x96xf32> to vector<8x32xf32>
    %530 = vector.extract_strided_slice %517 {offsets = [0, 64], sizes = [8, 32], strides = [1, 1]} : vector<8x96xf32> to vector<8x32xf32>
    %531 = arith.mulf %527, %530 : vector<8x32xf32>
    %532 = arith.addf %529, %531 : vector<8x32xf32>
    %533 = math.tanh %532 : vector<8x32xf32>
    %cst_185 = arith.constant 1.000000e+00 : f32
    %534 = vector.broadcast %cst_185 : f32 to vector<8x32xf32>
    %535 = arith.subf %534, %528 : vector<8x32xf32>
    %536 = arith.mulf %535, %533 : vector<8x32xf32>
    %537 = arith.mulf %528, %514 : vector<8x32xf32>
    %538 = arith.addf %536, %537 : vector<8x32xf32>
    %c24_186 = arith.constant 24 : index
    %c0_187 = arith.constant 0 : index
    %539 = vector.load %arg6[%c24_186, %c0_187] : memref<64x32xf32, #tpu.memory_space<vmem>>, vector<8x32xf32>
    tpu.vector_store %arg6[%c24_186, %c0_187], %538 {strides = array<i32>} : memref<64x32xf32, #tpu.memory_space<vmem>>, vector<8x32xf32>,
    %cst_188 = arith.constant dense<0.000000e+00> : vector<8x96xf32>
    %540 = tpu.matmul %538, %438, %cst_188 {dimension_numbers = #tpu.dot_dimension_numbers<[1], [0], [0], [1], [0, 0, 1, 1], [], []>} : vector<8x32xf32>, vector<32x96xf32>, vector<8x96xf32> -> vector<8x96xf32>
    %541 = arith.addf %540, %442 : vector<8x96xf32>
    %c32_189 = arith.constant 32 : index
    %c0_190 = arith.constant 0 : index
    %542 = vector.load %arg8[%c32_189, %c0_190] : memref<64x96xf32, #tpu.memory_space<vmem>>, vector<8x96xf32>
    %543 = vector.extract_strided_slice %542 {offsets = [0, 0], sizes = [8, 64], strides = [1, 1]} : vector<8x96xf32> to vector<8x64xf32>
    %544 = vector.extract_strided_slice %541 {offsets = [0, 0], sizes = [8, 64], strides = [1, 1]} : vector<8x96xf32> to vector<8x64xf32>
    %545 = arith.addf %543, %544 : vector<8x64xf32>
    %546 = arith.negf %545 : vector<8x64xf32>
    %547 = math.exp %546 : vector<8x64xf32>
    %cst_191 = arith.constant 1.000000e+00 : f32
    %548 = vector.broadcast %cst_191 : f32 to vector<8x64xf32>
    %549 = arith.addf %548, %547 : vector<8x64xf32>
    %550 = arith.divf %548, %549 : vector<8x64xf32>
    %551 = vector.extract_strided_slice %550 {offsets = [0, 0], sizes = [8, 32], strides = [1, 1]} : vector<8x64xf32> to vector<8x32xf32>
    %552 = vector.extract_strided_slice %550 {offsets = [0, 32], sizes = [8, 32], strides = [1, 1]} : vector<8x64xf32> to vector<8x32xf32>
    %553 = vector.extract_strided_slice %542 {offsets = [0, 64], sizes = [8, 32], strides = [1, 1]} : vector<8x96xf32> to vector<8x32xf32>
    %554 = vector.extract_strided_slice %541 {offsets = [0, 64], sizes = [8, 32], strides = [1, 1]} : vector<8x96xf32> to vector<8x32xf32>
    %555 = arith.mulf %551, %554 : vector<8x32xf32>
    %556 = arith.addf %553, %555 : vector<8x32xf32>
    %557 = math.tanh %556 : vector<8x32xf32>
    %cst_192 = arith.constant 1.000000e+00 : f32
    %558 = vector.broadcast %cst_192 : f32 to vector<8x32xf32>
    %559 = arith.subf %558, %552 : vector<8x32xf32>
    %560 = arith.mulf %559, %557 : vector<8x32xf32>
    %561 = arith.mulf %552, %538 : vector<8x32xf32>
    %562 = arith.addf %560, %561 : vector<8x32xf32>
    %c32_193 = arith.constant 32 : index
    %c0_194 = arith.constant 0 : index
    %563 = vector.load %arg6[%c32_193, %c0_194] : memref<64x32xf32, #tpu.memory_space<vmem>>, vector<8x32xf32>
    tpu.vector_store %arg6[%c32_193, %c0_194], %562 {strides = array<i32>} : memref<64x32xf32, #tpu.memory_space<vmem>>, vector<8x32xf32>,
    %cst_195 = arith.constant dense<0.000000e+00> : vector<8x96xf32>
    %564 = tpu.matmul %562, %438, %cst_195 {dimension_numbers = #tpu.dot_dimension_numbers<[1], [0], [0], [1], [0, 0, 1, 1], [], []>} : vector<8x32xf32>, vector<32x96xf32>, vector<8x96xf32> -> vector<8x96xf32>
    %565 = arith.addf %564, %442 : vector<8x96xf32>
    %c40_196 = arith.constant 40 : index
    %c0_197 = arith.constant 0 : index
    %566 = vector.load %arg8[%c40_196, %c0_197] : memref<64x96xf32, #tpu.memory_space<vmem>>, vector<8x96xf32>
    %567 = vector.extract_strided_slice %566 {offsets = [0, 0], sizes = [8, 64], strides = [1, 1]} : vector<8x96xf32> to vector<8x64xf32>
    %568 = vector.extract_strided_slice %565 {offsets = [0, 0], sizes = [8, 64], strides = [1, 1]} : vector<8x96xf32> to vector<8x64xf32>
    %569 = arith.addf %567, %568 : vector<8x64xf32>
    %570 = arith.negf %569 : vector<8x64xf32>
    %571 = math.exp %570 : vector<8x64xf32>
    %cst_198 = arith.constant 1.000000e+00 : f32
    %572 = vector.broadcast %cst_198 : f32 to vector<8x64xf32>
    %573 = arith.addf %572, %571 : vector<8x64xf32>
    %574 = arith.divf %572, %573 : vector<8x64xf32>
    %575 = vector.extract_strided_slice %574 {offsets = [0, 0], sizes = [8, 32], strides = [1, 1]} : vector<8x64xf32> to vector<8x32xf32>
    %576 = vector.extract_strided_slice %574 {offsets = [0, 32], sizes = [8, 32], strides = [1, 1]} : vector<8x64xf32> to vector<8x32xf32>
    %577 = vector.extract_strided_slice %566 {offsets = [0, 64], sizes = [8, 32], strides = [1, 1]} : vector<8x96xf32> to vector<8x32xf32>
    %578 = vector.extract_strided_slice %565 {offsets = [0, 64], sizes = [8, 32], strides = [1, 1]} : vector<8x96xf32> to vector<8x32xf32>
    %579 = arith.mulf %575, %578 : vector<8x32xf32>
    %580 = arith.addf %577, %579 : vector<8x32xf32>
    %581 = math.tanh %580 : vector<8x32xf32>
    %cst_199 = arith.constant 1.000000e+00 : f32
    %582 = vector.broadcast %cst_199 : f32 to vector<8x32xf32>
    %583 = arith.subf %582, %576 : vector<8x32xf32>
    %584 = arith.mulf %583, %581 : vector<8x32xf32>
    %585 = arith.mulf %576, %562 : vector<8x32xf32>
    %586 = arith.addf %584, %585 : vector<8x32xf32>
    %c40_200 = arith.constant 40 : index
    %c0_201 = arith.constant 0 : index
    %587 = vector.load %arg6[%c40_200, %c0_201] : memref<64x32xf32, #tpu.memory_space<vmem>>, vector<8x32xf32>
    tpu.vector_store %arg6[%c40_200, %c0_201], %586 {strides = array<i32>} : memref<64x32xf32, #tpu.memory_space<vmem>>, vector<8x32xf32>,
    %cst_202 = arith.constant dense<0.000000e+00> : vector<8x96xf32>
    %588 = tpu.matmul %586, %438, %cst_202 {dimension_numbers = #tpu.dot_dimension_numbers<[1], [0], [0], [1], [0, 0, 1, 1], [], []>} : vector<8x32xf32>, vector<32x96xf32>, vector<8x96xf32> -> vector<8x96xf32>
    %589 = arith.addf %588, %442 : vector<8x96xf32>
    %c48_203 = arith.constant 48 : index
    %c0_204 = arith.constant 0 : index
    %590 = vector.load %arg8[%c48_203, %c0_204] : memref<64x96xf32, #tpu.memory_space<vmem>>, vector<8x96xf32>
    %591 = vector.extract_strided_slice %590 {offsets = [0, 0], sizes = [8, 64], strides = [1, 1]} : vector<8x96xf32> to vector<8x64xf32>
    %592 = vector.extract_strided_slice %589 {offsets = [0, 0], sizes = [8, 64], strides = [1, 1]} : vector<8x96xf32> to vector<8x64xf32>
    %593 = arith.addf %591, %592 : vector<8x64xf32>
    %594 = arith.negf %593 : vector<8x64xf32>
    %595 = math.exp %594 : vector<8x64xf32>
    %cst_205 = arith.constant 1.000000e+00 : f32
    %596 = vector.broadcast %cst_205 : f32 to vector<8x64xf32>
    %597 = arith.addf %596, %595 : vector<8x64xf32>
    %598 = arith.divf %596, %597 : vector<8x64xf32>
    %599 = vector.extract_strided_slice %598 {offsets = [0, 0], sizes = [8, 32], strides = [1, 1]} : vector<8x64xf32> to vector<8x32xf32>
    %600 = vector.extract_strided_slice %598 {offsets = [0, 32], sizes = [8, 32], strides = [1, 1]} : vector<8x64xf32> to vector<8x32xf32>
    %601 = vector.extract_strided_slice %590 {offsets = [0, 64], sizes = [8, 32], strides = [1, 1]} : vector<8x96xf32> to vector<8x32xf32>
    %602 = vector.extract_strided_slice %589 {offsets = [0, 64], sizes = [8, 32], strides = [1, 1]} : vector<8x96xf32> to vector<8x32xf32>
    %603 = arith.mulf %599, %602 : vector<8x32xf32>
    %604 = arith.addf %601, %603 : vector<8x32xf32>
    %605 = math.tanh %604 : vector<8x32xf32>
    %cst_206 = arith.constant 1.000000e+00 : f32
    %606 = vector.broadcast %cst_206 : f32 to vector<8x32xf32>
    %607 = arith.subf %606, %600 : vector<8x32xf32>
    %608 = arith.mulf %607, %605 : vector<8x32xf32>
    %609 = arith.mulf %600, %586 : vector<8x32xf32>
    %610 = arith.addf %608, %609 : vector<8x32xf32>
    %611 = arith.select %2, %610, %586 : vector<8x32xi1>, vector<8x32xf32>
    %c48_207 = arith.constant 48 : index
    %c0_208 = arith.constant 0 : index
    %612 = vector.load %arg6[%c48_207, %c0_208] : memref<64x32xf32, #tpu.memory_space<vmem>>, vector<8x32xf32>
    tpu.vector_store %arg6[%c48_207, %c0_208], %611 {strides = array<i32>} : memref<64x32xf32, #tpu.memory_space<vmem>>, vector<8x32xf32>,
    %cst_209 = arith.constant dense<0.000000e+00> : vector<8x96xf32>
    %613 = tpu.matmul %611, %438, %cst_209 {dimension_numbers = #tpu.dot_dimension_numbers<[1], [0], [0], [1], [0, 0, 1, 1], [], []>} : vector<8x32xf32>, vector<32x96xf32>, vector<8x96xf32> -> vector<8x96xf32>
    %614 = arith.addf %613, %442 : vector<8x96xf32>
    %c56_210 = arith.constant 56 : index
    %c0_211 = arith.constant 0 : index
    %615 = vector.load %arg8[%c56_210, %c0_211] : memref<64x96xf32, #tpu.memory_space<vmem>>, vector<8x96xf32>
    %616 = vector.extract_strided_slice %615 {offsets = [0, 0], sizes = [8, 64], strides = [1, 1]} : vector<8x96xf32> to vector<8x64xf32>
    %617 = vector.extract_strided_slice %614 {offsets = [0, 0], sizes = [8, 64], strides = [1, 1]} : vector<8x96xf32> to vector<8x64xf32>
    %618 = arith.addf %616, %617 : vector<8x64xf32>
    %619 = arith.negf %618 : vector<8x64xf32>
    %620 = math.exp %619 : vector<8x64xf32>
    %cst_212 = arith.constant 1.000000e+00 : f32
    %621 = vector.broadcast %cst_212 : f32 to vector<8x64xf32>
    %622 = arith.addf %621, %620 : vector<8x64xf32>
    %623 = arith.divf %621, %622 : vector<8x64xf32>
    %624 = vector.extract_strided_slice %623 {offsets = [0, 0], sizes = [8, 32], strides = [1, 1]} : vector<8x64xf32> to vector<8x32xf32>
    %625 = vector.extract_strided_slice %623 {offsets = [0, 32], sizes = [8, 32], strides = [1, 1]} : vector<8x64xf32> to vector<8x32xf32>
    %626 = vector.extract_strided_slice %615 {offsets = [0, 64], sizes = [8, 32], strides = [1, 1]} : vector<8x96xf32> to vector<8x32xf32>
    %627 = vector.extract_strided_slice %614 {offsets = [0, 64], sizes = [8, 32], strides = [1, 1]} : vector<8x96xf32> to vector<8x32xf32>
    %628 = arith.mulf %624, %627 : vector<8x32xf32>
    %629 = arith.addf %626, %628 : vector<8x32xf32>
    %630 = math.tanh %629 : vector<8x32xf32>
    %cst_213 = arith.constant 1.000000e+00 : f32
    %631 = vector.broadcast %cst_213 : f32 to vector<8x32xf32>
    %632 = arith.subf %631, %625 : vector<8x32xf32>
    %633 = arith.mulf %632, %630 : vector<8x32xf32>
    %634 = arith.mulf %625, %611 : vector<8x32xf32>
    %635 = arith.addf %633, %634 : vector<8x32xf32>
    %636 = arith.select %2, %635, %611 : vector<8x32xi1>, vector<8x32xf32>
    %c56_214 = arith.constant 56 : index
    %c0_215 = arith.constant 0 : index
    %637 = vector.load %arg6[%c56_214, %c0_215] : memref<64x32xf32, #tpu.memory_space<vmem>>, vector<8x32xf32>
    tpu.vector_store %arg6[%c56_214, %c0_215], %636 {strides = array<i32>} : memref<64x32xf32, #tpu.memory_space<vmem>>, vector<8x32xf32>,
    %c2_216 = arith.constant 2 : index
    %c0_217 = arith.constant 0 : index
    %c0_218 = arith.constant 0 : index
    %638 = vector.load %arg7[%c2_216, %c0_217, %c0_218] : memref<3x8x32xf32, #tpu.memory_space<vmem>>, vector<1x8x32xf32>
    %639 = vector.shape_cast %638 : vector<1x8x32xf32> to vector<8x32xf32>
    %640 = vector.shape_cast %636 : vector<8x32xf32> to vector<1x8x32xf32>
    tpu.vector_store %arg7[%c2_216, %c0_217, %c0_218], %640 {strides = array<i32>} : memref<3x8x32xf32, #tpu.memory_space<vmem>>, vector<1x8x32xf32>,
    return
  }
}

</mosaic_0001>

<llo_original>
// kernel: rnn_module_forward.1
$region0: #{rnn_module_forward.1}
  #allocation0 [shape = 'u32[]', space=smem, size = 0x4, offset = 0x4, fixed_abs, tag = 'smem constant byte address 0x4 - core index']
  #allocation1 [shape = 'u32[144,128]{1,0:T(1,128)}', space=vmem, size = 0x12000, scoped, tag = 'internal scratch']
  #allocation2 [shape = 'f32[64,96]{1,0:T(8,128)}', space=vmem, size = 0x8000, scoped, tag = 'scratch operand']
  %s0 = inlined_call_operand.vmem [shape: f32[64,8], index: 0, kind: input, shape index: {}]
  %s1 = inlined_call_operand.vmem [shape: f32[8,96], index: 1, kind: input, shape index: {}]
  %s2 = inlined_call_operand.hbm [shape: f32[2,32,96], index: 2, kind: input, shape index: {}]
  %s3 = inlined_call_operand.vmem [shape: f32[3,32,96], index: 3, kind: input, shape index: {}]
  %s4 = inlined_call_operand.vmem [shape: f32[3,1,96], index: 4, kind: input, shape index: {}]
  %s5 = inlined_call_operand.vmem [shape: f32[3,1,96], index: 5, kind: input, shape index: {}]
  %s6 = inlined_call_operand.vmem [shape: f32[64,32], index: 6, kind: output, shape index: {0}]
  %s7 = inlined_call_operand.vmem [shape: f32[3,8,32], index: 7, kind: output, shape index: {1}]
  %8 = xla_tuple %s6, %s7
  %s9 = sld [smem:[#allocation0]]
  $region46: #{rnn_module_forward.1} parent=0
    _
  %s11 = ssub.s32 1, %s9
  %s12 = scalar_select 0, %s11, %s9
  $region1: #{rnn_module_forward.1} parent=0
    #allocation3 [shape = 'u8[32768]{0}', space=vmem, size = 0x8000, scoped, tag = 'input window, operand 2, single buffered']
    #allocation4 [shape = 's32[1]{0}', space=sflag, size = 0x4, scoped, tag = 'scoped memory for rnn_module_forward.1']
    %13 = vsyncpa [#allocation4], 0
    // Predicated region
    $region2: #{rnn_module_forward.1} parent=1 // pred_check
      _
    $region3: #{rnn_module_forward.1} parent=1 // pred_check_branch
      %15 = sbr.rel (0) target = $region5
    $region4: #{rnn_module_forward.1} parent=1 // pred_region
      _
    $region5: #{rnn_module_forward.1} parent=1 // pred_fallthru
      _
    // Predicated region
    $region6: #{rnn_module_forward.1} parent=1 // pred_check
      _
    $region7: #{rnn_module_forward.1} parent=1 // pred_check_branch
      %17 = sbr.rel (0) target = $region9
    $region8: #{rnn_module_forward.1} parent=1 // pred_region
      _
    $region9: #{rnn_module_forward.1} parent=1 // pred_fallthru
      _
    // Predicated region
    $region10: #{rnn_module_forward.1} parent=1 // pred_check
      _
    $region11: #{rnn_module_forward.1} parent=1 // pred_check_branch
      %19 = sbr.rel (0) target = $region13
    $region12: #{rnn_module_forward.1} parent=1 // pred_region
      %s21 = ssub.s32 1024, 1024
      %22 = vsyncadd [#allocation4], %s21
      %s23 = sshll.u32 [#allocation3], 4
      %s24 = int_to_ptr.vmem [resolvable:$true] %s23
      %29 = dma.hbm_to_vmem [thread:$0]  %s2, 1024, %s24, [#allocation4], 128, 128, 8
    $region13: #{rnn_module_forward.1} parent=1 // pred_fallthru
      _
    // Predicated region
    $region14: #{rnn_module_forward.1} parent=1 // pred_check
      _
    $region15: #{rnn_module_forward.1} parent=1 // pred_check_branch
      %31 = sbr.rel (0) target = $region17
    $region16: #{rnn_module_forward.1} parent=1 // pred_region
      _
    $region17: #{rnn_module_forward.1} parent=1 // pred_fallthru
      _
    // Predicated region
    $region18: #{rnn_module_forward.1} parent=1 // pred_check
      _
    $region19: #{rnn_module_forward.1} parent=1 // pred_check_branch
      %33 = sbr.rel (0) target = $region21
    $region20: #{rnn_module_forward.1} parent=1 // pred_region
      _
    $region21: #{rnn_module_forward.1} parent=1 // pred_fallthru
      _
    // Predicated region
    $region22: #{rnn_module_forward.1} parent=1 // pred_check
      _
    $region23: #{rnn_module_forward.1} parent=1 // pred_check_branch
      %35 = sbr.rel (0) target = $region25
    $region24: #{rnn_module_forward.1} parent=1 // pred_region
      _
    $region25: #{rnn_module_forward.1} parent=1 // pred_fallthru
      _
    // Predicated region
    $region26: #{rnn_module_forward.1} parent=1 // pred_check
      _
    $region27: #{rnn_module_forward.1} parent=1 // pred_check_branch
      %37 = sbr.rel (0) target = $region29
    $region28: #{rnn_module_forward.1} parent=1 // pred_region
      %38 = dma.done [#allocation4], 1024
    $region29: #{rnn_module_forward.1} parent=1 // pred_fallthru
      _
    %v39 = vlaneseq
    %v40 = vshrl.u32 %v39, 7
    %vm41 = vcmp.lt.s32.totalorder %v40, 4
    %v42 = vld [vmem:[%s0] sm:$0xff]
    %v43 = vld [vmem:[%s0 + $0x8] sm:$0xff]
    %v44 = vld [vmem:[%s0 + $0x10] sm:$0xff]
    %v45 = vld [vmem:[%s0 + $0x18] sm:$0xff]
    %v46 = vld [vmem:[%s0 + $0x20] sm:$0xff]
    %v47 = vld [vmem:[%s0 + $0x28] sm:$0xff]
    %v48 = vld [vmem:[%s0 + $0x30] sm:$0xff]
    %v49 = vld [vmem:[%s0 + $0x38] sm:$0xff]
    %v50 = vld [vmem:[%s1] sm:$0xff]
    %v51 = vld [vmem:[%s4] sm:$0x1]
    %v53 = vlaneseq
    %v54 = vshrl.u32 %v53, 7
    %v55 = vsub.s32 0, %v54
    %v56 = vrot.slane %v51, %v55
    %vm58 = vcmask 64512
    %v60 = vsel %vm58, %v42, 0
    %v63 = vsel %vm58, %v43, 0
    %v66 = vsel %vm58, %v44, 0
    %v69 = vsel %vm58, %v45, 0
    %v72 = vsel %vm58, %v46, 0
    %v75 = vsel %vm58, %v47, 0
    %v78 = vsel %vm58, %v48, 0
    %v81 = vsel %vm58, %v49, 0
    %83 = vmatprep.subr.mxu0 0.0
    %84 = vmatpush1.msra.mxu0 %v50
    %85 = vmatprep.subr.mxu0 0.0
    %86 = vmatpush1.msra.mxu0 0.0
    %87 = vmatprep.subr.mxu0 0.0
    %88 = vmatpush1.msra.mxu0 0.0
    %89 = vmatprep.subr.mxu0 0.0
    %90 = vmatpush1.msra.mxu0 0.0
    %91 = vmatprep.subr.mxu0 0.0
    %92 = vmatpush1.msra.mxu0 0.0
    %93 = vmatprep.subr.mxu0 0.0
    %94 = vmatpush1.msra.mxu0 0.0
    %95 = vmatprep.subr.mxu0 0.0
    %96 = vmatpush1.msra.mxu0 0.0
    %97 = vmatprep.subr.mxu0 0.0
    %98 = vmatpush1.msra.mxu0 0.0
    %99 = vmatprep.subr.mxu0 0.0
    %100 = vmatpush1.msra.mxu0 0.0
    %101 = vmatprep.subr.mxu0 0.0
    %102 = vmatpush1.msra.mxu0 0.0
    %103 = vmatprep.subr.mxu0 0.0
    %104 = vmatpush1.msra.mxu0 0.0
    %105 = vmatprep.subr.mxu0 0.0
    %106 = vmatpush1.msra.mxu0 0.0
    %107 = vmatprep.subr.mxu0 0.0
    %108 = vmatpush1.msra.mxu0 0.0
    %109 = vmatprep.subr.mxu0 0.0
    %110 = vmatpush1.msra.mxu0 0.0
    %111 = vmatprep.subr.mxu0 0.0
    %112 = vmatpush1.msra.mxu0 0.0
    %113 = vmatprep.subr.mxu0 0.0
    %114 = vmatpush1.msra.mxu0 0.0
    %115 = vmatprep.subr.mxu0 0.0
    %116 = vmatpush1.msra.mxu0 0.0
    %117 = vmatprep.subr.mxu0 0.0
    %118 = vmatpush1.msra.mxu0 0.0
    %119 = vmatprep.subr.mxu0 0.0
    %120 = vmatpush1.msra.mxu0 0.0
    %121 = vmatprep.subr.mxu0 0.0
    %122 = vmatpush1.msra.mxu0 0.0
    %123 = vmatprep.subr.mxu0 0.0
    %124 = vmatpush1.msra.mxu0 0.0
    %125 = vmatprep.subr.mxu0 0.0
    %126 = vmatpush1.msra.mxu0 0.0
    %127 = vmatprep.subr.mxu0 0.0
    %128 = vmatpush1.msra.mxu0 0.0
    %129 = vmatprep.subr.mxu0 0.0
    %130 = vmatpush1.msra.mxu0 0.0
    %131 = vmatprep.subr.mxu0 0.0
    %132 = vmatpush1.msra.mxu0 0.0
    %133 = vmatprep.subr.mxu0 0.0
    %134 = vmatpush1.msra.mxu0 0.0
    %135 = vmatprep.subr.mxu0 0.0
    %136 = vmatpush1.msra.mxu0 0.0
    %137 = vmatprep.subr.mxu0 0.0
    %138 = vmatpush1.msra.mxu0 0.0
    %139 = vmatprep.subr.mxu0 0.0
    %140 = vmatpush1.msra.mxu0 0.0
    %141 = vmatprep.subr.mxu0 0.0
    %142 = vmatpush1.msra.mxu0 0.0
    %143 = vmatprep.subr.mxu0 0.0
    %144 = vmatpush1.msra.mxu0 0.0
    %145 = vmatprep.subr.mxu0 0.0
    %146 = vmatpush1.msra.mxu0 0.0
    %147 = vmatprep.mubr.f32.mxu0 0.0
    %148 = vmatmul.mubr.f32.gmra.mrb[0].mxu0 %v60
    %v149 = vpop.f32.mrb[0].mxu0
    %v150 = vadd.f32 %v56, %v149
    %v151 = vpop.f32.mrb[0].mxu0
    %152 = vmatprep.mubr.f32.mxu0 0.0
    %153 = vmatmul.mubr.f32.gmra.mrb[0].mxu0 %v63
    %v154 = vpop.f32.mrb[0].mxu0
    %v155 = vadd.f32 %v56, %v154
    %v156 = vpop.f32.mrb[0].mxu0
    %157 = vmatprep.mubr.f32.mxu0 0.0
    %158 = vmatmul.mubr.f32.gmra.mrb[0].mxu0 %v66
    %v159 = vpop.f32.mrb[0].mxu0
    %v160 = vadd.f32 %v56, %v159
    %v161 = vpop.f32.mrb[0].mxu0
    %162 = vmatprep.mubr.f32.mxu0 0.0
    %163 = vmatmul.mubr.f32.gmra.mrb[0].mxu0 %v69
    %v164 = vpop.f32.mrb[0].mxu0
    %v165 = vadd.f32 %v56, %v164
    %v166 = vpop.f32.mrb[0].mxu0
    %167 = vmatprep.mubr.f32.mxu0 0.0
    %168 = vmatmul.mubr.f32.gmra.mrb[0].mxu0 %v72
    %v169 = vpop.f32.mrb[0].mxu0
    %v170 = vadd.f32 %v56, %v169
    %v171 = vpop.f32.mrb[0].mxu0
    %172 = vmatprep.mubr.f32.mxu0 0.0
    %173 = vmatmul.mubr.f32.gmra.mrb[0].mxu0 %v75
    %v174 = vpop.f32.mrb[0].mxu0
    %v175 = vadd.f32 %v56, %v174
    %v176 = vpop.f32.mrb[0].mxu0
    %177 = vmatprep.mubr.f32.mxu0 0.0
    %178 = vmatmul.mubr.f32.gmra.mrb[0].mxu0 %v78
    %v179 = vpop.f32.mrb[0].mxu0
    %v180 = vadd.f32 %v56, %v179
    %v181 = vpop.f32.mrb[0].mxu0
    %182 = vmatprep.mubr.f32.mxu0 0.0
    %183 = vmatmul.mubr.f32.gmra.mrb[0].mxu0 %v81
    %v184 = vpop.f32.mrb[0].mxu0
    %v185 = vadd.f32 %v56, %v184
    %v186 = vpop.f32.mrb[0].mxu0
    %187 = vdwg.mxu0
    %vm188 = vcmask 785408
    %189 = vst.msk [vmem:[#allocation2] sm:$0xff] %vm188, %v150
    %190 = vst.msk [vmem:[#allocation2 + $0x8] sm:$0xff] %vm188, %v155
    %191 = vst.msk [vmem:[#allocation2 + $0x10] sm:$0xff] %vm188, %v160
    %192 = vst.msk [vmem:[#allocation2 + $0x18] sm:$0xff] %vm188, %v165
    %193 = vst.msk [vmem:[#allocation2 + $0x20] sm:$0xff] %vm188, %v170
    %194 = vst.msk [vmem:[#allocation2 + $0x28] sm:$0xff] %vm188, %v175
    %195 = vst.msk [vmem:[#allocation2 + $0x30] sm:$0xff] %vm188, %v180
    %196 = vst.msk [vmem:[#allocation2 + $0x38] sm:$0xff] %vm188, %v185
    %v197 = vld [vmem:[%s3] sm:$0xff]
    %v198 = vld [vmem:[%s3 + $0x8] sm:$0xff]
    %v199 = vld [vmem:[%s3 + $0x10] sm:$0xff]
    %v200 = vld [vmem:[%s3 + $0x18] sm:$0xff]
    %v201 = vld [vmem:[%s5] sm:$0x1]
    %v203 = vlaneseq
    %v204 = vshrl.u32 %v203, 7
    %v205 = vsub.s32 0, %v204
    %v206 = vrot.slane %v201, %v205
    %vm208 = vcmask 261120
    %v210 = vsel %vm208, 0.0, 0
    %212 = vmatprep.subr.mxu0 0.0
    %213 = vmatpush1.msra.mxu0 %v197
    %214 = vmatprep.subr.mxu0 0.0
    %215 = vmatpush1.msra.mxu0 %v198
    %216 = vmatprep.subr.mxu0 0.0
    %217 = vmatpush1.msra.mxu0 %v199
    %218 = vmatprep.subr.mxu0 0.0
    %219 = vmatpush1.msra.mxu0 %v200
    %220 = vmatprep.subr.mxu0 0.0
    %221 = vmatpush1.msra.mxu0 0.0
    %222 = vmatprep.subr.mxu0 0.0
    %223 = vmatpush1.msra.mxu0 0.0
    %224 = vmatprep.subr.mxu0 0.0
    %225 = vmatpush1.msra.mxu0 0.0
    %226 = vmatprep.subr.mxu0 0.0
    %227 = vmatpush1.msra.mxu0 0.0
    %228 = vmatprep.subr.mxu0 0.0
    %229 = vmatpush1.msra.mxu0 0.0
    %230 = vmatprep.subr.mxu0 0.0
    %231 = vmatpush1.msra.mxu0 0.0
    %232 = vmatprep.subr.mxu0 0.0
    %233 = vmatpush1.msra.mxu0 0.0
    %234 = vmatprep.subr.mxu0 0.0
    %235 = vmatpush1.msra.mxu0 0.0
    %236 = vmatprep.subr.mxu0 0.0
    %237 = vmatpush1.msra.mxu0 0.0
    %238 = vmatprep.subr.mxu0 0.0
    %239 = vmatpush1.msra.mxu0 0.0
    %240 = vmatprep.subr.mxu0 0.0
    %241 = vmatpush1.msra.mxu0 0.0
    %242 = vmatprep.subr.mxu0 0.0
    %243 = vmatpush1.msra.mxu0 0.0
    %244 = vmatprep.subr.mxu0 0.0
    %245 = vmatpush1.msra.mxu0 0.0
    %246 = vmatprep.subr.mxu0 0.0
    %247 = vmatpush1.msra.mxu0 0.0
    %248 = vmatprep.subr.mxu0 0.0
    %249 = vmatpush1.msra.mxu0 0.0
    %250 = vmatprep.subr.mxu0 0.0
    %251 = vmatpush1.msra.mxu0 0.0
    %252 = vmatprep.subr.mxu0 0.0
    %253 = vmatpush1.msra.mxu0 0.0
    %254 = vmatprep.subr.mxu0 0.0
    %255 = vmatpush1.msra.mxu0 0.0
    %256 = vmatprep.subr.mxu0 0.0
    %257 = vmatpush1.msra.mxu0 0.0
    %258 = vmatprep.subr.mxu0 0.0
    %259 = vmatpush1.msra.mxu0 0.0
    %260 = vmatprep.subr.mxu0 0.0
    %261 = vmatpush1.msra.mxu0 0.0
    %262 = vmatprep.subr.mxu0 0.0
    %263 = vmatpush1.msra.mxu0 0.0
    %264 = vmatprep.subr.mxu0 0.0
    %265 = vmatpush1.msra.mxu0 0.0
    %266 = vmatprep.subr.mxu0 0.0
    %267 = vmatpush1.msra.mxu0 0.0
    %268 = vmatprep.subr.mxu0 0.0
    %269 = vmatpush1.msra.mxu0 0.0
    %270 = vmatprep.subr.mxu0 0.0
    %271 = vmatpush1.msra.mxu0 0.0
    %272 = vmatprep.subr.mxu0 0.0
    %273 = vmatpush1.msra.mxu0 0.0
    %274 = vmatprep.subr.mxu0 0.0
    %275 = vmatpush1.msra.mxu0 0.0
    %276 = vmatprep.mubr.f32.mxu0 0.0
    %277 = vmatmul.mubr.f32.gmra.mrb[0].mxu0 %v210
    %v278 = vpop.f32.mrb[0].mxu0
    %v279 = vadd.f32 %v206, %v278
    %v280 = vpop.f32.mrb[0].mxu0
    %281 = vdwg.mxu0
    %v282 = vld [vmem:[#allocation2] sm:$0xff]
    %v283 = vadd.f32 %v282, %v279
    %v284 = vxor.u32 %v283, 2147483648
    %v285 = vmul.f32 %v284, 1.442695
    %v286 = vpow.pop %v285
    %v287 = vadd.f32 %v286, 1.0
    %v288 = vrcp.pop %v287
    %v289 = vmul.f32 1.0, %v288
    %291 = vrot.lane.b32.xlu0 %v279, 64
    %v292 = vpop.permute.xlu0 %291
    %v294 = vmul.f32 %v289, %v292
    %296 = vrot.lane.b32.xlu0 %v294, 64
    %v297 = vpop.permute.xlu0 %296
    %v299 = vadd.f32 %v282, %v297
    %v300 = vtanh.pop %v299
    %v301 = vsub.f32 1.0, %v289
    %303 = vrot.lane.b32.xlu0 %v300, 96
    %v304 = vpop.permute.xlu0 %303
    %v306 = vmul.f32 %v301, %v304
    %v307 = vmul.f32 %v289, 0.0
    %v308 = vadd.f32 %v306, %v307
    %310 = vrot.lane.b32.xlu0 %v308, 96
    %v311 = vpop.permute.xlu0 %310
    %313 = vst.msk [vmem:[%s6] sm:$0xff] %vm208, %v311
    %v314 = vsel %vm208, %v311, 0
    %316 = vmatprep.subr.mxu0 0.0
    %317 = vmatpush1.msra.mxu0 %v197
    %318 = vmatprep.subr.mxu0 0.0
    %319 = vmatpush1.msra.mxu0 %v198
    %320 = vmatprep.subr.mxu0 0.0
    %321 = vmatpush1.msra.mxu0 %v199
    %322 = vmatprep.subr.mxu0 0.0
    %323 = vmatpush1.msra.mxu0 %v200
    %324 = vmatprep.subr.mxu0 0.0
    %325 = vmatpush1.msra.mxu0 0.0
    %326 = vmatprep.subr.mxu0 0.0
    %327 = vmatpush1.msra.mxu0 0.0
    %328 = vmatprep.subr.mxu0 0.0
    %329 = vmatpush1.msra.mxu0 0.0
    %330 = vmatprep.subr.mxu0 0.0
    %331 = vmatpush1.msra.mxu0 0.0
    %332 = vmatprep.subr.mxu0 0.0
    %333 = vmatpush1.msra.mxu0 0.0
    %334 = vmatprep.subr.mxu0 0.0
    %335 = vmatpush1.msra.mxu0 0.0
    %336 = vmatprep.subr.mxu0 0.0
    %337 = vmatpush1.msra.mxu0 0.0
    %338 = vmatprep.subr.mxu0 0.0
    %339 = vmatpush1.msra.mxu0 0.0
    %340 = vmatprep.subr.mxu0 0.0
    %341 = vmatpush1.msra.mxu0 0.0
    %342 = vmatprep.subr.mxu0 0.0
    %343 = vmatpush1.msra.mxu0 0.0
    %344 = vmatprep.subr.mxu0 0.0
    %345 = vmatpush1.msra.mxu0 0.0
    %346 = vmatprep.subr.mxu0 0.0
    %347 = vmatpush1.msra.mxu0 0.0
    %348 = vmatprep.subr.mxu0 0.0
    %349 = vmatpush1.msra.mxu0 0.0
    %350 = vmatprep.subr.mxu0 0.0
    %351 = vmatpush1.msra.mxu0 0.0
    %352 = vmatprep.subr.mxu0 0.0
    %353 = vmatpush1.msra.mxu0 0.0
    %354 = vmatprep.subr.mxu0 0.0
    %355 = vmatpush1.msra.mxu0 0.0
    %356 = vmatprep.subr.mxu0 0.0
    %357 = vmatpush1.msra.mxu0 0.0
    %358 = vmatprep.subr.mxu0 0.0
    %359 = vmatpush1.msra.mxu0 0.0
    %360 = vmatprep.subr.mxu0 0.0
    %361 = vmatpush1.msra.mxu0 0.0
    %362 = vmatprep.subr.mxu0 0.0
    %363 = vmatpush1.msra.mxu0 0.0
    %364 = vmatprep.subr.mxu0 0.0
    %365 = vmatpush1.msra.mxu0 0.0
    %366 = vmatprep.subr.mxu0 0.0
    %367 = vmatpush1.msra.mxu0 0.0
    %368 = vmatprep.subr.mxu0 0.0
    %369 = vmatpush1.msra.mxu0 0.0
    %370 = vmatprep.subr.mxu0 0.0
    %371 = vmatpush1.msra.mxu0 0.0
    %372 = vmatprep.subr.mxu0 0.0
    %373 = vmatpush1.msra.mxu0 0.0
    %374 = vmatprep.subr.mxu0 0.0
    %375 = vmatpush1.msra.mxu0 0.0
    %376 = vmatprep.subr.mxu0 0.0
    %377 = vmatpush1.msra.mxu0 0.0
    %378 = vmatprep.subr.mxu0 0.0
    %379 = vmatpush1.msra.mxu0 0.0
    %380 = vmatprep.mubr.f32.mxu0 0.0
    %381 = vmatmul.mubr.f32.gmra.mrb[0].mxu0 %v314
    %v382 = vpop.f32.mrb[0].mxu0
    %v383 = vadd.f32 %v206, %v382
    %v384 = vpop.f32.mrb[0].mxu0
    %385 = vdwg.mxu0
    %v386 = vld [vmem:[#allocation2 + $0x8] sm:$0xff]
    %v387 = vadd.f32 %v386, %v383
    %v388 = vxor.u32 %v387, 2147483648
    %v389 = vmul.f32 %v388, 1.442695
    %v390 = vpow.pop %v389
    %v391 = vadd.f32 %v390, 1.0
    %v392 = vrcp.pop %v391
    %v393 = vmul.f32 1.0, %v392
    %395 = vrot.lane.b32.xlu0 %v383, 64
    %v396 = vpop.permute.xlu0 %395
    %v398 = vmul.f32 %v393, %v396
    %400 = vrot.lane.b32.xlu0 %v398, 64
    %v401 = vpop.permute.xlu0 %400
    %v403 = vadd.f32 %v386, %v401
    %v404 = vtanh.pop %v403
    %v405 = vsub.f32 1.0, %v393
    %407 = vrot.lane.b32.xlu0 %v404, 96
    %v408 = vpop.permute.xlu0 %407
    %v410 = vmul.f32 %v405, %v408
    %v411 = vmul.f32 %v393, %v308
    %v412 = vadd.f32 %v410, %v411
    %414 = vrot.lane.b32.xlu0 %v412, 96
    %v415 = vpop.permute.xlu0 %414
    %417 = vst.msk [vmem:[%s6 + $0x8] sm:$0xff] %vm208, %v415
    %v418 = vsel %vm208, %v415, 0
    %420 = vmatprep.subr.mxu0 0.0
    %421 = vmatpush1.msra.mxu0 %v197
    %422 = vmatprep.subr.mxu0 0.0
    %423 = vmatpush1.msra.mxu0 %v198
    %424 = vmatprep.subr.mxu0 0.0
    %425 = vmatpush1.msra.mxu0 %v199
    %426 = vmatprep.subr.mxu0 0.0
    %427 = vmatpush1.msra.mxu0 %v200
    %428 = vmatprep.subr.mxu0 0.0
    %429 = vmatpush1.msra.mxu0 0.0
    %430 = vmatprep.subr.mxu0 0.0
    %431 = vmatpush1.msra.mxu0 0.0
    %432 = vmatprep.subr.mxu0 0.0
    %433 = vmatpush1.msra.mxu0 0.0
    %434 = vmatprep.subr.mxu0 0.0
    %435 = vmatpush1.msra.mxu0 0.0
    %436 = vmatprep.subr.mxu0 0.0
    %437 = vmatpush1.msra.mxu0 0.0
    %438 = vmatprep.subr.mxu0 0.0
    %439 = vmatpush1.msra.mxu0 0.0
    %440 = vmatprep.subr.mxu0 0.0
    %441 = vmatpush1.msra.mxu0 0.0
    %442 = vmatprep.subr.mxu0 0.0
    %443 = vmatpush1.msra.mxu0 0.0
    %444 = vmatprep.subr.mxu0 0.0
    %445 = vmatpush1.msra.mxu0 0.0
    %446 = vmatprep.subr.mxu0 0.0
    %447 = vmatpush1.msra.mxu0 0.0
    %448 = vmatprep.subr.mxu0 0.0
    %449 = vmatpush1.msra.mxu0 0.0
    %450 = vmatprep.subr.mxu0 0.0
    %451 = vmatpush1.msra.mxu0 0.0
    %452 = vmatprep.subr.mxu0 0.0
    %453 = vmatpush1.msra.mxu0 0.0
    %454 = vmatprep.subr.mxu0 0.0
    %455 = vmatpush1.msra.mxu0 0.0
    %456 = vmatprep.subr.mxu0 0.0
    %457 = vmatpush1.msra.mxu0 0.0
    %458 = vmatprep.subr.mxu0 0.0
    %459 = vmatpush1.msra.mxu0 0.0
    %460 = vmatprep.subr.mxu0 0.0
    %461 = vmatpush1.msra.mxu0 0.0
    %462 = vmatprep.subr.mxu0 0.0
    %463 = vmatpush1.msra.mxu0 0.0
    %464 = vmatprep.subr.mxu0 0.0
    %465 = vmatpush1.msra.mxu0 0.0
    %466 = vmatprep.subr.mxu0 0.0
    %467 = vmatpush1.msra.mxu0 0.0
    %468 = vmatprep.subr.mxu0 0.0
    %469 = vmatpush1.msra.mxu0 0.0
    %470 = vmatprep.subr.mxu0 0.0
    %471 = vmatpush1.msra.mxu0 0.0
    %472 = vmatprep.subr.mxu0 0.0
    %473 = vmatpush1.msra.mxu0 0.0
    %474 = vmatprep.subr.mxu0 0.0
    %475 = vmatpush1.msra.mxu0 0.0
    %476 = vmatprep.subr.mxu0 0.0
    %477 = vmatpush1.msra.mxu0 0.0
    %478 = vmatprep.subr.mxu0 0.0
    %479 = vmatpush1.msra.mxu0 0.0
    %480 = vmatprep.subr.mxu0 0.0
    %481 = vmatpush1.msra.mxu0 0.0
    %482 = vmatprep.subr.mxu0 0.0
    %483 = vmatpush1.msra.mxu0 0.0
    %484 = vmatprep.mubr.f32.mxu0 0.0
    %485 = vmatmul.mubr.f32.gmra.mrb[0].mxu0 %v418
    %v486 = vpop.f32.mrb[0].mxu0
    %v487 = vadd.f32 %v206, %v486
    %v488 = vpop.f32.mrb[0].mxu0
    %489 = vdwg.mxu0
    %v490 = vld [vmem:[#allocation2 + $0x10] sm:$0xff]
    %v491 = vadd.f32 %v490, %v487
    %v492 = vxor.u32 %v491, 2147483648
    %v493 = vmul.f32 %v492, 1.442695
    %v494 = vpow.pop %v493
    %v495 = vadd.f32 %v494, 1.0
    %v496 = vrcp.pop %v495
    %v497 = vmul.f32 1.0, %v496
    %499 = vrot.lane.b32.xlu0 %v487, 64
    %v500 = vpop.permute.xlu0 %499
    %v502 = vmul.f32 %v497, %v500
    %504 = vrot.lane.b32.xlu0 %v502, 64
    %v505 = vpop.permute.xlu0 %504
    %v507 = vadd.f32 %v490, %v505
    %v508 = vtanh.pop %v507
    %v509 = vsub.f32 1.0, %v497
    %511 = vrot.lane.b32.xlu0 %v508, 96
    %v512 = vpop.permute.xlu0 %511
    %v514 = vmul.f32 %v509, %v512
    %v515 = vmul.f32 %v497, %v412
    %v516 = vadd.f32 %v514, %v515
    %518 = vrot.lane.b32.xlu0 %v516, 96
    %v519 = vpop.permute.xlu0 %518
    %521 = vst.msk [vmem:[%s6 + $0x10] sm:$0xff] %vm208, %v519
    %v522 = vsel %vm208, %v519, 0
    %524 = vmatprep.subr.mxu0 0.0
    %525 = vmatpush1.msra.mxu0 %v197
    %526 = vmatprep.subr.mxu0 0.0
    %527 = vmatpush1.msra.mxu0 %v198
    %528 = vmatprep.subr.mxu0 0.0
    %529 = vmatpush1.msra.mxu0 %v199
    %530 = vmatprep.subr.mxu0 0.0
    %531 = vmatpush1.msra.mxu0 %v200
    %532 = vmatprep.subr.mxu0 0.0
    %533 = vmatpush1.msra.mxu0 0.0
    %534 = vmatprep.subr.mxu0 0.0
    %535 = vmatpush1.msra.mxu0 0.0
    %536 = vmatprep.subr.mxu0 0.0
    %537 = vmatpush1.msra.mxu0 0.0
    %538 = vmatprep.subr.mxu0 0.0
    %539 = vmatpush1.msra.mxu0 0.0
    %540 = vmatprep.subr.mxu0 0.0
    %541 = vmatpush1.msra.mxu0 0.0
    %542 = vmatprep.subr.mxu0 0.0
    %543 = vmatpush1.msra.mxu0 0.0
    %544 = vmatprep.subr.mxu0 0.0
    %545 = vmatpush1.msra.mxu0 0.0
    %546 = vmatprep.subr.mxu0 0.0
    %547 = vmatpush1.msra.mxu0 0.0
    %548 = vmatprep.subr.mxu0 0.0
    %549 = vmatpush1.msra.mxu0 0.0
    %550 = vmatprep.subr.mxu0 0.0
    %551 = vmatpush1.msra.mxu0 0.0
    %552 = vmatprep.subr.mxu0 0.0
    %553 = vmatpush1.msra.mxu0 0.0
    %554 = vmatprep.subr.mxu0 0.0
    %555 = vmatpush1.msra.mxu0 0.0
    %556 = vmatprep.subr.mxu0 0.0
    %557 = vmatpush1.msra.mxu0 0.0
    %558 = vmatprep.subr.mxu0 0.0
    %559 = vmatpush1.msra.mxu0 0.0
    %560 = vmatprep.subr.mxu0 0.0
    %561 = vmatpush1.msra.mxu0 0.0
    %562 = vmatprep.subr.mxu0 0.0
    %563 = vmatpush1.msra.mxu0 0.0
    %564 = vmatprep.subr.mxu0 0.0
    %565 = vmatpush1.msra.mxu0 0.0
    %566 = vmatprep.subr.mxu0 0.0
    %567 = vmatpush1.msra.mxu0 0.0
    %568 = vmatprep.subr.mxu0 0.0
    %569 = vmatpush1.msra.mxu0 0.0
    %570 = vmatprep.subr.mxu0 0.0
    %571 = vmatpush1.msra.mxu0 0.0
    %572 = vmatprep.subr.mxu0 0.0
    %573 = vmatpush1.msra.mxu0 0.0
    %574 = vmatprep.subr.mxu0 0.0
    %575 = vmatpush1.msra.mxu0 0.0
    %576 = vmatprep.subr.mxu0 0.0
    %577 = vmatpush1.msra.mxu0 0.0
    %578 = vmatprep.subr.mxu0 0.0
    %579 = vmatpush1.msra.mxu0 0.0
    %580 = vmatprep.subr.mxu0 0.0
    %581 = vmatpush1.msra.mxu0 0.0
    %582 = vmatprep.subr.mxu0 0.0
    %583 = vmatpush1.msra.mxu0 0.0
    %584 = vmatprep.subr.mxu0 0.0
    %585 = vmatpush1.msra.mxu0 0.0
    %586 = vmatprep.subr.mxu0 0.0
    %587 = vmatpush1.msra.mxu0 0.0
    %588 = vmatprep.mubr.f32.mxu0 0.0
    %589 = vmatmul.mubr.f32.gmra.mrb[0].mxu0 %v522
    %v590 = vpop.f32.mrb[0].mxu0
    %v591 = vadd.f32 %v206, %v590
    %v592 = vpop.f32.mrb[0].mxu0
    %593 = vdwg.mxu0
    %v594 = vld [vmem:[#allocation2 + $0x18] sm:$0xff]
    %v595 = vadd.f32 %v594, %v591
    %v596 = vxor.u32 %v595, 2147483648
    %v597 = vmul.f32 %v596, 1.442695
    %v598 = vpow.pop %v597
    %v599 = vadd.f32 %v598, 1.0
    %v600 = vrcp.pop %v599
    %v601 = vmul.f32 1.0, %v600
    %603 = vrot.lane.b32.xlu0 %v591, 64
    %v604 = vpop.permute.xlu0 %603
    %v606 = vmul.f32 %v601, %v604
    %608 = vrot.lane.b32.xlu0 %v606, 64
    %v609 = vpop.permute.xlu0 %608
    %v611 = vadd.f32 %v594, %v609
    %v612 = vtanh.pop %v611
    %v613 = vsub.f32 1.0, %v601
    %615 = vrot.lane.b32.xlu0 %v612, 96
    %v616 = vpop.permute.xlu0 %615
    %v618 = vmul.f32 %v613, %v616
    %v619 = vmul.f32 %v601, %v516
    %v620 = vadd.f32 %v618, %v619
    %622 = vrot.lane.b32.xlu0 %v620, 96
    %v623 = vpop.permute.xlu0 %622
    %625 = vst.msk [vmem:[%s6 + $0x18] sm:$0xff] %vm208, %v623
    %v626 = vsel %vm208, %v623, 0
    %628 = vmatprep.subr.mxu0 0.0
    %629 = vmatpush1.msra.mxu0 %v197
    %630 = vmatprep.subr.mxu0 0.0
    %631 = vmatpush1.msra.mxu0 %v198
    %632 = vmatprep.subr.mxu0 0.0
    %633 = vmatpush1.msra.mxu0 %v199
    %634 = vmatprep.subr.mxu0 0.0
    %635 = vmatpush1.msra.mxu0 %v200
    %636 = vmatprep.subr.mxu0 0.0
    %637 = vmatpush1.msra.mxu0 0.0
    %638 = vmatprep.subr.mxu0 0.0
    %639 = vmatpush1.msra.mxu0 0.0
    %640 = vmatprep.subr.mxu0 0.0
    %641 = vmatpush1.msra.mxu0 0.0
    %642 = vmatprep.subr.mxu0 0.0
    %643 = vmatpush1.msra.mxu0 0.0
    %644 = vmatprep.subr.mxu0 0.0
    %645 = vmatpush1.msra.mxu0 0.0
    %646 = vmatprep.subr.mxu0 0.0
    %647 = vmatpush1.msra.mxu0 0.0
    %648 = vmatprep.subr.mxu0 0.0
    %649 = vmatpush1.msra.mxu0 0.0
    %650 = vmatprep.subr.mxu0 0.0
    %651 = vmatpush1.msra.mxu0 0.0
    %652 = vmatprep.subr.mxu0 0.0
    %653 = vmatpush1.msra.mxu0 0.0
    %654 = vmatprep.subr.mxu0 0.0
    %655 = vmatpush1.msra.mxu0 0.0
    %656 = vmatprep.subr.mxu0 0.0
    %657 = vmatpush1.msra.mxu0 0.0
    %658 = vmatprep.subr.mxu0 0.0
    %659 = vmatpush1.msra.mxu0 0.0
    %660 = vmatprep.subr.mxu0 0.0
    %661 = vmatpush1.msra.mxu0 0.0
    %662 = vmatprep.subr.mxu0 0.0
    %663 = vmatpush1.msra.mxu0 0.0
    %664 = vmatprep.subr.mxu0 0.0
    %665 = vmatpush1.msra.mxu0 0.0
    %666 = vmatprep.subr.mxu0 0.0
    %667 = vmatpush1.msra.mxu0 0.0
    %668 = vmatprep.subr.mxu0 0.0
    %669 = vmatpush1.msra.mxu0 0.0
    %670 = vmatprep.subr.mxu0 0.0
    %671 = vmatpush1.msra.mxu0 0.0
    %672 = vmatprep.subr.mxu0 0.0
    %673 = vmatpush1.msra.mxu0 0.0
    %674 = vmatprep.subr.mxu0 0.0
    %675 = vmatpush1.msra.mxu0 0.0
    %676 = vmatprep.subr.mxu0 0.0
    %677 = vmatpush1.msra.mxu0 0.0
    %678 = vmatprep.subr.mxu0 0.0
    %679 = vmatpush1.msra.mxu0 0.0
    %680 = vmatprep.subr.mxu0 0.0
    %681 = vmatpush1.msra.mxu0 0.0
    %682 = vmatprep.subr.mxu0 0.0
    %683 = vmatpush1.msra.mxu0 0.0
    %684 = vmatprep.subr.mxu0 0.0
    %685 = vmatpush1.msra.mxu0 0.0
    %686 = vmatprep.subr.mxu0 0.0
    %687 = vmatpush1.msra.mxu0 0.0
    %688 = vmatprep.subr.mxu0 0.0
    %689 = vmatpush1.msra.mxu0 0.0
    %690 = vmatprep.subr.mxu0 0.0
    %691 = vmatpush1.msra.mxu0 0.0
    %692 = vmatprep.mubr.f32.mxu0 0.0
    %693 = vmatmul.mubr.f32.gmra.mrb[0].mxu0 %v626
    %v694 = vpop.f32.mrb[0].mxu0
    %v695 = vadd.f32 %v206, %v694
    %v696 = vpop.f32.mrb[0].mxu0
    %697 = vdwg.mxu0
    %v698 = vld [vmem:[#allocation2 + $0x20] sm:$0xff]
    %v699 = vadd.f32 %v698, %v695
    %v700 = vxor.u32 %v699, 2147483648
    %v701 = vmul.f32 %v700, 1.442695
    %v702 = vpow.pop %v701
    %v703 = vadd.f32 %v702, 1.0
    %v704 = vrcp.pop %v703
    %v705 = vmul.f32 1.0, %v704
    %707 = vrot.lane.b32.xlu0 %v695, 64
    %v708 = vpop.permute.xlu0 %707
    %v710 = vmul.f32 %v705, %v708
    %712 = vrot.lane.b32.xlu0 %v710, 64
    %v713 = vpop.permute.xlu0 %712
    %v715 = vadd.f32 %v698, %v713
    %v716 = vtanh.pop %v715
    %v717 = vsub.f32 1.0, %v705
    %719 = vrot.lane.b32.xlu0 %v716, 96
    %v720 = vpop.permute.xlu0 %719
    %v722 = vmul.f32 %v717, %v720
    %v723 = vmul.f32 %v705, %v620
    %v724 = vadd.f32 %v722, %v723
    %726 = vrot.lane.b32.xlu0 %v724, 96
    %v727 = vpop.permute.xlu0 %726
    %729 = vst.msk [vmem:[%s6 + $0x20] sm:$0xff] %vm208, %v727
    %v730 = vsel %vm208, %v727, 0
    %732 = vmatprep.subr.mxu0 0.0
    %733 = vmatpush1.msra.mxu0 %v197
    %734 = vmatprep.subr.mxu0 0.0
    %735 = vmatpush1.msra.mxu0 %v198
    %736 = vmatprep.subr.mxu0 0.0
    %737 = vmatpush1.msra.mxu0 %v199
    %738 = vmatprep.subr.mxu0 0.0
    %739 = vmatpush1.msra.mxu0 %v200
    %740 = vmatprep.subr.mxu0 0.0
    %741 = vmatpush1.msra.mxu0 0.0
    %742 = vmatprep.subr.mxu0 0.0
    %743 = vmatpush1.msra.mxu0 0.0
    %744 = vmatprep.subr.mxu0 0.0
    %745 = vmatpush1.msra.mxu0 0.0
    %746 = vmatprep.subr.mxu0 0.0
    %747 = vmatpush1.msra.mxu0 0.0
    %748 = vmatprep.subr.mxu0 0.0
    %749 = vmatpush1.msra.mxu0 0.0
    %750 = vmatprep.subr.mxu0 0.0
    %751 = vmatpush1.msra.mxu0 0.0
    %752 = vmatprep.subr.mxu0 0.0
    %753 = vmatpush1.msra.mxu0 0.0
    %754 = vmatprep.subr.mxu0 0.0
    %755 = vmatpush1.msra.mxu0 0.0
    %756 = vmatprep.subr.mxu0 0.0
    %757 = vmatpush1.msra.mxu0 0.0
    %758 = vmatprep.subr.mxu0 0.0
    %759 = vmatpush1.msra.mxu0 0.0
    %760 = vmatprep.subr.mxu0 0.0
    %761 = vmatpush1.msra.mxu0 0.0
    %762 = vmatprep.subr.mxu0 0.0
    %763 = vmatpush1.msra.mxu0 0.0
    %764 = vmatprep.subr.mxu0 0.0
    %765 = vmatpush1.msra.mxu0 0.0
    %766 = vmatprep.subr.mxu0 0.0
    %767 = vmatpush1.msra.mxu0 0.0
    %768 = vmatprep.subr.mxu0 0.0
    %769 = vmatpush1.msra.mxu0 0.0
    %770 = vmatprep.subr.mxu0 0.0
    %771 = vmatpush1.msra.mxu0 0.0
    %772 = vmatprep.subr.mxu0 0.0
    %773 = vmatpush1.msra.mxu0 0.0
    %774 = vmatprep.subr.mxu0 0.0
    %775 = vmatpush1.msra.mxu0 0.0
    %776 = vmatprep.subr.mxu0 0.0
    %777 = vmatpush1.msra.mxu0 0.0
    %778 = vmatprep.subr.mxu0 0.0
    %779 = vmatpush1.msra.mxu0 0.0
    %780 = vmatprep.subr.mxu0 0.0
    %781 = vmatpush1.msra.mxu0 0.0
    %782 = vmatprep.subr.mxu0 0.0
    %783 = vmatpush1.msra.mxu0 0.0
    %784 = vmatprep.subr.mxu0 0.0
    %785 = vmatpush1.msra.mxu0 0.0
    %786 = vmatprep.subr.mxu0 0.0
    %787 = vmatpush1.msra.mxu0 0.0
    %788 = vmatprep.subr.mxu0 0.0
    %789 = vmatpush1.msra.mxu0 0.0
    %790 = vmatprep.subr.mxu0 0.0
    %791 = vmatpush1.msra.mxu0 0.0
    %792 = vmatprep.subr.mxu0 0.0
    %793 = vmatpush1.msra.mxu0 0.0
    %794 = vmatprep.subr.mxu0 0.0
    %795 = vmatpush1.msra.mxu0 0.0
    %796 = vmatprep.mubr.f32.mxu0 0.0
    %797 = vmatmul.mubr.f32.gmra.mrb[0].mxu0 %v730
    %v798 = vpop.f32.mrb[0].mxu0
    %v799 = vadd.f32 %v206, %v798
    %v800 = vpop.f32.mrb[0].mxu0
    %801 = vdwg.mxu0
    %v802 = vld [vmem:[#allocation2 + $0x28] sm:$0xff]
    %v803 = vadd.f32 %v802, %v799
    %v804 = vxor.u32 %v803, 2147483648
    %v805 = vmul.f32 %v804, 1.442695
    %v806 = vpow.pop %v805
    %v807 = vadd.f32 %v806, 1.0
    %v808 = vrcp.pop %v807
    %v809 = vmul.f32 1.0, %v808
    %811 = vrot.lane.b32.xlu0 %v799, 64
    %v812 = vpop.permute.xlu0 %811
    %v814 = vmul.f32 %v809, %v812
    %816 = vrot.lane.b32.xlu0 %v814, 64
    %v817 = vpop.permute.xlu0 %816
    %v819 = vadd.f32 %v802, %v817
    %v820 = vtanh.pop %v819
    %v821 = vsub.f32 1.0, %v809
    %823 = vrot.lane.b32.xlu0 %v820, 96
    %v824 = vpop.permute.xlu0 %823
    %v826 = vmul.f32 %v821, %v824
    %v827 = vmul.f32 %v809, %v724
    %v828 = vadd.f32 %v826, %v827
    %830 = vrot.lane.b32.xlu0 %v828, 96
    %v831 = vpop.permute.xlu0 %830
    %833 = vst.msk [vmem:[%s6 + $0x28] sm:$0xff] %vm208, %v831
    %v834 = vsel %vm208, %v831, 0
    %836 = vmatprep.subr.mxu0 0.0
    %837 = vmatpush1.msra.mxu0 %v197
    %838 = vmatprep.subr.mxu0 0.0
    %839 = vmatpush1.msra.mxu0 %v198
    %840 = vmatprep.subr.mxu0 0.0
    %841 = vmatpush1.msra.mxu0 %v199
    %842 = vmatprep.subr.mxu0 0.0
    %843 = vmatpush1.msra.mxu0 %v200
    %844 = vmatprep.subr.mxu0 0.0
    %845 = vmatpush1.msra.mxu0 0.0
    %846 = vmatprep.subr.mxu0 0.0
    %847 = vmatpush1.msra.mxu0 0.0
    %848 = vmatprep.subr.mxu0 0.0
    %849 = vmatpush1.msra.mxu0 0.0
    %850 = vmatprep.subr.mxu0 0.0
    %851 = vmatpush1.msra.mxu0 0.0
    %852 = vmatprep.subr.mxu0 0.0
    %853 = vmatpush1.msra.mxu0 0.0
    %854 = vmatprep.subr.mxu0 0.0
    %855 = vmatpush1.msra.mxu0 0.0
    %856 = vmatprep.subr.mxu0 0.0
    %857 = vmatpush1.msra.mxu0 0.0
    %858 = vmatprep.subr.mxu0 0.0
    %859 = vmatpush1.msra.mxu0 0.0
    %860 = vmatprep.subr.mxu0 0.0
    %861 = vmatpush1.msra.mxu0 0.0
    %862 = vmatprep.subr.mxu0 0.0
    %863 = vmatpush1.msra.mxu0 0.0
    %864 = vmatprep.subr.mxu0 0.0
    %865 = vmatpush1.msra.mxu0 0.0
    %866 = vmatprep.subr.mxu0 0.0
    %867 = vmatpush1.msra.mxu0 0.0
    %868 = vmatprep.subr.mxu0 0.0
    %869 = vmatpush1.msra.mxu0 0.0
    %870 = vmatprep.subr.mxu0 0.0
    %871 = vmatpush1.msra.mxu0 0.0
    %872 = vmatprep.subr.mxu0 0.0
    %873 = vmatpush1.msra.mxu0 0.0
    %874 = vmatprep.subr.mxu0 0.0
    %875 = vmatpush1.msra.mxu0 0.0
    %876 = vmatprep.subr.mxu0 0.0
    %877 = vmatpush1.msra.mxu0 0.0
    %878 = vmatprep.subr.mxu0 0.0
    %879 = vmatpush1.msra.mxu0 0.0
    %880 = vmatprep.subr.mxu0 0.0
    %881 = vmatpush1.msra.mxu0 0.0
    %882 = vmatprep.subr.mxu0 0.0
    %883 = vmatpush1.msra.mxu0 0.0
    %884 = vmatprep.subr.mxu0 0.0
    %885 = vmatpush1.msra.mxu0 0.0
    %886 = vmatprep.subr.mxu0 0.0
    %887 = vmatpush1.msra.mxu0 0.0
    %888 = vmatprep.subr.mxu0 0.0
    %889 = vmatpush1.msra.mxu0 0.0
    %890 = vmatprep.subr.mxu0 0.0
    %891 = vmatpush1.msra.mxu0 0.0
    %892 = vmatprep.subr.mxu0 0.0
    %893 = vmatpush1.msra.mxu0 0.0
    %894 = vmatprep.subr.mxu0 0.0
    %895 = vmatpush1.msra.mxu0 0.0
    %896 = vmatprep.subr.mxu0 0.0
    %897 = vmatpush1.msra.mxu0 0.0
    %898 = vmatprep.subr.mxu0 0.0
    %899 = vmatpush1.msra.mxu0 0.0
    %900 = vmatprep.mubr.f32.mxu0 0.0
    %901 = vmatmul.mubr.f32.gmra.mrb[0].mxu0 %v834
    %v902 = vpop.f32.mrb[0].mxu0
    %v903 = vadd.f32 %v206, %v902
    %v904 = vpop.f32.mrb[0].mxu0
    %905 = vdwg.mxu0
    %v906 = vld [vmem:[#allocation2 + $0x30] sm:$0xff]
    %v907 = vadd.f32 %v906, %v903
    %v908 = vxor.u32 %v907, 2147483648
    %v909 = vmul.f32 %v908, 1.442695
    %v910 = vpow.pop %v909
    %v911 = vadd.f32 %v910, 1.0
    %v912 = vrcp.pop %v911
    %v913 = vmul.f32 1.0, %v912
    %915 = vrot.lane.b32.xlu0 %v903, 64
    %v916 = vpop.permute.xlu0 %915
    %v918 = vmul.f32 %v913, %v916
    %920 = vrot.lane.b32.xlu0 %v918, 64
    %v921 = vpop.permute.xlu0 %920
    %v923 = vadd.f32 %v906, %v921
    %v924 = vtanh.pop %v923
    %v925 = vsub.f32 1.0, %v913
    %927 = vrot.lane.b32.xlu0 %v924, 96
    %v928 = vpop.permute.xlu0 %927
    %v930 = vmul.f32 %v925, %v928
    %v931 = vmul.f32 %v913, %v828
    %v932 = vadd.f32 %v930, %v931
    %v933 = vsel %vm41, %v932, %v828
    %935 = vrot.lane.b32.xlu0 %v933, 96
    %v936 = vpop.permute.xlu0 %935
    %938 = vst.msk [vmem:[%s6 + $0x30] sm:$0xff] %vm208, %v936
    %v939 = vsel %vm208, %v936, 0
    %941 = vmatprep.subr.mxu0 0.0
    %942 = vmatpush1.msra.mxu0 %v197
    %943 = vmatprep.subr.mxu0 0.0
    %944 = vmatpush1.msra.mxu0 %v198
    %945 = vmatprep.subr.mxu0 0.0
    %946 = vmatpush1.msra.mxu0 %v199
    %947 = vmatprep.subr.mxu0 0.0
    %948 = vmatpush1.msra.mxu0 %v200
    %949 = vmatprep.subr.mxu0 0.0
    %950 = vmatpush1.msra.mxu0 0.0
    %951 = vmatprep.subr.mxu0 0.0
    %952 = vmatpush1.msra.mxu0 0.0
    %953 = vmatprep.subr.mxu0 0.0
    %954 = vmatpush1.msra.mxu0 0.0
    %955 = vmatprep.subr.mxu0 0.0
    %956 = vmatpush1.msra.mxu0 0.0
    %957 = vmatprep.subr.mxu0 0.0
    %958 = vmatpush1.msra.mxu0 0.0
    %959 = vmatprep.subr.mxu0 0.0
    %960 = vmatpush1.msra.mxu0 0.0
    %961 = vmatprep.subr.mxu0 0.0
    %962 = vmatpush1.msra.mxu0 0.0
    %963 = vmatprep.subr.mxu0 0.0
    %964 = vmatpush1.msra.mxu0 0.0
    %965 = vmatprep.subr.mxu0 0.0
    %966 = vmatpush1.msra.mxu0 0.0
    %967 = vmatprep.subr.mxu0 0.0
    %968 = vmatpush1.msra.mxu0 0.0
    %969 = vmatprep.subr.mxu0 0.0
    %970 = vmatpush1.msra.mxu0 0.0
    %971 = vmatprep.subr.mxu0 0.0
    %972 = vmatpush1.msra.mxu0 0.0
    %973 = vmatprep.subr.mxu0 0.0
    %974 = vmatpush1.msra.mxu0 0.0
    %975 = vmatprep.subr.mxu0 0.0
    %976 = vmatpush1.msra.mxu0 0.0
    %977 = vmatprep.subr.mxu0 0.0
    %978 = vmatpush1.msra.mxu0 0.0
    %979 = vmatprep.subr.mxu0 0.0
    %980 = vmatpush1.msra.mxu0 0.0
    %981 = vmatprep.subr.mxu0 0.0
    %982 = vmatpush1.msra.mxu0 0.0
    %983 = vmatprep.subr.mxu0 0.0
    %984 = vmatpush1.msra.mxu0 0.0
    %985 = vmatprep.subr.mxu0 0.0
    %986 = vmatpush1.msra.mxu0 0.0
    %987 = vmatprep.subr.mxu0 0.0
    %988 = vmatpush1.msra.mxu0 0.0
    %989 = vmatprep.subr.mxu0 0.0
    %990 = vmatpush1.msra.mxu0 0.0
    %991 = vmatprep.subr.mxu0 0.0
    %992 = vmatpush1.msra.mxu0 0.0
    %993 = vmatprep.subr.mxu0 0.0
    %994 = vmatpush1.msra.mxu0 0.0
    %995 = vmatprep.subr.mxu0 0.0
    %996 = vmatpush1.msra.mxu0 0.0
    %997 = vmatprep.subr.mxu0 0.0
    %998 = vmatpush1.msra.mxu0 0.0
    %999 = vmatprep.subr.mxu0 0.0
    %1000 = vmatpush1.msra.mxu0 0.0
    %1001 = vmatprep.subr.mxu0 0.0
    %1002 = vmatpush1.msra.mxu0 0.0
    %1003 = vmatprep.subr.mxu0 0.0
    %1004 = vmatpush1.msra.mxu0 0.0
    %1005 = vmatprep.mubr.f32.mxu0 0.0
    %1006 = vmatmul.mubr.f32.gmra.mrb[0].mxu0 %v939
    %v1007 = vpop.f32.mrb[0].mxu0
    %v1008 = vadd.f32 %v206, %v1007
    %v1009 = vpop.f32.mrb[0].mxu0
    %1010 = vdwg.mxu0
    %v1011 = vld [vmem:[#allocation2 + $0x38] sm:$0xff]
    %v1012 = vadd.f32 %v1011, %v1008
    %v1013 = vxor.u32 %v1012, 2147483648
    %v1014 = vmul.f32 %v1013, 1.442695
    %v1015 = vpow.pop %v1014
    %v1016 = vadd.f32 %v1015, 1.0
    %v1017 = vrcp.pop %v1016
    %v1018 = vmul.f32 1.0, %v1017
    %1020 = vrot.lane.b32.xlu0 %v1008, 64
    %v1021 = vpop.permute.xlu0 %1020
    %v1023 = vmul.f32 %v1018, %v1021
    %1025 = vrot.lane.b32.xlu0 %v1023, 64
    %v1026 = vpop.permute.xlu0 %1025
    %v1028 = vadd.f32 %v1011, %v1026
    %v1029 = vtanh.pop %v1028
    %v1030 = vsub.f32 1.0, %v1018
    %1032 = vrot.lane.b32.xlu0 %v1029, 96
    %v1033 = vpop.permute.xlu0 %1032
    %v1035 = vmul.f32 %v1030, %v1033
    %v1036 = vmul.f32 %v1018, %v933
    %v1037 = vadd.f32 %v1035, %v1036
    %v1038 = vsel %vm41, %v1037, %v828
    %1040 = vrot.lane.b32.xlu0 %v1038, 96
    %v1041 = vpop.permute.xlu0 %1040
    %1043 = vst.msk [vmem:[%s6 + $0x38] sm:$0xff] %vm208, %v1041
    %1044 = vst.msk [vmem:[%s7] sm:$0xff] %vm208, %v1041
    %v1045 = vld [vmem:[%s6] sm:$0xff]
    %v1046 = vld [vmem:[%s6 + $0x8] sm:$0xff]
    %v1047 = vld [vmem:[%s6 + $0x10] sm:$0xff]
    %v1048 = vld [vmem:[%s6 + $0x18] sm:$0xff]
    %v1049 = vld [vmem:[%s6 + $0x20] sm:$0xff]
    %v1050 = vld [vmem:[%s6 + $0x28] sm:$0xff]
    %v1051 = vld [vmem:[%s6 + $0x30] sm:$0xff]
    %v1052 = vld [vmem:[%s6 + $0x38] sm:$0xff]
    %v1053 = vld [vmem:[#allocation3] sm:$0xff]
    %v1054 = vld [vmem:[#allocation3 + $0x8] sm:$0xff]
    %v1055 = vld [vmem:[#allocation3 + $0x10] sm:$0xff]
    %v1056 = vld [vmem:[#allocation3 + $0x18] sm:$0xff]
    %s1057 = scalar_lea.vmem %s4, 1
    %v1058 = vld [vmem:[%s1057] sm:$0x1]
    %v1060 = vlaneseq
    %v1061 = vshrl.u32 %v1060, 7
    %v1062 = vsub.s32 0, %v1061
    %v1063 = vrot.slane %v1058, %v1062
    %v1066 = vsel %vm208, %v1045, 0
    %v1069 = vsel %vm208, %v1046, 0
    %v1072 = vsel %vm208, %v1047, 0
    %v1075 = vsel %vm208, %v1048, 0
    %v1078 = vsel %vm208, %v1049, 0
    %v1081 = vsel %vm208, %v1050, 0
    %v1084 = vsel %vm208, %v1051, 0
    %v1087 = vsel %vm208, %v1052, 0
    %1089 = vmatprep.subr.mxu0 0.0
    %1090 = vmatpush1.msra.mxu0 %v1053
    %1091 = vmatprep.subr.mxu0 0.0
    %1092 = vmatpush1.msra.mxu0 %v1054
    %1093 = vmatprep.subr.mxu0 0.0
    %1094 = vmatpush1.msra.mxu0 %v1055
    %1095 = vmatprep.subr.mxu0 0.0
    %1096 = vmatpush1.msra.mxu0 %v1056
    %1097 = vmatprep.subr.mxu0 0.0
    %1098 = vmatpush1.msra.mxu0 0.0
    %1099 = vmatprep.subr.mxu0 0.0
    %1100 = vmatpush1.msra.mxu0 0.0
    %1101 = vmatprep.subr.mxu0 0.0
    %1102 = vmatpush1.msra.mxu0 0.0
    %1103 = vmatprep.subr.mxu0 0.0
    %1104 = vmatpush1.msra.mxu0 0.0
    %1105 = vmatprep.subr.mxu0 0.0
    %1106 = vmatpush1.msra.mxu0 0.0
    %1107 = vmatprep.subr.mxu0 0.0
    %1108 = vmatpush1.msra.mxu0 0.0
    %1109 = vmatprep.subr.mxu0 0.0
    %1110 = vmatpush1.msra.mxu0 0.0
    %1111 = vmatprep.subr.mxu0 0.0
    %1112 = vmatpush1.msra.mxu0 0.0
    %1113 = vmatprep.subr.mxu0 0.0
    %1114 = vmatpush1.msra.mxu0 0.0
    %1115 = vmatprep.subr.mxu0 0.0
    %1116 = vmatpush1.msra.mxu0 0.0
    %1117 = vmatprep.subr.mxu0 0.0
    %1118 = vmatpush1.msra.mxu0 0.0
    %1119 = vmatprep.subr.mxu0 0.0
    %1120 = vmatpush1.msra.mxu0 0.0
    %1121 = vmatprep.subr.mxu0 0.0
    %1122 = vmatpush1.msra.mxu0 0.0
    %1123 = vmatprep.subr.mxu0 0.0
    %1124 = vmatpush1.msra.mxu0 0.0
    %1125 = vmatprep.subr.mxu0 0.0
    %1126 = vmatpush1.msra.mxu0 0.0
    %1127 = vmatprep.subr.mxu0 0.0
    %1128 = vmatpush1.msra.mxu0 0.0
    %1129 = vmatprep.subr.mxu0 0.0
    %1130 = vmatpush1.msra.mxu0 0.0
    %1131 = vmatprep.subr.mxu0 0.0
    %1132 = vmatpush1.msra.mxu0 0.0
    %1133 = vmatprep.subr.mxu0 0.0
    %1134 = vmatpush1.msra.mxu0 0.0
    %1135 = vmatprep.subr.mxu0 0.0
    %1136 = vmatpush1.msra.mxu0 0.0
    %1137 = vmatprep.subr.mxu0 0.0
    %1138 = vmatpush1.msra.mxu0 0.0
    %1139 = vmatprep.subr.mxu0 0.0
    %1140 = vmatpush1.msra.mxu0 0.0
    %1141 = vmatprep.subr.mxu0 0.0
    %1142 = vmatpush1.msra.mxu0 0.0
    %1143 = vmatprep.subr.mxu0 0.0
    %1144 = vmatpush1.msra.mxu0 0.0
    %1145 = vmatprep.subr.mxu0 0.0
    %1146 = vmatpush1.msra.mxu0 0.0
    %1147 = vmatprep.subr.mxu0 0.0
    %1148 = vmatpush1.msra.mxu0 0.0
    %1149 = vmatprep.subr.mxu0 0.0
    %1150 = vmatpush1.msra.mxu0 0.0
    %1151 = vmatprep.subr.mxu0 0.0
    %1152 = vmatpush1.msra.mxu0 0.0
    %1153 = vmatprep.mubr.f32.mxu0 0.0
    %1154 = vmatmul.mubr.f32.gmra.mrb[0].mxu0 %v1066
    %v1155 = vpop.f32.mrb[0].mxu0
    %v1156 = vadd.f32 %v1063, %v1155
    %v1157 = vpop.f32.mrb[0].mxu0
    %1158 = vmatprep.mubr.f32.mxu0 0.0
    %1159 = vmatmul.mubr.f32.gmra.mrb[0].mxu0 %v1069
    %v1160 = vpop.f32.mrb[0].mxu0
    %v1161 = vadd.f32 %v1063, %v1160
    %v1162 = vpop.f32.mrb[0].mxu0
    %1163 = vmatprep.mubr.f32.mxu0 0.0
    %1164 = vmatmul.mubr.f32.gmra.mrb[0].mxu0 %v1072
    %v1165 = vpop.f32.mrb[0].mxu0
    %v1166 = vadd.f32 %v1063, %v1165
    %v1167 = vpop.f32.mrb[0].mxu0
    %1168 = vmatprep.mubr.f32.mxu0 0.0
    %1169 = vmatmul.mubr.f32.gmra.mrb[0].mxu0 %v1075
    %v1170 = vpop.f32.mrb[0].mxu0
    %v1171 = vadd.f32 %v1063, %v1170
    %v1172 = vpop.f32.mrb[0].mxu0
    %1173 = vmatprep.mubr.f32.mxu0 0.0
    %1174 = vmatmul.mubr.f32.gmra.mrb[0].mxu0 %v1078
    %v1175 = vpop.f32.mrb[0].mxu0
    %v1176 = vadd.f32 %v1063, %v1175
    %v1177 = vpop.f32.mrb[0].mxu0
    %1178 = vmatprep.mubr.f32.mxu0 0.0
    %1179 = vmatmul.mubr.f32.gmra.mrb[0].mxu0 %v1081
    %v1180 = vpop.f32.mrb[0].mxu0
    %v1181 = vadd.f32 %v1063, %v1180
    %v1182 = vpop.f32.mrb[0].mxu0
    %1183 = vmatprep.mubr.f32.mxu0 0.0
    %1184 = vmatmul.mubr.f32.gmra.mrb[0].mxu0 %v1084
    %v1185 = vpop.f32.mrb[0].mxu0
    %v1186 = vadd.f32 %v1063, %v1185
    %v1187 = vpop.f32.mrb[0].mxu0
    %1188 = vmatprep.mubr.f32.mxu0 0.0
    %1189 = vmatmul.mubr.f32.gmra.mrb[0].mxu0 %v1087
    %v1190 = vpop.f32.mrb[0].mxu0
    %v1191 = vadd.f32 %v1063, %v1190
    %v1192 = vpop.f32.mrb[0].mxu0
    %1193 = vdwg.mxu0
    %1194 = vst.msk [vmem:[#allocation2] sm:$0xff] %vm188, %v1156
    %1195 = vst.msk [vmem:[#allocation2 + $0x8] sm:$0xff] %vm188, %v1161
    %1196 = vst.msk [vmem:[#allocation2 + $0x10] sm:$0xff] %vm188, %v1166
    %1197 = vst.msk [vmem:[#allocation2 + $0x18] sm:$0xff] %vm188, %v1171
    %1198 = vst.msk [vmem:[#allocation2 + $0x20] sm:$0xff] %vm188, %v1176
    %1199 = vst.msk [vmem:[#allocation2 + $0x28] sm:$0xff] %vm188, %v1181
    %1200 = vst.msk [vmem:[#allocation2 + $0x30] sm:$0xff] %vm188, %v1186
    %1201 = vst.msk [vmem:[#allocation2 + $0x38] sm:$0xff] %vm188, %v1191
    %s1202 = scalar_lea.vmem %s3, 32
    %v1203 = vld [vmem:[%s1202] sm:$0xff]
    %v1204 = vld [vmem:[%s1202 + $0x8] sm:$0xff]
    %v1205 = vld [vmem:[%s1202 + $0x10] sm:$0xff]
    %v1206 = vld [vmem:[%s1202 + $0x18] sm:$0xff]
    %s1207 = scalar_lea.vmem %s5, 1
    %v1208 = vld [vmem:[%s1207] sm:$0x1]
    %v1210 = vlaneseq
    %v1211 = vshrl.u32 %v1210, 7
    %v1212 = vsub.s32 0, %v1211
    %v1213 = vrot.slane %v1208, %v1212
    %1215 = vmatprep.subr.mxu0 0.0
    %1216 = vmatpush1.msra.mxu0 %v1203
    %1217 = vmatprep.subr.mxu0 0.0
    %1218 = vmatpush1.msra.mxu0 %v1204
    %1219 = vmatprep.subr.mxu0 0.0
    %1220 = vmatpush1.msra.mxu0 %v1205
    %1221 = vmatprep.subr.mxu0 0.0
    %1222 = vmatpush1.msra.mxu0 %v1206
    %1223 = vmatprep.subr.mxu0 0.0
    %1224 = vmatpush1.msra.mxu0 0.0
    %1225 = vmatprep.subr.mxu0 0.0
    %1226 = vmatpush1.msra.mxu0 0.0
    %1227 = vmatprep.subr.mxu0 0.0
    %1228 = vmatpush1.msra.mxu0 0.0
    %1229 = vmatprep.subr.mxu0 0.0
    %1230 = vmatpush1.msra.mxu0 0.0
    %1231 = vmatprep.subr.mxu0 0.0
    %1232 = vmatpush1.msra.mxu0 0.0
    %1233 = vmatprep.subr.mxu0 0.0
    %1234 = vmatpush1.msra.mxu0 0.0
    %1235 = vmatprep.subr.mxu0 0.0
    %1236 = vmatpush1.msra.mxu0 0.0
    %1237 = vmatprep.subr.mxu0 0.0
    %1238 = vmatpush1.msra.mxu0 0.0
    %1239 = vmatprep.subr.mxu0 0.0
    %1240 = vmatpush1.msra.mxu0 0.0
    %1241 = vmatprep.subr.mxu0 0.0
    %1242 = vmatpush1.msra.mxu0 0.0
    %1243 = vmatprep.subr.mxu0 0.0
    %1244 = vmatpush1.msra.mxu0 0.0
    %1245 = vmatprep.subr.mxu0 0.0
    %1246 = vmatpush1.msra.mxu0 0.0
    %1247 = vmatprep.subr.mxu0 0.0
    %1248 = vmatpush1.msra.mxu0 0.0
    %1249 = vmatprep.subr.mxu0 0.0
    %1250 = vmatpush1.msra.mxu0 0.0
    %1251 = vmatprep.subr.mxu0 0.0
    %1252 = vmatpush1.msra.mxu0 0.0
    %1253 = vmatprep.subr.mxu0 0.0
    %1254 = vmatpush1.msra.mxu0 0.0
    %1255 = vmatprep.subr.mxu0 0.0
    %1256 = vmatpush1.msra.mxu0 0.0
    %1257 = vmatprep.subr.mxu0 0.0
    %1258 = vmatpush1.msra.mxu0 0.0
    %1259 = vmatprep.subr.mxu0 0.0
    %1260 = vmatpush1.msra.mxu0 0.0
    %1261 = vmatprep.subr.mxu0 0.0
    %1262 = vmatpush1.msra.mxu0 0.0
    %1263 = vmatprep.subr.mxu0 0.0
    %1264 = vmatpush1.msra.mxu0 0.0
    %1265 = vmatprep.subr.mxu0 0.0
    %1266 = vmatpush1.msra.mxu0 0.0
    %1267 = vmatprep.subr.mxu0 0.0
    %1268 = vmatpush1.msra.mxu0 0.0
    %1269 = vmatprep.subr.mxu0 0.0
    %1270 = vmatpush1.msra.mxu0 0.0
    %1271 = vmatprep.subr.mxu0 0.0
    %1272 = vmatpush1.msra.mxu0 0.0
    %1273 = vmatprep.subr.mxu0 0.0
    %1274 = vmatpush1.msra.mxu0 0.0
    %1275 = vmatprep.subr.mxu0 0.0
    %1276 = vmatpush1.msra.mxu0 0.0
    %1277 = vmatprep.subr.mxu0 0.0
    %1278 = vmatpush1.msra.mxu0 0.0
    %1279 = vmatprep.mubr.f32.mxu0 0.0
    %1280 = vmatmul.mubr.f32.gmra.mrb[0].mxu0 %v210
    %v1281 = vpop.f32.mrb[0].mxu0
    %v1282 = vadd.f32 %v1213, %v1281
    %v1283 = vpop.f32.mrb[0].mxu0
    %1284 = vdwg.mxu0
    %v1285 = vld [vmem:[#allocation2] sm:$0xff]
    %v1286 = vadd.f32 %v1285, %v1282
    %v1287 = vxor.u32 %v1286, 2147483648
    %v1288 = vmul.f32 %v1287, 1.442695
    %v1289 = vpow.pop %v1288
    %v1290 = vadd.f32 %v1289, 1.0
    %v1291 = vrcp.pop %v1290
    %v1292 = vmul.f32 1.0, %v1291
    %1294 = vrot.lane.b32.xlu0 %v1282, 64
    %v1295 = vpop.permute.xlu0 %1294
    %v1297 = vmul.f32 %v1292, %v1295
    %1299 = vrot.lane.b32.xlu0 %v1297, 64
    %v1300 = vpop.permute.xlu0 %1299
    %v1302 = vadd.f32 %v1285, %v1300
    %v1303 = vtanh.pop %v1302
    %v1304 = vsub.f32 1.0, %v1292
    %1306 = vrot.lane.b32.xlu0 %v1303, 96
    %v1307 = vpop.permute.xlu0 %1306
    %v1309 = vmul.f32 %v1304, %v1307
    %v1310 = vmul.f32 %v1292, 0.0
    %v1311 = vadd.f32 %v1309, %v1310
    %1313 = vrot.lane.b32.xlu0 %v1311, 96
    %v1314 = vpop.permute.xlu0 %1313
    %1316 = vst.msk [vmem:[%s6] sm:$0xff] %vm208, %v1314
    %v1317 = vsel %vm208, %v1314, 0
    %1319 = vmatprep.subr.mxu0 0.0
    %1320 = vmatpush1.msra.mxu0 %v1203
    %1321 = vmatprep.subr.mxu0 0.0
    %1322 = vmatpush1.msra.mxu0 %v1204
    %1323 = vmatprep.subr.mxu0 0.0
    %1324 = vmatpush1.msra.mxu0 %v1205
    %1325 = vmatprep.subr.mxu0 0.0
    %1326 = vmatpush1.msra.mxu0 %v1206
    %1327 = vmatprep.subr.mxu0 0.0
    %1328 = vmatpush1.msra.mxu0 0.0
    %1329 = vmatprep.subr.mxu0 0.0
    %1330 = vmatpush1.msra.mxu0 0.0
    %1331 = vmatprep.subr.mxu0 0.0
    %1332 = vmatpush1.msra.mxu0 0.0
    %1333 = vmatprep.subr.mxu0 0.0
    %1334 = vmatpush1.msra.mxu0 0.0
    %1335 = vmatprep.subr.mxu0 0.0
    %1336 = vmatpush1.msra.mxu0 0.0
    %1337 = vmatprep.subr.mxu0 0.0
    %1338 = vmatpush1.msra.mxu0 0.0
    %1339 = vmatprep.subr.mxu0 0.0
    %1340 = vmatpush1.msra.mxu0 0.0
    %1341 = vmatprep.subr.mxu0 0.0
    %1342 = vmatpush1.msra.mxu0 0.0
    %1343 = vmatprep.subr.mxu0 0.0
    %1344 = vmatpush1.msra.mxu0 0.0
    %1345 = vmatprep.subr.mxu0 0.0
    %1346 = vmatpush1.msra.mxu0 0.0
    %1347 = vmatprep.subr.mxu0 0.0
    %1348 = vmatpush1.msra.mxu0 0.0
    %1349 = vmatprep.subr.mxu0 0.0
    %1350 = vmatpush1.msra.mxu0 0.0
    %1351 = vmatprep.subr.mxu0 0.0
    %1352 = vmatpush1.msra.mxu0 0.0
    %1353 = vmatprep.subr.mxu0 0.0
    %1354 = vmatpush1.msra.mxu0 0.0
    %1355 = vmatprep.subr.mxu0 0.0
    %1356 = vmatpush1.msra.mxu0 0.0
    %1357 = vmatprep.subr.mxu0 0.0
    %1358 = vmatpush1.msra.mxu0 0.0
    %1359 = vmatprep.subr.mxu0 0.0
    %1360 = vmatpush1.msra.mxu0 0.0
    %1361 = vmatprep.subr.mxu0 0.0
    %1362 = vmatpush1.msra.mxu0 0.0
    %1363 = vmatprep.subr.mxu0 0.0
    %1364 = vmatpush1.msra.mxu0 0.0
    %1365 = vmatprep.subr.mxu0 0.0
    %1366 = vmatpush1.msra.mxu0 0.0
    %1367 = vmatprep.subr.mxu0 0.0
    %1368 = vmatpush1.msra.mxu0 0.0
    %1369 = vmatprep.subr.mxu0 0.0
    %1370 = vmatpush1.msra.mxu0 0.0
    %1371 = vmatprep.subr.mxu0 0.0
    %1372 = vmatpush1.msra.mxu0 0.0
    %1373 = vmatprep.subr.mxu0 0.0
    %1374 = vmatpush1.msra.mxu0 0.0
    %1375 = vmatprep.subr.mxu0 0.0
    %1376 = vmatpush1.msra.mxu0 0.0
    %1377 = vmatprep.subr.mxu0 0.0
    %1378 = vmatpush1.msra.mxu0 0.0
    %1379 = vmatprep.subr.mxu0 0.0
    %1380 = vmatpush1.msra.mxu0 0.0
    %1381 = vmatprep.subr.mxu0 0.0
    %1382 = vmatpush1.msra.mxu0 0.0
    %1383 = vmatprep.mubr.f32.mxu0 0.0
    %1384 = vmatmul.mubr.f32.gmra.mrb[0].mxu0 %v1317
    %v1385 = vpop.f32.mrb[0].mxu0
    %v1386 = vadd.f32 %v1213, %v1385
    %v1387 = vpop.f32.mrb[0].mxu0
    %1388 = vdwg.mxu0
    %v1389 = vld [vmem:[#allocation2 + $0x8] sm:$0xff]
    %v1390 = vadd.f32 %v1389, %v1386
    %v1391 = vxor.u32 %v1390, 2147483648
    %v1392 = vmul.f32 %v1391, 1.442695
    %v1393 = vpow.pop %v1392
    %v1394 = vadd.f32 %v1393, 1.0
    %v1395 = vrcp.pop %v1394
    %v1396 = vmul.f32 1.0, %v1395
    %1398 = vrot.lane.b32.xlu0 %v1386, 64
    %v1399 = vpop.permute.xlu0 %1398
    %v1401 = vmul.f32 %v1396, %v1399
    %1403 = vrot.lane.b32.xlu0 %v1401, 64
    %v1404 = vpop.permute.xlu0 %1403
    %v1406 = vadd.f32 %v1389, %v1404
    %v1407 = vtanh.pop %v1406
    %v1408 = vsub.f32 1.0, %v1396
    %1410 = vrot.lane.b32.xlu0 %v1407, 96
    %v1411 = vpop.permute.xlu0 %1410
    %v1413 = vmul.f32 %v1408, %v1411
    %v1414 = vmul.f32 %v1396, %v1311
    %v1415 = vadd.f32 %v1413, %v1414
    %1417 = vrot.lane.b32.xlu0 %v1415, 96
    %v1418 = vpop.permute.xlu0 %1417
    %1420 = vst.msk [vmem:[%s6 + $0x8] sm:$0xff] %vm208, %v1418
    %v1421 = vsel %vm208, %v1418, 0
    %1423 = vmatprep.subr.mxu0 0.0
    %1424 = vmatpush1.msra.mxu0 %v1203
    %1425 = vmatprep.subr.mxu0 0.0
    %1426 = vmatpush1.msra.mxu0 %v1204
    %1427 = vmatprep.subr.mxu0 0.0
    %1428 = vmatpush1.msra.mxu0 %v1205
    %1429 = vmatprep.subr.mxu0 0.0
    %1430 = vmatpush1.msra.mxu0 %v1206
    %1431 = vmatprep.subr.mxu0 0.0
    %1432 = vmatpush1.msra.mxu0 0.0
    %1433 = vmatprep.subr.mxu0 0.0
    %1434 = vmatpush1.msra.mxu0 0.0
    %1435 = vmatprep.subr.mxu0 0.0
    %1436 = vmatpush1.msra.mxu0 0.0
    %1437 = vmatprep.subr.mxu0 0.0
    %1438 = vmatpush1.msra.mxu0 0.0
    %1439 = vmatprep.subr.mxu0 0.0
    %1440 = vmatpush1.msra.mxu0 0.0
    %1441 = vmatprep.subr.mxu0 0.0
    %1442 = vmatpush1.msra.mxu0 0.0
    %1443 = vmatprep.subr.mxu0 0.0
    %1444 = vmatpush1.msra.mxu0 0.0
    %1445 = vmatprep.subr.mxu0 0.0
    %1446 = vmatpush1.msra.mxu0 0.0
    %1447 = vmatprep.subr.mxu0 0.0
    %1448 = vmatpush1.msra.mxu0 0.0
    %1449 = vmatprep.subr.mxu0 0.0
    %1450 = vmatpush1.msra.mxu0 0.0
    %1451 = vmatprep.subr.mxu0 0.0
    %1452 = vmatpush1.msra.mxu0 0.0
    %1453 = vmatprep.subr.mxu0 0.0
    %1454 = vmatpush1.msra.mxu0 0.0
    %1455 = vmatprep.subr.mxu0 0.0
    %1456 = vmatpush1.msra.mxu0 0.0
    %1457 = vmatprep.subr.mxu0 0.0
    %1458 = vmatpush1.msra.mxu0 0.0
    %1459 = vmatprep.subr.mxu0 0.0
    %1460 = vmatpush1.msra.mxu0 0.0
    %1461 = vmatprep.subr.mxu0 0.0
    %1462 = vmatpush1.msra.mxu0 0.0
    %1463 = vmatprep.subr.mxu0 0.0
    %1464 = vmatpush1.msra.mxu0 0.0
    %1465 = vmatprep.subr.mxu0 0.0
    %1466 = vmatpush1.msra.mxu0 0.0
    %1467 = vmatprep.subr.mxu0 0.0
    %1468 = vmatpush1.msra.mxu0 0.0
    %1469 = vmatprep.subr.mxu0 0.0
    %1470 = vmatpush1.msra.mxu0 0.0
    %1471 = vmatprep.subr.mxu0 0.0
    %1472 = vmatpush1.msra.mxu0 0.0
    %1473 = vmatprep.subr.mxu0 0.0
    %1474 = vmatpush1.msra.mxu0 0.0
    %1475 = vmatprep.subr.mxu0 0.0
    %1476 = vmatpush1.msra.mxu0 0.0
    %1477 = vmatprep.subr.mxu0 0.0
    %1478 = vmatpush1.msra.mxu0 0.0
    %1479 = vmatprep.subr.mxu0 0.0
    %1480 = vmatpush1.msra.mxu0 0.0
    %1481 = vmatprep.subr.mxu0 0.0
    %1482 = vmatpush1.msra.mxu0 0.0
    %1483 = vmatprep.subr.mxu0 0.0
    %1484 = vmatpush1.msra.mxu0 0.0
    %1485 = vmatprep.subr.mxu0 0.0
    %1486 = vmatpush1.msra.mxu0 0.0
    %1487 = vmatprep.mubr.f32.mxu0 0.0
    %1488 = vmatmul.mubr.f32.gmra.mrb[0].mxu0 %v1421
    %v1489 = vpop.f32.mrb[0].mxu0
    %v1490 = vadd.f32 %v1213, %v1489
    %v1491 = vpop.f32.mrb[0].mxu0
    %1492 = vdwg.mxu0
    %v1493 = vld [vmem:[#allocation2 + $0x10] sm:$0xff]
    %v1494 = vadd.f32 %v1493, %v1490
    %v1495 = vxor.u32 %v1494, 2147483648
    %v1496 = vmul.f32 %v1495, 1.442695
    %v1497 = vpow.pop %v1496
    %v1498 = vadd.f32 %v1497, 1.0
    %v1499 = vrcp.pop %v1498
    %v1500 = vmul.f32 1.0, %v1499
    %1502 = vrot.lane.b32.xlu0 %v1490, 64
    %v1503 = vpop.permute.xlu0 %1502
    %v1505 = vmul.f32 %v1500, %v1503
    %1507 = vrot.lane.b32.xlu0 %v1505, 64
    %v1508 = vpop.permute.xlu0 %1507
    %v1510 = vadd.f32 %v1493, %v1508
    %v1511 = vtanh.pop %v1510
    %v1512 = vsub.f32 1.0, %v1500
    %1514 = vrot.lane.b32.xlu0 %v1511, 96
    %v1515 = vpop.permute.xlu0 %1514
    %v1517 = vmul.f32 %v1512, %v1515
    %v1518 = vmul.f32 %v1500, %v1415
    %v1519 = vadd.f32 %v1517, %v1518
    %1521 = vrot.lane.b32.xlu0 %v1519, 96
    %v1522 = vpop.permute.xlu0 %1521
    %1524 = vst.msk [vmem:[%s6 + $0x10] sm:$0xff] %vm208, %v1522
    %v1525 = vsel %vm208, %v1522, 0
    %1527 = vmatprep.subr.mxu0 0.0
    %1528 = vmatpush1.msra.mxu0 %v1203
    %1529 = vmatprep.subr.mxu0 0.0
    %1530 = vmatpush1.msra.mxu0 %v1204
    %1531 = vmatprep.subr.mxu0 0.0
    %1532 = vmatpush1.msra.mxu0 %v1205
    %1533 = vmatprep.subr.mxu0 0.0
    %1534 = vmatpush1.msra.mxu0 %v1206
    %1535 = vmatprep.subr.mxu0 0.0
    %1536 = vmatpush1.msra.mxu0 0.0
    %1537 = vmatprep.subr.mxu0 0.0
    %1538 = vmatpush1.msra.mxu0 0.0
    %1539 = vmatprep.subr.mxu0 0.0
    %1540 = vmatpush1.msra.mxu0 0.0
    %1541 = vmatprep.subr.mxu0 0.0
    %1542 = vmatpush1.msra.mxu0 0.0
    %1543 = vmatprep.subr.mxu0 0.0
    %1544 = vmatpush1.msra.mxu0 0.0
    %1545 = vmatprep.subr.mxu0 0.0
    %1546 = vmatpush1.msra.mxu0 0.0
    %1547 = vmatprep.subr.mxu0 0.0
    %1548 = vmatpush1.msra.mxu0 0.0
    %1549 = vmatprep.subr.mxu0 0.0
    %1550 = vmatpush1.msra.mxu0 0.0
    %1551 = vmatprep.subr.mxu0 0.0
    %1552 = vmatpush1.msra.mxu0 0.0
    %1553 = vmatprep.subr.mxu0 0.0
    %1554 = vmatpush1.msra.mxu0 0.0
    %1555 = vmatprep.subr.mxu0 0.0
    %1556 = vmatpush1.msra.mxu0 0.0
    %1557 = vmatprep.subr.mxu0 0.0
    %1558 = vmatpush1.msra.mxu0 0.0
    %1559 = vmatprep.subr.mxu0 0.0
    %1560 = vmatpush1.msra.mxu0 0.0
    %1561 = vmatprep.subr.mxu0 0.0
    %1562 = vmatpush1.msra.mxu0 0.0
    %1563 = vmatprep.subr.mxu0 0.0
    %1564 = vmatpush1.msra.mxu0 0.0
    %1565 = vmatprep.subr.mxu0 0.0
    %1566 = vmatpush1.msra.mxu0 0.0
    %1567 = vmatprep.subr.mxu0 0.0
    %1568 = vmatpush1.msra.mxu0 0.0
    %1569 = vmatprep.subr.mxu0 0.0
    %1570 = vmatpush1.msra.mxu0 0.0
    %1571 = vmatprep.subr.mxu0 0.0
    %1572 = vmatpush1.msra.mxu0 0.0
    %1573 = vmatprep.subr.mxu0 0.0
    %1574 = vmatpush1.msra.mxu0 0.0
    %1575 = vmatprep.subr.mxu0 0.0
    %1576 = vmatpush1.msra.mxu0 0.0
    %1577 = vmatprep.subr.mxu0 0.0
    %1578 = vmatpush1.msra.mxu0 0.0
    %1579 = vmatprep.subr.mxu0 0.0
    %1580 = vmatpush1.msra.mxu0 0.0
    %1581 = vmatprep.subr.mxu0 0.0
    %1582 = vmatpush1.msra.mxu0 0.0
    %1583 = vmatprep.subr.mxu0 0.0
    %1584 = vmatpush1.msra.mxu0 0.0
    %1585 = vmatprep.subr.mxu0 0.0
    %1586 = vmatpush1.msra.mxu0 0.0
    %1587 = vmatprep.subr.mxu0 0.0
    %1588 = vmatpush1.msra.mxu0 0.0
    %1589 = vmatprep.subr.mxu0 0.0
    %1590 = vmatpush1.msra.mxu0 0.0
    %1591 = vmatprep.mubr.f32.mxu0 0.0
    %1592 = vmatmul.mubr.f32.gmra.mrb[0].mxu0 %v1525
    %v1593 = vpop.f32.mrb[0].mxu0
    %v1594 = vadd.f32 %v1213, %v1593
    %v1595 = vpop.f32.mrb[0].mxu0
    %1596 = vdwg.mxu0
    %v1597 = vld [vmem:[#allocation2 + $0x18] sm:$0xff]
    %v1598 = vadd.f32 %v1597, %v1594
    %v1599 = vxor.u32 %v1598, 2147483648
    %v1600 = vmul.f32 %v1599, 1.442695
    %v1601 = vpow.pop %v1600
    %v1602 = vadd.f32 %v1601, 1.0
    %v1603 = vrcp.pop %v1602
    %v1604 = vmul.f32 1.0, %v1603
    %1606 = vrot.lane.b32.xlu0 %v1594, 64
    %v1607 = vpop.permute.xlu0 %1606
    %v1609 = vmul.f32 %v1604, %v1607
    %1611 = vrot.lane.b32.xlu0 %v1609, 64
    %v1612 = vpop.permute.xlu0 %1611
    %v1614 = vadd.f32 %v1597, %v1612
    %v1615 = vtanh.pop %v1614
    %v1616 = vsub.f32 1.0, %v1604
    %1618 = vrot.lane.b32.xlu0 %v1615, 96
    %v1619 = vpop.permute.xlu0 %1618
    %v1621 = vmul.f32 %v1616, %v1619
    %v1622 = vmul.f32 %v1604, %v1519
    %v1623 = vadd.f32 %v1621, %v1622
    %1625 = vrot.lane.b32.xlu0 %v1623, 96
    %v1626 = vpop.permute.xlu0 %1625
    %1628 = vst.msk [vmem:[%s6 + $0x18] sm:$0xff] %vm208, %v1626
    %v1629 = vsel %vm208, %v1626, 0
    %1631 = vmatprep.subr.mxu0 0.0
    %1632 = vmatpush1.msra.mxu0 %v1203
    %1633 = vmatprep.subr.mxu0 0.0
    %1634 = vmatpush1.msra.mxu0 %v1204
    %1635 = vmatprep.subr.mxu0 0.0
    %1636 = vmatpush1.msra.mxu0 %v1205
    %1637 = vmatprep.subr.mxu0 0.0
    %1638 = vmatpush1.msra.mxu0 %v1206
    %1639 = vmatprep.subr.mxu0 0.0
    %1640 = vmatpush1.msra.mxu0 0.0
    %1641 = vmatprep.subr.mxu0 0.0
    %1642 = vmatpush1.msra.mxu0 0.0
    %1643 = vmatprep.subr.mxu0 0.0
    %1644 = vmatpush1.msra.mxu0 0.0
    %1645 = vmatprep.subr.mxu0 0.0
    %1646 = vmatpush1.msra.mxu0 0.0
    %1647 = vmatprep.subr.mxu0 0.0
    %1648 = vmatpush1.msra.mxu0 0.0
    %1649 = vmatprep.subr.mxu0 0.0
    %1650 = vmatpush1.msra.mxu0 0.0
    %1651 = vmatprep.subr.mxu0 0.0
    %1652 = vmatpush1.msra.mxu0 0.0
    %1653 = vmatprep.subr.mxu0 0.0
    %1654 = vmatpush1.msra.mxu0 0.0
    %1655 = vmatprep.subr.mxu0 0.0
    %1656 = vmatpush1.msra.mxu0 0.0
    %1657 = vmatprep.subr.mxu0 0.0
    %1658 = vmatpush1.msra.mxu0 0.0
    %1659 = vmatprep.subr.mxu0 0.0
    %1660 = vmatpush1.msra.mxu0 0.0
    %1661 = vmatprep.subr.mxu0 0.0
    %1662 = vmatpush1.msra.mxu0 0.0
    %1663 = vmatprep.subr.mxu0 0.0
    %1664 = vmatpush1.msra.mxu0 0.0
    %1665 = vmatprep.subr.mxu0 0.0
    %1666 = vmatpush1.msra.mxu0 0.0
    %1667 = vmatprep.subr.mxu0 0.0
    %1668 = vmatpush1.msra.mxu0 0.0
    %1669 = vmatprep.subr.mxu0 0.0
    %1670 = vmatpush1.msra.mxu0 0.0
    %1671 = vmatprep.subr.mxu0 0.0
    %1672 = vmatpush1.msra.mxu0 0.0
    %1673 = vmatprep.subr.mxu0 0.0
    %1674 = vmatpush1.msra.mxu0 0.0
    %1675 = vmatprep.subr.mxu0 0.0
    %1676 = vmatpush1.msra.mxu0 0.0
    %1677 = vmatprep.subr.mxu0 0.0
    %1678 = vmatpush1.msra.mxu0 0.0
    %1679 = vmatprep.subr.mxu0 0.0
    %1680 = vmatpush1.msra.mxu0 0.0
    %1681 = vmatprep.subr.mxu0 0.0
    %1682 = vmatpush1.msra.mxu0 0.0
    %1683 = vmatprep.subr.mxu0 0.0
    %1684 = vmatpush1.msra.mxu0 0.0
    %1685 = vmatprep.subr.mxu0 0.0
    %1686 = vmatpush1.msra.mxu0 0.0
    %1687 = vmatprep.subr.mxu0 0.0
    %1688 = vmatpush1.msra.mxu0 0.0
    %1689 = vmatprep.subr.mxu0 0.0
    %1690 = vmatpush1.msra.mxu0 0.0
    %1691 = vmatprep.subr.mxu0 0.0
    %1692 = vmatpush1.msra.mxu0 0.0
    %1693 = vmatprep.subr.mxu0 0.0
    %1694 = vmatpush1.msra.mxu0 0.0
    %1695 = vmatprep.mubr.f32.mxu0 0.0
    %1696 = vmatmul.mubr.f32.gmra.mrb[0].mxu0 %v1629
    %v1697 = vpop.f32.mrb[0].mxu0
    %v1698 = vadd.f32 %v1213, %v1697
    %v1699 = vpop.f32.mrb[0].mxu0
    %1700 = vdwg.mxu0
    %v1701 = vld [vmem:[#allocation2 + $0x20] sm:$0xff]
    %v1702 = vadd.f32 %v1701, %v1698
    %v1703 = vxor.u32 %v1702, 2147483648
    %v1704 = vmul.f32 %v1703, 1.442695
    %v1705 = vpow.pop %v1704
    %v1706 = vadd.f32 %v1705, 1.0
    %v1707 = vrcp.pop %v1706
    %v1708 = vmul.f32 1.0, %v1707
    %1710 = vrot.lane.b32.xlu0 %v1698, 64
    %v1711 = vpop.permute.xlu0 %1710
    %v1713 = vmul.f32 %v1708, %v1711
    %1715 = vrot.lane.b32.xlu0 %v1713, 64
    %v1716 = vpop.permute.xlu0 %1715
    %v1718 = vadd.f32 %v1701, %v1716
    %v1719 = vtanh.pop %v1718
    %v1720 = vsub.f32 1.0, %v1708
    %1722 = vrot.lane.b32.xlu0 %v1719, 96
    %v1723 = vpop.permute.xlu0 %1722
    %v1725 = vmul.f32 %v1720, %v1723
    %v1726 = vmul.f32 %v1708, %v1623
    %v1727 = vadd.f32 %v1725, %v1726
    %1729 = vrot.lane.b32.xlu0 %v1727, 96
    %v1730 = vpop.permute.xlu0 %1729
    %1732 = vst.msk [vmem:[%s6 + $0x20] sm:$0xff] %vm208, %v1730
    %v1733 = vsel %vm208, %v1730, 0
    %1735 = vmatprep.subr.mxu0 0.0
    %1736 = vmatpush1.msra.mxu0 %v1203
    %1737 = vmatprep.subr.mxu0 0.0
    %1738 = vmatpush1.msra.mxu0 %v1204
    %1739 = vmatprep.subr.mxu0 0.0
    %1740 = vmatpush1.msra.mxu0 %v1205
    %1741 = vmatprep.subr.mxu0 0.0
    %1742 = vmatpush1.msra.mxu0 %v1206
    %1743 = vmatprep.subr.mxu0 0.0
    %1744 = vmatpush1.msra.mxu0 0.0
    %1745 = vmatprep.subr.mxu0 0.0
    %1746 = vmatpush1.msra.mxu0 0.0
    %1747 = vmatprep.subr.mxu0 0.0
    %1748 = vmatpush1.msra.mxu0 0.0
    %1749 = vmatprep.subr.mxu0 0.0
    %1750 = vmatpush1.msra.mxu0 0.0
    %1751 = vmatprep.subr.mxu0 0.0
    %1752 = vmatpush1.msra.mxu0 0.0
    %1753 = vmatprep.subr.mxu0 0.0
    %1754 = vmatpush1.msra.mxu0 0.0
    %1755 = vmatprep.subr.mxu0 0.0
    %1756 = vmatpush1.msra.mxu0 0.0
    %1757 = vmatprep.subr.mxu0 0.0
    %1758 = vmatpush1.msra.mxu0 0.0
    %1759 = vmatprep.subr.mxu0 0.0
    %1760 = vmatpush1.msra.mxu0 0.0
    %1761 = vmatprep.subr.mxu0 0.0
    %1762 = vmatpush1.msra.mxu0 0.0
    %1763 = vmatprep.subr.mxu0 0.0
    %1764 = vmatpush1.msra.mxu0 0.0
    %1765 = vmatprep.subr.mxu0 0.0
    %1766 = vmatpush1.msra.mxu0 0.0
    %1767 = vmatprep.subr.mxu0 0.0
    %1768 = vmatpush1.msra.mxu0 0.0
    %1769 = vmatprep.subr.mxu0 0.0
    %1770 = vmatpush1.msra.mxu0 0.0
    %1771 = vmatprep.subr.mxu0 0.0
    %1772 = vmatpush1.msra.mxu0 0.0
    %1773 = vmatprep.subr.mxu0 0.0
    %1774 = vmatpush1.msra.mxu0 0.0
    %1775 = vmatprep.subr.mxu0 0.0
    %1776 = vmatpush1.msra.mxu0 0.0
    %1777 = vmatprep.subr.mxu0 0.0
    %1778 = vmatpush1.msra.mxu0 0.0
    %1779 = vmatprep.subr.mxu0 0.0
    %1780 = vmatpush1.msra.mxu0 0.0
    %1781 = vmatprep.subr.mxu0 0.0
    %1782 = vmatpush1.msra.mxu0 0.0
    %1783 = vmatprep.subr.mxu0 0.0
    %1784 = vmatpush1.msra.mxu0 0.0
    %1785 = vmatprep.subr.mxu0 0.0
    %1786 = vmatpush1.msra.mxu0 0.0
    %1787 = vmatprep.subr.mxu0 0.0
    %1788 = vmatpush1.msra.mxu0 0.0
    %1789 = vmatprep.subr.mxu0 0.0
    %1790 = vmatpush1.msra.mxu0 0.0
    %1791 = vmatprep.subr.mxu0 0.0
    %1792 = vmatpush1.msra.mxu0 0.0
    %1793 = vmatprep.subr.mxu0 0.0
    %1794 = vmatpush1.msra.mxu0 0.0
    %1795 = vmatprep.subr.mxu0 0.0
    %1796 = vmatpush1.msra.mxu0 0.0
    %1797 = vmatprep.subr.mxu0 0.0
    %1798 = vmatpush1.msra.mxu0 0.0
    %1799 = vmatprep.mubr.f32.mxu0 0.0
    %1800 = vmatmul.mubr.f32.gmra.mrb[0].mxu0 %v1733
    %v1801 = vpop.f32.mrb[0].mxu0
    %v1802 = vadd.f32 %v1213, %v1801
    %v1803 = vpop.f32.mrb[0].mxu0
    %1804 = vdwg.mxu0
    %v1805 = vld [vmem:[#allocation2 + $0x28] sm:$0xff]
    %v1806 = vadd.f32 %v1805, %v1802
    %v1807 = vxor.u32 %v1806, 2147483648
    %v1808 = vmul.f32 %v1807, 1.442695
    %v1809 = vpow.pop %v1808
    %v1810 = vadd.f32 %v1809, 1.0
    %v1811 = vrcp.pop %v1810
    %v1812 = vmul.f32 1.0, %v1811
    %1814 = vrot.lane.b32.xlu0 %v1802, 64
    %v1815 = vpop.permute.xlu0 %1814
    %v1817 = vmul.f32 %v1812, %v1815
    %1819 = vrot.lane.b32.xlu0 %v1817, 64
    %v1820 = vpop.permute.xlu0 %1819
    %v1822 = vadd.f32 %v1805, %v1820
    %v1823 = vtanh.pop %v1822
    %v1824 = vsub.f32 1.0, %v1812
    %1826 = vrot.lane.b32.xlu0 %v1823, 96
    %v1827 = vpop.permute.xlu0 %1826
    %v1829 = vmul.f32 %v1824, %v1827
    %v1830 = vmul.f32 %v1812, %v1727
    %v1831 = vadd.f32 %v1829, %v1830
    %1833 = vrot.lane.b32.xlu0 %v1831, 96
    %v1834 = vpop.permute.xlu0 %1833
    %1836 = vst.msk [vmem:[%s6 + $0x28] sm:$0xff] %vm208, %v1834
    %v1837 = vsel %vm208, %v1834, 0
    %1839 = vmatprep.subr.mxu0 0.0
    %1840 = vmatpush1.msra.mxu0 %v1203
    %1841 = vmatprep.subr.mxu0 0.0
    %1842 = vmatpush1.msra.mxu0 %v1204
    %1843 = vmatprep.subr.mxu0 0.0
    %1844 = vmatpush1.msra.mxu0 %v1205
    %1845 = vmatprep.subr.mxu0 0.0
    %1846 = vmatpush1.msra.mxu0 %v1206
    %1847 = vmatprep.subr.mxu0 0.0
    %1848 = vmatpush1.msra.mxu0 0.0
    %1849 = vmatprep.subr.mxu0 0.0
    %1850 = vmatpush1.msra.mxu0 0.0
    %1851 = vmatprep.subr.mxu0 0.0
    %1852 = vmatpush1.msra.mxu0 0.0
    %1853 = vmatprep.subr.mxu0 0.0
    %1854 = vmatpush1.msra.mxu0 0.0
    %1855 = vmatprep.subr.mxu0 0.0
    %1856 = vmatpush1.msra.mxu0 0.0
    %1857 = vmatprep.subr.mxu0 0.0
    %1858 = vmatpush1.msra.mxu0 0.0
    %1859 = vmatprep.subr.mxu0 0.0
    %1860 = vmatpush1.msra.mxu0 0.0
    %1861 = vmatprep.subr.mxu0 0.0
    %1862 = vmatpush1.msra.mxu0 0.0
    %1863 = vmatprep.subr.mxu0 0.0
    %1864 = vmatpush1.msra.mxu0 0.0
    %1865 = vmatprep.subr.mxu0 0.0
    %1866 = vmatpush1.msra.mxu0 0.0
    %1867 = vmatprep.subr.mxu0 0.0
    %1868 = vmatpush1.msra.mxu0 0.0
    %1869 = vmatprep.subr.mxu0 0.0
    %1870 = vmatpush1.msra.mxu0 0.0
    %1871 = vmatprep.subr.mxu0 0.0
    %1872 = vmatpush1.msra.mxu0 0.0
    %1873 = vmatprep.subr.mxu0 0.0
    %1874 = vmatpush1.msra.mxu0 0.0
    %1875 = vmatprep.subr.mxu0 0.0
    %1876 = vmatpush1.msra.mxu0 0.0
    %1877 = vmatprep.subr.mxu0 0.0
    %1878 = vmatpush1.msra.mxu0 0.0
    %1879 = vmatprep.subr.mxu0 0.0
    %1880 = vmatpush1.msra.mxu0 0.0
    %1881 = vmatprep.subr.mxu0 0.0
    %1882 = vmatpush1.msra.mxu0 0.0
    %1883 = vmatprep.subr.mxu0 0.0
    %1884 = vmatpush1.msra.mxu0 0.0
    %1885 = vmatprep.subr.mxu0 0.0
    %1886 = vmatpush1.msra.mxu0 0.0
    %1887 = vmatprep.subr.mxu0 0.0
    %1888 = vmatpush1.msra.mxu0 0.0
    %1889 = vmatprep.subr.mxu0 0.0
    %1890 = vmatpush1.msra.mxu0 0.0
    %1891 = vmatprep.subr.mxu0 0.0
    %1892 = vmatpush1.msra.mxu0 0.0
    %1893 = vmatprep.subr.mxu0 0.0
    %1894 = vmatpush1.msra.mxu0 0.0
    %1895 = vmatprep.subr.mxu0 0.0
    %1896 = vmatpush1.msra.mxu0 0.0
    %1897 = vmatprep.subr.mxu0 0.0
    %1898 = vmatpush1.msra.mxu0 0.0
    %1899 = vmatprep.subr.mxu0 0.0
    %1900 = vmatpush1.msra.mxu0 0.0
    %1901 = vmatprep.subr.mxu0 0.0
    %1902 = vmatpush1.msra.mxu0 0.0
    %1903 = vmatprep.mubr.f32.mxu0 0.0
    %1904 = vmatmul.mubr.f32.gmra.mrb[0].mxu0 %v1837
    %v1905 = vpop.f32.mrb[0].mxu0
    %v1906 = vadd.f32 %v1213, %v1905
    %v1907 = vpop.f32.mrb[0].mxu0
    %1908 = vdwg.mxu0
    %v1909 = vld [vmem:[#allocation2 + $0x30] sm:$0xff]
    %v1910 = vadd.f32 %v1909, %v1906
    %v1911 = vxor.u32 %v1910, 2147483648
    %v1912 = vmul.f32 %v1911, 1.442695
    %v1913 = vpow.pop %v1912
    %v1914 = vadd.f32 %v1913, 1.0
    %v1915 = vrcp.pop %v1914
    %v1916 = vmul.f32 1.0, %v1915
    %1918 = vrot.lane.b32.xlu0 %v1906, 64
    %v1919 = vpop.permute.xlu0 %1918
    %v1921 = vmul.f32 %v1916, %v1919
    %1923 = vrot.lane.b32.xlu0 %v1921, 64
    %v1924 = vpop.permute.xlu0 %1923
    %v1926 = vadd.f32 %v1909, %v1924
    %v1927 = vtanh.pop %v1926
    %v1928 = vsub.f32 1.0, %v1916
    %1930 = vrot.lane.b32.xlu0 %v1927, 96
    %v1931 = vpop.permute.xlu0 %1930
    %v1933 = vmul.f32 %v1928, %v1931
    %v1934 = vmul.f32 %v1916, %v1831
    %v1935 = vadd.f32 %v1933, %v1934
    %v1936 = vsel %vm41, %v1935, %v1831
    %1938 = vrot.lane.b32.xlu0 %v1936, 96
    %v1939 = vpop.permute.xlu0 %1938
    %1941 = vst.msk [vmem:[%s6 + $0x30] sm:$0xff] %vm208, %v1939
    %v1942 = vsel %vm208, %v1939, 0
    %1944 = vmatprep.subr.mxu0 0.0
    %1945 = vmatpush1.msra.mxu0 %v1203
    %1946 = vmatprep.subr.mxu0 0.0
    %1947 = vmatpush1.msra.mxu0 %v1204
    %1948 = vmatprep.subr.mxu0 0.0
    %1949 = vmatpush1.msra.mxu0 %v1205
    %1950 = vmatprep.subr.mxu0 0.0
    %1951 = vmatpush1.msra.mxu0 %v1206
    %1952 = vmatprep.subr.mxu0 0.0
    %1953 = vmatpush1.msra.mxu0 0.0
    %1954 = vmatprep.subr.mxu0 0.0
    %1955 = vmatpush1.msra.mxu0 0.0
    %1956 = vmatprep.subr.mxu0 0.0
    %1957 = vmatpush1.msra.mxu0 0.0
    %1958 = vmatprep.subr.mxu0 0.0
    %1959 = vmatpush1.msra.mxu0 0.0
    %1960 = vmatprep.subr.mxu0 0.0
    %1961 = vmatpush1.msra.mxu0 0.0
    %1962 = vmatprep.subr.mxu0 0.0
    %1963 = vmatpush1.msra.mxu0 0.0
    %1964 = vmatprep.subr.mxu0 0.0
    %1965 = vmatpush1.msra.mxu0 0.0
    %1966 = vmatprep.subr.mxu0 0.0
    %1967 = vmatpush1.msra.mxu0 0.0
    %1968 = vmatprep.subr.mxu0 0.0
    %1969 = vmatpush1.msra.mxu0 0.0
    %1970 = vmatprep.subr.mxu0 0.0
    %1971 = vmatpush1.msra.mxu0 0.0
    %1972 = vmatprep.subr.mxu0 0.0
    %1973 = vmatpush1.msra.mxu0 0.0
    %1974 = vmatprep.subr.mxu0 0.0
    %1975 = vmatpush1.msra.mxu0 0.0
    %1976 = vmatprep.subr.mxu0 0.0
    %1977 = vmatpush1.msra.mxu0 0.0
    %1978 = vmatprep.subr.mxu0 0.0
    %1979 = vmatpush1.msra.mxu0 0.0
    %1980 = vmatprep.subr.mxu0 0.0
    %1981 = vmatpush1.msra.mxu0 0.0
    %1982 = vmatprep.subr.mxu0 0.0
    %1983 = vmatpush1.msra.mxu0 0.0
    %1984 = vmatprep.subr.mxu0 0.0
    %1985 = vmatpush1.msra.mxu0 0.0
    %1986 = vmatprep.subr.mxu0 0.0
    %1987 = vmatpush1.msra.mxu0 0.0
    %1988 = vmatprep.subr.mxu0 0.0
    %1989 = vmatpush1.msra.mxu0 0.0
    %1990 = vmatprep.subr.mxu0 0.0
    %1991 = vmatpush1.msra.mxu0 0.0
    %1992 = vmatprep.subr.mxu0 0.0
    %1993 = vmatpush1.msra.mxu0 0.0
    %1994 = vmatprep.subr.mxu0 0.0
    %1995 = vmatpush1.msra.mxu0 0.0
    %1996 = vmatprep.subr.mxu0 0.0
    %1997 = vmatpush1.msra.mxu0 0.0
    %1998 = vmatprep.subr.mxu0 0.0
    %1999 = vmatpush1.msra.mxu0 0.0
    %2000 = vmatprep.subr.mxu0 0.0
    %2001 = vmatpush1.msra.mxu0 0.0
    %2002 = vmatprep.subr.mxu0 0.0
    %2003 = vmatpush1.msra.mxu0 0.0
    %2004 = vmatprep.subr.mxu0 0.0
    %2005 = vmatpush1.msra.mxu0 0.0
    %2006 = vmatprep.subr.mxu0 0.0
    %2007 = vmatpush1.msra.mxu0 0.0
    %2008 = vmatprep.mubr.f32.mxu0 0.0
    %2009 = vmatmul.mubr.f32.gmra.mrb[0].mxu0 %v1942
    %v2010 = vpop.f32.mrb[0].mxu0
    %v2011 = vadd.f32 %v1213, %v2010
    %v2012 = vpop.f32.mrb[0].mxu0
    %2013 = vdwg.mxu0
    %v2014 = vld [vmem:[#allocation2 + $0x38] sm:$0xff]
    %v2015 = vadd.f32 %v2014, %v2011
    %v2016 = vxor.u32 %v2015, 2147483648
    %v2017 = vmul.f32 %v2016, 1.442695
    %v2018 = vpow.pop %v2017
    %v2019 = vadd.f32 %v2018, 1.0
    %v2020 = vrcp.pop %v2019
    %v2021 = vmul.f32 1.0, %v2020
    %2023 = vrot.lane.b32.xlu0 %v2011, 64
    %v2024 = vpop.permute.xlu0 %2023
    %v2026 = vmul.f32 %v2021, %v2024
    %2028 = vrot.lane.b32.xlu0 %v2026, 64
    %v2029 = vpop.permute.xlu0 %2028
    %v2031 = vadd.f32 %v2014, %v2029
    %v2032 = vtanh.pop %v2031
    %v2033 = vsub.f32 1.0, %v2021
    %2035 = vrot.lane.b32.xlu0 %v2032, 96
    %v2036 = vpop.permute.xlu0 %2035
    %v2038 = vmul.f32 %v2033, %v2036
    %v2039 = vmul.f32 %v2021, %v1936
    %v2040 = vadd.f32 %v2038, %v2039
    %v2041 = vsel %vm41, %v2040, %v1831
    %2043 = vrot.lane.b32.xlu0 %v2041, 96
    %v2044 = vpop.permute.xlu0 %2043
    %2046 = vst.msk [vmem:[%s6 + $0x38] sm:$0xff] %vm208, %v2044
    %s2047 = scalar_lea.vmem %s7, 8
    %2048 = vst.msk [vmem:[%s2047] sm:$0xff] %vm208, %v2044
    %v2049 = vld [vmem:[%s6] sm:$0xff]
    %v2050 = vld [vmem:[%s6 + $0x8] sm:$0xff]
    %v2051 = vld [vmem:[%s6 + $0x10] sm:$0xff]
    %v2052 = vld [vmem:[%s6 + $0x18] sm:$0xff]
    %v2053 = vld [vmem:[%s6 + $0x20] sm:$0xff]
    %v2054 = vld [vmem:[%s6 + $0x28] sm:$0xff]
    %v2055 = vld [vmem:[%s6 + $0x30] sm:$0xff]
    %v2056 = vld [vmem:[%s6 + $0x38] sm:$0xff]
    %s2057 = scalar_lea.vmem [#allocation3], 32
    %v2058 = vld [vmem:[%s2057] sm:$0xff]
    %v2059 = vld [vmem:[%s2057 + $0x8] sm:$0xff]
    %v2060 = vld [vmem:[%s2057 + $0x10] sm:$0xff]
    %v2061 = vld [vmem:[%s2057 + $0x18] sm:$0xff]
    %s2062 = scalar_lea.vmem %s4, 2
    %v2063 = vld [vmem:[%s2062] sm:$0x1]
    %v2065 = vlaneseq
    %v2066 = vshrl.u32 %v2065, 7
    %v2067 = vsub.s32 0, %v2066
    %v2068 = vrot.slane %v2063, %v2067
    %v2071 = vsel %vm208, %v2049, 0
    %v2074 = vsel %vm208, %v2050, 0
    %v2077 = vsel %vm208, %v2051, 0
    %v2080 = vsel %vm208, %v2052, 0
    %v2083 = vsel %vm208, %v2053, 0
    %v2086 = vsel %vm208, %v2054, 0
    %v2089 = vsel %vm208, %v2055, 0
    %v2092 = vsel %vm208, %v2056, 0
    %2094 = vmatprep.subr.mxu0 0.0
    %2095 = vmatpush1.msra.mxu0 %v2058
    %2096 = vmatprep.subr.mxu0 0.0
    %2097 = vmatpush1.msra.mxu0 %v2059
    %2098 = vmatprep.subr.mxu0 0.0
    %2099 = vmatpush1.msra.mxu0 %v2060
    %2100 = vmatprep.subr.mxu0 0.0
    %2101 = vmatpush1.msra.mxu0 %v2061
    %2102 = vmatprep.subr.mxu0 0.0
    %2103 = vmatpush1.msra.mxu0 0.0
    %2104 = vmatprep.subr.mxu0 0.0
    %2105 = vmatpush1.msra.mxu0 0.0
    %2106 = vmatprep.subr.mxu0 0.0
    %2107 = vmatpush1.msra.mxu0 0.0
    %2108 = vmatprep.subr.mxu0 0.0
    %2109 = vmatpush1.msra.mxu0 0.0
    %2110 = vmatprep.subr.mxu0 0.0
    %2111 = vmatpush1.msra.mxu0 0.0
    %2112 = vmatprep.subr.mxu0 0.0
    %2113 = vmatpush1.msra.mxu0 0.0
    %2114 = vmatprep.subr.mxu0 0.0
    %2115 = vmatpush1.msra.mxu0 0.0
    %2116 = vmatprep.subr.mxu0 0.0
    %2117 = vmatpush1.msra.mxu0 0.0
    %2118 = vmatprep.subr.mxu0 0.0
    %2119 = vmatpush1.msra.mxu0 0.0
    %2120 = vmatprep.subr.mxu0 0.0
    %2121 = vmatpush1.msra.mxu0 0.0
    %2122 = vmatprep.subr.mxu0 0.0
    %2123 = vmatpush1.msra.mxu0 0.0
    %2124 = vmatprep.subr.mxu0 0.0
    %2125 = vmatpush1.msra.mxu0 0.0
    %2126 = vmatprep.subr.mxu0 0.0
    %2127 = vmatpush1.msra.mxu0 0.0
    %2128 = vmatprep.subr.mxu0 0.0
    %2129 = vmatpush1.msra.mxu0 0.0
    %2130 = vmatprep.subr.mxu0 0.0
    %2131 = vmatpush1.msra.mxu0 0.0
    %2132 = vmatprep.subr.mxu0 0.0
    %2133 = vmatpush1.msra.mxu0 0.0
    %2134 = vmatprep.subr.mxu0 0.0
    %2135 = vmatpush1.msra.mxu0 0.0
    %2136 = vmatprep.subr.mxu0 0.0
    %2137 = vmatpush1.msra.mxu0 0.0
    %2138 = vmatprep.subr.mxu0 0.0
    %2139 = vmatpush1.msra.mxu0 0.0
    %2140 = vmatprep.subr.mxu0 0.0
    %2141 = vmatpush1.msra.mxu0 0.0
    %2142 = vmatprep.subr.mxu0 0.0
    %2143 = vmatpush1.msra.mxu0 0.0
    %2144 = vmatprep.subr.mxu0 0.0
    %2145 = vmatpush1.msra.mxu0 0.0
    %2146 = vmatprep.subr.mxu0 0.0
    %2147 = vmatpush1.msra.mxu0 0.0
    %2148 = vmatprep.subr.mxu0 0.0
    %2149 = vmatpush1.msra.mxu0 0.0
    %2150 = vmatprep.subr.mxu0 0.0
    %2151 = vmatpush1.msra.mxu0 0.0
    %2152 = vmatprep.subr.mxu0 0.0
    %2153 = vmatpush1.msra.mxu0 0.0
    %2154 = vmatprep.subr.mxu0 0.0
    %2155 = vmatpush1.msra.mxu0 0.0
    %2156 = vmatprep.subr.mxu0 0.0
    %2157 = vmatpush1.msra.mxu0 0.0
    %2158 = vmatprep.mubr.f32.mxu0 0.0
    %2159 = vmatmul.mubr.f32.gmra.mrb[0].mxu0 %v2071
    %v2160 = vpop.f32.mrb[0].mxu0
    %v2161 = vadd.f32 %v2068, %v2160
    %v2162 = vpop.f32.mrb[0].mxu0
    %2163 = vmatprep.mubr.f32.mxu0 0.0
    %2164 = vmatmul.mubr.f32.gmra.mrb[0].mxu0 %v2074
    %v2165 = vpop.f32.mrb[0].mxu0
    %v2166 = vadd.f32 %v2068, %v2165
    %v2167 = vpop.f32.mrb[0].mxu0
    %2168 = vmatprep.mubr.f32.mxu0 0.0
    %2169 = vmatmul.mubr.f32.gmra.mrb[0].mxu0 %v2077
    %v2170 = vpop.f32.mrb[0].mxu0
    %v2171 = vadd.f32 %v2068, %v2170
    %v2172 = vpop.f32.mrb[0].mxu0
    %2173 = vmatprep.mubr.f32.mxu0 0.0
    %2174 = vmatmul.mubr.f32.gmra.mrb[0].mxu0 %v2080
    %v2175 = vpop.f32.mrb[0].mxu0
    %v2176 = vadd.f32 %v2068, %v2175
    %v2177 = vpop.f32.mrb[0].mxu0
    %2178 = vmatprep.mubr.f32.mxu0 0.0
    %2179 = vmatmul.mubr.f32.gmra.mrb[0].mxu0 %v2083
    %v2180 = vpop.f32.mrb[0].mxu0
    %v2181 = vadd.f32 %v2068, %v2180
    %v2182 = vpop.f32.mrb[0].mxu0
    %2183 = vmatprep.mubr.f32.mxu0 0.0
    %2184 = vmatmul.mubr.f32.gmra.mrb[0].mxu0 %v2086
    %v2185 = vpop.f32.mrb[0].mxu0
    %v2186 = vadd.f32 %v2068, %v2185
    %v2187 = vpop.f32.mrb[0].mxu0
    %2188 = vmatprep.mubr.f32.mxu0 0.0
    %2189 = vmatmul.mubr.f32.gmra.mrb[0].mxu0 %v2089
    %v2190 = vpop.f32.mrb[0].mxu0
    %v2191 = vadd.f32 %v2068, %v2190
    %v2192 = vpop.f32.mrb[0].mxu0
    %2193 = vmatprep.mubr.f32.mxu0 0.0
    %2194 = vmatmul.mubr.f32.gmra.mrb[0].mxu0 %v2092
    %v2195 = vpop.f32.mrb[0].mxu0
    %v2196 = vadd.f32 %v2068, %v2195
    %v2197 = vpop.f32.mrb[0].mxu0
    %2198 = vdwg.mxu0
    %2199 = vst.msk [vmem:[#allocation2] sm:$0xff] %vm188, %v2161
    %2200 = vst.msk [vmem:[#allocation2 + $0x8] sm:$0xff] %vm188, %v2166
    %2201 = vst.msk [vmem:[#allocation2 + $0x10] sm:$0xff] %vm188, %v2171
    %2202 = vst.msk [vmem:[#allocation2 + $0x18] sm:$0xff] %vm188, %v2176
    %2203 = vst.msk [vmem:[#allocation2 + $0x20] sm:$0xff] %vm188, %v2181
    %2204 = vst.msk [vmem:[#allocation2 + $0x28] sm:$0xff] %vm188, %v2186
    %2205 = vst.msk [vmem:[#allocation2 + $0x30] sm:$0xff] %vm188, %v2191
    %2206 = vst.msk [vmem:[#allocation2 + $0x38] sm:$0xff] %vm188, %v2196
    %s2207 = scalar_lea.vmem %s3, 64
    %v2208 = vld [vmem:[%s2207] sm:$0xff]
    %v2209 = vld [vmem:[%s2207 + $0x8] sm:$0xff]
    %v2210 = vld [vmem:[%s2207 + $0x10] sm:$0xff]
    %v2211 = vld [vmem:[%s2207 + $0x18] sm:$0xff]
    %s2212 = scalar_lea.vmem %s5, 2
    %v2213 = vld [vmem:[%s2212] sm:$0x1]
    %v2215 = vlaneseq
    %v2216 = vshrl.u32 %v2215, 7
    %v2217 = vsub.s32 0, %v2216
    %v2218 = vrot.slane %v2213, %v2217
    %2220 = vmatprep.subr.mxu0 0.0
    %2221 = vmatpush1.msra.mxu0 %v2208
    %2222 = vmatprep.subr.mxu0 0.0
    %2223 = vmatpush1.msra.mxu0 %v2209
    %2224 = vmatprep.subr.mxu0 0.0
    %2225 = vmatpush1.msra.mxu0 %v2210
    %2226 = vmatprep.subr.mxu0 0.0
    %2227 = vmatpush1.msra.mxu0 %v2211
    %2228 = vmatprep.subr.mxu0 0.0
    %2229 = vmatpush1.msra.mxu0 0.0
    %2230 = vmatprep.subr.mxu0 0.0
    %2231 = vmatpush1.msra.mxu0 0.0
    %2232 = vmatprep.subr.mxu0 0.0
    %2233 = vmatpush1.msra.mxu0 0.0
    %2234 = vmatprep.subr.mxu0 0.0
    %2235 = vmatpush1.msra.mxu0 0.0
    %2236 = vmatprep.subr.mxu0 0.0
    %2237 = vmatpush1.msra.mxu0 0.0
    %2238 = vmatprep.subr.mxu0 0.0
    %2239 = vmatpush1.msra.mxu0 0.0
    %2240 = vmatprep.subr.mxu0 0.0
    %2241 = vmatpush1.msra.mxu0 0.0
    %2242 = vmatprep.subr.mxu0 0.0
    %2243 = vmatpush1.msra.mxu0 0.0
    %2244 = vmatprep.subr.mxu0 0.0
    %2245 = vmatpush1.msra.mxu0 0.0
    %2246 = vmatprep.subr.mxu0 0.0
    %2247 = vmatpush1.msra.mxu0 0.0
    %2248 = vmatprep.subr.mxu0 0.0
    %2249 = vmatpush1.msra.mxu0 0.0
    %2250 = vmatprep.subr.mxu0 0.0
    %2251 = vmatpush1.msra.mxu0 0.0
    %2252 = vmatprep.subr.mxu0 0.0
    %2253 = vmatpush1.msra.mxu0 0.0
    %2254 = vmatprep.subr.mxu0 0.0
    %2255 = vmatpush1.msra.mxu0 0.0
    %2256 = vmatprep.subr.mxu0 0.0
    %2257 = vmatpush1.msra.mxu0 0.0
    %2258 = vmatprep.subr.mxu0 0.0
    %2259 = vmatpush1.msra.mxu0 0.0
    %2260 = vmatprep.subr.mxu0 0.0
    %2261 = vmatpush1.msra.mxu0 0.0
    %2262 = vmatprep.subr.mxu0 0.0
    %2263 = vmatpush1.msra.mxu0 0.0
    %2264 = vmatprep.subr.mxu0 0.0
    %2265 = vmatpush1.msra.mxu0 0.0
    %2266 = vmatprep.subr.mxu0 0.0
    %2267 = vmatpush1.msra.mxu0 0.0
    %2268 = vmatprep.subr.mxu0 0.0
    %2269 = vmatpush1.msra.mxu0 0.0
    %2270 = vmatprep.subr.mxu0 0.0
    %2271 = vmatpush1.msra.mxu0 0.0
    %2272 = vmatprep.subr.mxu0 0.0
    %2273 = vmatpush1.msra.mxu0 0.0
    %2274 = vmatprep.subr.mxu0 0.0
    %2275 = vmatpush1.msra.mxu0 0.0
    %2276 = vmatprep.subr.mxu0 0.0
    %2277 = vmatpush1.msra.mxu0 0.0
    %2278 = vmatprep.subr.mxu0 0.0
    %2279 = vmatpush1.msra.mxu0 0.0
    %2280 = vmatprep.subr.mxu0 0.0
    %2281 = vmatpush1.msra.mxu0 0.0
    %2282 = vmatprep.subr.mxu0 0.0
    %2283 = vmatpush1.msra.mxu0 0.0
    %2284 = vmatprep.mubr.f32.mxu0 0.0
    %2285 = vmatmul.mubr.f32.gmra.mrb[0].mxu0 %v210
    %v2286 = vpop.f32.mrb[0].mxu0
    %v2287 = vadd.f32 %v2218, %v2286
    %v2288 = vpop.f32.mrb[0].mxu0
    %2289 = vdwg.mxu0
    %v2290 = vld [vmem:[#allocation2] sm:$0xff]
    %v2291 = vadd.f32 %v2290, %v2287
    %v2292 = vxor.u32 %v2291, 2147483648
    %v2293 = vmul.f32 %v2292, 1.442695
    %v2294 = vpow.pop %v2293
    %v2295 = vadd.f32 %v2294, 1.0
    %v2296 = vrcp.pop %v2295
    %v2297 = vmul.f32 1.0, %v2296
    %2299 = vrot.lane.b32.xlu0 %v2287, 64
    %v2300 = vpop.permute.xlu0 %2299
    %v2302 = vmul.f32 %v2297, %v2300
    %2304 = vrot.lane.b32.xlu0 %v2302, 64
    %v2305 = vpop.permute.xlu0 %2304
    %v2307 = vadd.f32 %v2290, %v2305
    %v2308 = vtanh.pop %v2307
    %v2309 = vsub.f32 1.0, %v2297
    %2311 = vrot.lane.b32.xlu0 %v2308, 96
    %v2312 = vpop.permute.xlu0 %2311
    %v2314 = vmul.f32 %v2309, %v2312
    %v2315 = vmul.f32 %v2297, 0.0
    %v2316 = vadd.f32 %v2314, %v2315
    %2318 = vrot.lane.b32.xlu0 %v2316, 96
    %v2319 = vpop.permute.xlu0 %2318
    %2321 = vst.msk [vmem:[%s6] sm:$0xff] %vm208, %v2319
    %v2322 = vsel %vm208, %v2319, 0
    %2324 = vmatprep.subr.mxu0 0.0
    %2325 = vmatpush1.msra.mxu0 %v2208
    %2326 = vmatprep.subr.mxu0 0.0
    %2327 = vmatpush1.msra.mxu0 %v2209
    %2328 = vmatprep.subr.mxu0 0.0
    %2329 = vmatpush1.msra.mxu0 %v2210
    %2330 = vmatprep.subr.mxu0 0.0
    %2331 = vmatpush1.msra.mxu0 %v2211
    %2332 = vmatprep.subr.mxu0 0.0
    %2333 = vmatpush1.msra.mxu0 0.0
    %2334 = vmatprep.subr.mxu0 0.0
    %2335 = vmatpush1.msra.mxu0 0.0
    %2336 = vmatprep.subr.mxu0 0.0
    %2337 = vmatpush1.msra.mxu0 0.0
    %2338 = vmatprep.subr.mxu0 0.0
    %2339 = vmatpush1.msra.mxu0 0.0
    %2340 = vmatprep.subr.mxu0 0.0
    %2341 = vmatpush1.msra.mxu0 0.0
    %2342 = vmatprep.subr.mxu0 0.0
    %2343 = vmatpush1.msra.mxu0 0.0
    %2344 = vmatprep.subr.mxu0 0.0
    %2345 = vmatpush1.msra.mxu0 0.0
    %2346 = vmatprep.subr.mxu0 0.0
    %2347 = vmatpush1.msra.mxu0 0.0
    %2348 = vmatprep.subr.mxu0 0.0
    %2349 = vmatpush1.msra.mxu0 0.0
    %2350 = vmatprep.subr.mxu0 0.0
    %2351 = vmatpush1.msra.mxu0 0.0
    %2352 = vmatprep.subr.mxu0 0.0
    %2353 = vmatpush1.msra.mxu0 0.0
    %2354 = vmatprep.subr.mxu0 0.0
    %2355 = vmatpush1.msra.mxu0 0.0
    %2356 = vmatprep.subr.mxu0 0.0
    %2357 = vmatpush1.msra.mxu0 0.0
    %2358 = vmatprep.subr.mxu0 0.0
    %2359 = vmatpush1.msra.mxu0 0.0
    %2360 = vmatprep.subr.mxu0 0.0
    %2361 = vmatpush1.msra.mxu0 0.0
    %2362 = vmatprep.subr.mxu0 0.0
    %2363 = vmatpush1.msra.mxu0 0.0
    %2364 = vmatprep.subr.mxu0 0.0
    %2365 = vmatpush1.msra.mxu0 0.0
    %2366 = vmatprep.subr.mxu0 0.0
    %2367 = vmatpush1.msra.mxu0 0.0
    %2368 = vmatprep.subr.mxu0 0.0
    %2369 = vmatpush1.msra.mxu0 0.0
    %2370 = vmatprep.subr.mxu0 0.0
    %2371 = vmatpush1.msra.mxu0 0.0
    %2372 = vmatprep.subr.mxu0 0.0
    %2373 = vmatpush1.msra.mxu0 0.0
    %2374 = vmatprep.subr.mxu0 0.0
    %2375 = vmatpush1.msra.mxu0 0.0
    %2376 = vmatprep.subr.mxu0 0.0
    %2377 = vmatpush1.msra.mxu0 0.0
    %2378 = vmatprep.subr.mxu0 0.0
    %2379 = vmatpush1.msra.mxu0 0.0
    %2380 = vmatprep.subr.mxu0 0.0
    %2381 = vmatpush1.msra.mxu0 0.0
    %2382 = vmatprep.subr.mxu0 0.0
    %2383 = vmatpush1.msra.mxu0 0.0
    %2384 = vmatprep.subr.mxu0 0.0
    %2385 = vmatpush1.msra.mxu0 0.0
    %2386 = vmatprep.subr.mxu0 0.0
    %2387 = vmatpush1.msra.mxu0 0.0
    %2388 = vmatprep.mubr.f32.mxu0 0.0
    %2389 = vmatmul.mubr.f32.gmra.mrb[0].mxu0 %v2322
    %v2390 = vpop.f32.mrb[0].mxu0
    %v2391 = vadd.f32 %v2218, %v2390
    %v2392 = vpop.f32.mrb[0].mxu0
    %2393 = vdwg.mxu0
    %v2394 = vld [vmem:[#allocation2 + $0x8] sm:$0xff]
    %v2395 = vadd.f32 %v2394, %v2391
    %v2396 = vxor.u32 %v2395, 2147483648
    %v2397 = vmul.f32 %v2396, 1.442695
    %v2398 = vpow.pop %v2397
    %v2399 = vadd.f32 %v2398, 1.0
    %v2400 = vrcp.pop %v2399
    %v2401 = vmul.f32 1.0, %v2400
    %2403 = vrot.lane.b32.xlu0 %v2391, 64
    %v2404 = vpop.permute.xlu0 %2403
    %v2406 = vmul.f32 %v2401, %v2404
    %2408 = vrot.lane.b32.xlu0 %v2406, 64
    %v2409 = vpop.permute.xlu0 %2408
    %v2411 = vadd.f32 %v2394, %v2409
    %v2412 = vtanh.pop %v2411
    %v2413 = vsub.f32 1.0, %v2401
    %2415 = vrot.lane.b32.xlu0 %v2412, 96
    %v2416 = vpop.permute.xlu0 %2415
    %v2418 = vmul.f32 %v2413, %v2416
    %v2419 = vmul.f32 %v2401, %v2316
    %v2420 = vadd.f32 %v2418, %v2419
    %2422 = vrot.lane.b32.xlu0 %v2420, 96
    %v2423 = vpop.permute.xlu0 %2422
    %2425 = vst.msk [vmem:[%s6 + $0x8] sm:$0xff] %vm208, %v2423
    %v2426 = vsel %vm208, %v2423, 0
    %2428 = vmatprep.subr.mxu0 0.0
    %2429 = vmatpush1.msra.mxu0 %v2208
    %2430 = vmatprep.subr.mxu0 0.0
    %2431 = vmatpush1.msra.mxu0 %v2209
    %2432 = vmatprep.subr.mxu0 0.0
    %2433 = vmatpush1.msra.mxu0 %v2210
    %2434 = vmatprep.subr.mxu0 0.0
    %2435 = vmatpush1.msra.mxu0 %v2211
    %2436 = vmatprep.subr.mxu0 0.0
    %2437 = vmatpush1.msra.mxu0 0.0
    %2438 = vmatprep.subr.mxu0 0.0
    %2439 = vmatpush1.msra.mxu0 0.0
    %2440 = vmatprep.subr.mxu0 0.0
    %2441 = vmatpush1.msra.mxu0 0.0
    %2442 = vmatprep.subr.mxu0 0.0
    %2443 = vmatpush1.msra.mxu0 0.0
    %2444 = vmatprep.subr.mxu0 0.0
    %2445 = vmatpush1.msra.mxu0 0.0
    %2446 = vmatprep.subr.mxu0 0.0
    %2447 = vmatpush1.msra.mxu0 0.0
    %2448 = vmatprep.subr.mxu0 0.0
    %2449 = vmatpush1.msra.mxu0 0.0
    %2450 = vmatprep.subr.mxu0 0.0
    %2451 = vmatpush1.msra.mxu0 0.0
    %2452 = vmatprep.subr.mxu0 0.0
    %2453 = vmatpush1.msra.mxu0 0.0
    %2454 = vmatprep.subr.mxu0 0.0
    %2455 = vmatpush1.msra.mxu0 0.0
    %2456 = vmatprep.subr.mxu0 0.0
    %2457 = vmatpush1.msra.mxu0 0.0
    %2458 = vmatprep.subr.mxu0 0.0
    %2459 = vmatpush1.msra.mxu0 0.0
    %2460 = vmatprep.subr.mxu0 0.0
    %2461 = vmatpush1.msra.mxu0 0.0
    %2462 = vmatprep.subr.mxu0 0.0
    %2463 = vmatpush1.msra.mxu0 0.0
    %2464 = vmatprep.subr.mxu0 0.0
    %2465 = vmatpush1.msra.mxu0 0.0
    %2466 = vmatprep.subr.mxu0 0.0
    %2467 = vmatpush1.msra.mxu0 0.0
    %2468 = vmatprep.subr.mxu0 0.0
    %2469 = vmatpush1.msra.mxu0 0.0
    %2470 = vmatprep.subr.mxu0 0.0
    %2471 = vmatpush1.msra.mxu0 0.0
    %2472 = vmatprep.subr.mxu0 0.0
    %2473 = vmatpush1.msra.mxu0 0.0
    %2474 = vmatprep.subr.mxu0 0.0
    %2475 = vmatpush1.msra.mxu0 0.0
    %2476 = vmatprep.subr.mxu0 0.0
    %2477 = vmatpush1.msra.mxu0 0.0
    %2478 = vmatprep.subr.mxu0 0.0
    %2479 = vmatpush1.msra.mxu0 0.0
    %2480 = vmatprep.subr.mxu0 0.0
    %2481 = vmatpush1.msra.mxu0 0.0
    %2482 = vmatprep.subr.mxu0 0.0
    %2483 = vmatpush1.msra.mxu0 0.0
    %2484 = vmatprep.subr.mxu0 0.0
    %2485 = vmatpush1.msra.mxu0 0.0
    %2486 = vmatprep.subr.mxu0 0.0
    %2487 = vmatpush1.msra.mxu0 0.0
    %2488 = vmatprep.subr.mxu0 0.0
    %2489 = vmatpush1.msra.mxu0 0.0
    %2490 = vmatprep.subr.mxu0 0.0
    %2491 = vmatpush1.msra.mxu0 0.0
    %2492 = vmatprep.mubr.f32.mxu0 0.0
    %2493 = vmatmul.mubr.f32.gmra.mrb[0].mxu0 %v2426
    %v2494 = vpop.f32.mrb[0].mxu0
    %v2495 = vadd.f32 %v2218, %v2494
    %v2496 = vpop.f32.mrb[0].mxu0
    %2497 = vdwg.mxu0
    %v2498 = vld [vmem:[#allocation2 + $0x10] sm:$0xff]
    %v2499 = vadd.f32 %v2498, %v2495
    %v2500 = vxor.u32 %v2499, 2147483648
    %v2501 = vmul.f32 %v2500, 1.442695
    %v2502 = vpow.pop %v2501
    %v2503 = vadd.f32 %v2502, 1.0
    %v2504 = vrcp.pop %v2503
    %v2505 = vmul.f32 1.0, %v2504
    %2507 = vrot.lane.b32.xlu0 %v2495, 64
    %v2508 = vpop.permute.xlu0 %2507
    %v2510 = vmul.f32 %v2505, %v2508
    %2512 = vrot.lane.b32.xlu0 %v2510, 64
    %v2513 = vpop.permute.xlu0 %2512
    %v2515 = vadd.f32 %v2498, %v2513
    %v2516 = vtanh.pop %v2515
    %v2517 = vsub.f32 1.0, %v2505
    %2519 = vrot.lane.b32.xlu0 %v2516, 96
    %v2520 = vpop.permute.xlu0 %2519
    %v2522 = vmul.f32 %v2517, %v2520
    %v2523 = vmul.f32 %v2505, %v2420
    %v2524 = vadd.f32 %v2522, %v2523
    %2526 = vrot.lane.b32.xlu0 %v2524, 96
    %v2527 = vpop.permute.xlu0 %2526
    %2529 = vst.msk [vmem:[%s6 + $0x10] sm:$0xff] %vm208, %v2527
    %v2530 = vsel %vm208, %v2527, 0
    %2532 = vmatprep.subr.mxu0 0.0
    %2533 = vmatpush1.msra.mxu0 %v2208
    %2534 = vmatprep.subr.mxu0 0.0
    %2535 = vmatpush1.msra.mxu0 %v2209
    %2536 = vmatprep.subr.mxu0 0.0
    %2537 = vmatpush1.msra.mxu0 %v2210
    %2538 = vmatprep.subr.mxu0 0.0
    %2539 = vmatpush1.msra.mxu0 %v2211
    %2540 = vmatprep.subr.mxu0 0.0
    %2541 = vmatpush1.msra.mxu0 0.0
    %2542 = vmatprep.subr.mxu0 0.0
    %2543 = vmatpush1.msra.mxu0 0.0
    %2544 = vmatprep.subr.mxu0 0.0
    %2545 = vmatpush1.msra.mxu0 0.0
    %2546 = vmatprep.subr.mxu0 0.0
    %2547 = vmatpush1.msra.mxu0 0.0
    %2548 = vmatprep.subr.mxu0 0.0
    %2549 = vmatpush1.msra.mxu0 0.0
    %2550 = vmatprep.subr.mxu0 0.0
    %2551 = vmatpush1.msra.mxu0 0.0
    %2552 = vmatprep.subr.mxu0 0.0
    %2553 = vmatpush1.msra.mxu0 0.0
    %2554 = vmatprep.subr.mxu0 0.0
    %2555 = vmatpush1.msra.mxu0 0.0
    %2556 = vmatprep.subr.mxu0 0.0
    %2557 = vmatpush1.msra.mxu0 0.0
    %2558 = vmatprep.subr.mxu0 0.0
    %2559 = vmatpush1.msra.mxu0 0.0
    %2560 = vmatprep.subr.mxu0 0.0
    %2561 = vmatpush1.msra.mxu0 0.0
    %2562 = vmatprep.subr.mxu0 0.0
    %2563 = vmatpush1.msra.mxu0 0.0
    %2564 = vmatprep.subr.mxu0 0.0
    %2565 = vmatpush1.msra.mxu0 0.0
    %2566 = vmatprep.subr.mxu0 0.0
    %2567 = vmatpush1.msra.mxu0 0.0
    %2568 = vmatprep.subr.mxu0 0.0
    %2569 = vmatpush1.msra.mxu0 0.0
    %2570 = vmatprep.subr.mxu0 0.0
    %2571 = vmatpush1.msra.mxu0 0.0
    %2572 = vmatprep.subr.mxu0 0.0
    %2573 = vmatpush1.msra.mxu0 0.0
    %2574 = vmatprep.subr.mxu0 0.0
    %2575 = vmatpush1.msra.mxu0 0.0
    %2576 = vmatprep.subr.mxu0 0.0
    %2577 = vmatpush1.msra.mxu0 0.0
    %2578 = vmatprep.subr.mxu0 0.0
    %2579 = vmatpush1.msra.mxu0 0.0
    %2580 = vmatprep.subr.mxu0 0.0
    %2581 = vmatpush1.msra.mxu0 0.0
    %2582 = vmatprep.subr.mxu0 0.0
    %2583 = vmatpush1.msra.mxu0 0.0
    %2584 = vmatprep.subr.mxu0 0.0
    %2585 = vmatpush1.msra.mxu0 0.0
    %2586 = vmatprep.subr.mxu0 0.0
    %2587 = vmatpush1.msra.mxu0 0.0
    %2588 = vmatprep.subr.mxu0 0.0
    %2589 = vmatpush1.msra.mxu0 0.0
    %2590 = vmatprep.subr.mxu0 0.0
    %2591 = vmatpush1.msra.mxu0 0.0
    %2592 = vmatprep.subr.mxu0 0.0
    %2593 = vmatpush1.msra.mxu0 0.0
    %2594 = vmatprep.subr.mxu0 0.0
    %2595 = vmatpush1.msra.mxu0 0.0
    %2596 = vmatprep.mubr.f32.mxu0 0.0
    %2597 = vmatmul.mubr.f32.gmra.mrb[0].mxu0 %v2530
    %v2598 = vpop.f32.mrb[0].mxu0
    %v2599 = vadd.f32 %v2218, %v2598
    %v2600 = vpop.f32.mrb[0].mxu0
    %2601 = vdwg.mxu0
    %v2602 = vld [vmem:[#allocation2 + $0x18] sm:$0xff]
    %v2603 = vadd.f32 %v2602, %v2599
    %v2604 = vxor.u32 %v2603, 2147483648
    %v2605 = vmul.f32 %v2604, 1.442695
    %v2606 = vpow.pop %v2605
    %v2607 = vadd.f32 %v2606, 1.0
    %v2608 = vrcp.pop %v2607
    %v2609 = vmul.f32 1.0, %v2608
    %2611 = vrot.lane.b32.xlu0 %v2599, 64
    %v2612 = vpop.permute.xlu0 %2611
    %v2614 = vmul.f32 %v2609, %v2612
    %2616 = vrot.lane.b32.xlu0 %v2614, 64
    %v2617 = vpop.permute.xlu0 %2616
    %v2619 = vadd.f32 %v2602, %v2617
    %v2620 = vtanh.pop %v2619
    %v2621 = vsub.f32 1.0, %v2609
    %2623 = vrot.lane.b32.xlu0 %v2620, 96
    %v2624 = vpop.permute.xlu0 %2623
    %v2626 = vmul.f32 %v2621, %v2624
    %v2627 = vmul.f32 %v2609, %v2524
    %v2628 = vadd.f32 %v2626, %v2627
    %2630 = vrot.lane.b32.xlu0 %v2628, 96
    %v2631 = vpop.permute.xlu0 %2630
    %2633 = vst.msk [vmem:[%s6 + $0x18] sm:$0xff] %vm208, %v2631
    %v2634 = vsel %vm208, %v2631, 0
    %2636 = vmatprep.subr.mxu0 0.0
    %2637 = vmatpush1.msra.mxu0 %v2208
    %2638 = vmatprep.subr.mxu0 0.0
    %2639 = vmatpush1.msra.mxu0 %v2209
    %2640 = vmatprep.subr.mxu0 0.0
    %2641 = vmatpush1.msra.mxu0 %v2210
    %2642 = vmatprep.subr.mxu0 0.0
    %2643 = vmatpush1.msra.mxu0 %v2211
    %2644 = vmatprep.subr.mxu0 0.0
    %2645 = vmatpush1.msra.mxu0 0.0
    %2646 = vmatprep.subr.mxu0 0.0
    %2647 = vmatpush1.msra.mxu0 0.0
    %2648 = vmatprep.subr.mxu0 0.0
    %2649 = vmatpush1.msra.mxu0 0.0
    %2650 = vmatprep.subr.mxu0 0.0
    %2651 = vmatpush1.msra.mxu0 0.0
    %2652 = vmatprep.subr.mxu0 0.0
    %2653 = vmatpush1.msra.mxu0 0.0
    %2654 = vmatprep.subr.mxu0 0.0
    %2655 = vmatpush1.msra.mxu0 0.0
    %2656 = vmatprep.subr.mxu0 0.0
    %2657 = vmatpush1.msra.mxu0 0.0
    %2658 = vmatprep.subr.mxu0 0.0
    %2659 = vmatpush1.msra.mxu0 0.0
    %2660 = vmatprep.subr.mxu0 0.0
    %2661 = vmatpush1.msra.mxu0 0.0
    %2662 = vmatprep.subr.mxu0 0.0
    %2663 = vmatpush1.msra.mxu0 0.0
    %2664 = vmatprep.subr.mxu0 0.0
    %2665 = vmatpush1.msra.mxu0 0.0
    %2666 = vmatprep.subr.mxu0 0.0
    %2667 = vmatpush1.msra.mxu0 0.0
    %2668 = vmatprep.subr.mxu0 0.0
    %2669 = vmatpush1.msra.mxu0 0.0
    %2670 = vmatprep.subr.mxu0 0.0
    %2671 = vmatpush1.msra.mxu0 0.0
    %2672 = vmatprep.subr.mxu0 0.0
    %2673 = vmatpush1.msra.mxu0 0.0
    %2674 = vmatprep.subr.mxu0 0.0
    %2675 = vmatpush1.msra.mxu0 0.0
    %2676 = vmatprep.subr.mxu0 0.0
    %2677 = vmatpush1.msra.mxu0 0.0
    %2678 = vmatprep.subr.mxu0 0.0
    %2679 = vmatpush1.msra.mxu0 0.0
    %2680 = vmatprep.subr.mxu0 0.0
    %2681 = vmatpush1.msra.mxu0 0.0
    %2682 = vmatprep.subr.mxu0 0.0
    %2683 = vmatpush1.msra.mxu0 0.0
    %2684 = vmatprep.subr.mxu0 0.0
    %2685 = vmatpush1.msra.mxu0 0.0
    %2686 = vmatprep.subr.mxu0 0.0
    %2687 = vmatpush1.msra.mxu0 0.0
    %2688 = vmatprep.subr.mxu0 0.0
    %2689 = vmatpush1.msra.mxu0 0.0
    %2690 = vmatprep.subr.mxu0 0.0
    %2691 = vmatpush1.msra.mxu0 0.0
    %2692 = vmatprep.subr.mxu0 0.0
    %2693 = vmatpush1.msra.mxu0 0.0
    %2694 = vmatprep.subr.mxu0 0.0
    %2695 = vmatpush1.msra.mxu0 0.0
    %2696 = vmatprep.subr.mxu0 0.0
    %2697 = vmatpush1.msra.mxu0 0.0
    %2698 = vmatprep.subr.mxu0 0.0
    %2699 = vmatpush1.msra.mxu0 0.0
    %2700 = vmatprep.mubr.f32.mxu0 0.0
    %2701 = vmatmul.mubr.f32.gmra.mrb[0].mxu0 %v2634
    %v2702 = vpop.f32.mrb[0].mxu0
    %v2703 = vadd.f32 %v2218, %v2702
    %v2704 = vpop.f32.mrb[0].mxu0
    %2705 = vdwg.mxu0
    %v2706 = vld [vmem:[#allocation2 + $0x20] sm:$0xff]
    %v2707 = vadd.f32 %v2706, %v2703
    %v2708 = vxor.u32 %v2707, 2147483648
    %v2709 = vmul.f32 %v2708, 1.442695
    %v2710 = vpow.pop %v2709
    %v2711 = vadd.f32 %v2710, 1.0
    %v2712 = vrcp.pop %v2711
    %v2713 = vmul.f32 1.0, %v2712
    %2715 = vrot.lane.b32.xlu0 %v2703, 64
    %v2716 = vpop.permute.xlu0 %2715
    %v2718 = vmul.f32 %v2713, %v2716
    %2720 = vrot.lane.b32.xlu0 %v2718, 64
    %v2721 = vpop.permute.xlu0 %2720
    %v2723 = vadd.f32 %v2706, %v2721
    %v2724 = vtanh.pop %v2723
    %v2725 = vsub.f32 1.0, %v2713
    %2727 = vrot.lane.b32.xlu0 %v2724, 96
    %v2728 = vpop.permute.xlu0 %2727
    %v2730 = vmul.f32 %v2725, %v2728
    %v2731 = vmul.f32 %v2713, %v2628
    %v2732 = vadd.f32 %v2730, %v2731
    %2734 = vrot.lane.b32.xlu0 %v2732, 96
    %v2735 = vpop.permute.xlu0 %2734
    %2737 = vst.msk [vmem:[%s6 + $0x20] sm:$0xff] %vm208, %v2735
    %v2738 = vsel %vm208, %v2735, 0
    %2740 = vmatprep.subr.mxu0 0.0
    %2741 = vmatpush1.msra.mxu0 %v2208
    %2742 = vmatprep.subr.mxu0 0.0
    %2743 = vmatpush1.msra.mxu0 %v2209
    %2744 = vmatprep.subr.mxu0 0.0
    %2745 = vmatpush1.msra.mxu0 %v2210
    %2746 = vmatprep.subr.mxu0 0.0
    %2747 = vmatpush1.msra.mxu0 %v2211
    %2748 = vmatprep.subr.mxu0 0.0
    %2749 = vmatpush1.msra.mxu0 0.0
    %2750 = vmatprep.subr.mxu0 0.0
    %2751 = vmatpush1.msra.mxu0 0.0
    %2752 = vmatprep.subr.mxu0 0.0
    %2753 = vmatpush1.msra.mxu0 0.0
    %2754 = vmatprep.subr.mxu0 0.0
    %2755 = vmatpush1.msra.mxu0 0.0
    %2756 = vmatprep.subr.mxu0 0.0
    %2757 = vmatpush1.msra.mxu0 0.0
    %2758 = vmatprep.subr.mxu0 0.0
    %2759 = vmatpush1.msra.mxu0 0.0
    %2760 = vmatprep.subr.mxu0 0.0
    %2761 = vmatpush1.msra.mxu0 0.0
    %2762 = vmatprep.subr.mxu0 0.0
    %2763 = vmatpush1.msra.mxu0 0.0
    %2764 = vmatprep.subr.mxu0 0.0
    %2765 = vmatpush1.msra.mxu0 0.0
    %2766 = vmatprep.subr.mxu0 0.0
    %2767 = vmatpush1.msra.mxu0 0.0
    %2768 = vmatprep.subr.mxu0 0.0
    %2769 = vmatpush1.msra.mxu0 0.0
    %2770 = vmatprep.subr.mxu0 0.0
    %2771 = vmatpush1.msra.mxu0 0.0
    %2772 = vmatprep.subr.mxu0 0.0
    %2773 = vmatpush1.msra.mxu0 0.0
    %2774 = vmatprep.subr.mxu0 0.0
    %2775 = vmatpush1.msra.mxu0 0.0
    %2776 = vmatprep.subr.mxu0 0.0
    %2777 = vmatpush1.msra.mxu0 0.0
    %2778 = vmatprep.subr.mxu0 0.0
    %2779 = vmatpush1.msra.mxu0 0.0
    %2780 = vmatprep.subr.mxu0 0.0
    %2781 = vmatpush1.msra.mxu0 0.0
    %2782 = vmatprep.subr.mxu0 0.0
    %2783 = vmatpush1.msra.mxu0 0.0
    %2784 = vmatprep.subr.mxu0 0.0
    %2785 = vmatpush1.msra.mxu0 0.0
    %2786 = vmatprep.subr.mxu0 0.0
    %2787 = vmatpush1.msra.mxu0 0.0
    %2788 = vmatprep.subr.mxu0 0.0
    %2789 = vmatpush1.msra.mxu0 0.0
    %2790 = vmatprep.subr.mxu0 0.0
    %2791 = vmatpush1.msra.mxu0 0.0
    %2792 = vmatprep.subr.mxu0 0.0
    %2793 = vmatpush1.msra.mxu0 0.0
    %2794 = vmatprep.subr.mxu0 0.0
    %2795 = vmatpush1.msra.mxu0 0.0
    %2796 = vmatprep.subr.mxu0 0.0
    %2797 = vmatpush1.msra.mxu0 0.0
    %2798 = vmatprep.subr.mxu0 0.0
    %2799 = vmatpush1.msra.mxu0 0.0
    %2800 = vmatprep.subr.mxu0 0.0
    %2801 = vmatpush1.msra.mxu0 0.0
    %2802 = vmatprep.subr.mxu0 0.0
    %2803 = vmatpush1.msra.mxu0 0.0
    %2804 = vmatprep.mubr.f32.mxu0 0.0
    %2805 = vmatmul.mubr.f32.gmra.mrb[0].mxu0 %v2738
    %v2806 = vpop.f32.mrb[0].mxu0
    %v2807 = vadd.f32 %v2218, %v2806
    %v2808 = vpop.f32.mrb[0].mxu0
    %2809 = vdwg.mxu0
    %v2810 = vld [vmem:[#allocation2 + $0x28] sm:$0xff]
    %v2811 = vadd.f32 %v2810, %v2807
    %v2812 = vxor.u32 %v2811, 2147483648
    %v2813 = vmul.f32 %v2812, 1.442695
    %v2814 = vpow.pop %v2813
    %v2815 = vadd.f32 %v2814, 1.0
    %v2816 = vrcp.pop %v2815
    %v2817 = vmul.f32 1.0, %v2816
    %2819 = vrot.lane.b32.xlu0 %v2807, 64
    %v2820 = vpop.permute.xlu0 %2819
    %v2822 = vmul.f32 %v2817, %v2820
    %2824 = vrot.lane.b32.xlu0 %v2822, 64
    %v2825 = vpop.permute.xlu0 %2824
    %v2827 = vadd.f32 %v2810, %v2825
    %v2828 = vtanh.pop %v2827
    %v2829 = vsub.f32 1.0, %v2817
    %2831 = vrot.lane.b32.xlu0 %v2828, 96
    %v2832 = vpop.permute.xlu0 %2831
    %v2834 = vmul.f32 %v2829, %v2832
    %v2835 = vmul.f32 %v2817, %v2732
    %v2836 = vadd.f32 %v2834, %v2835
    %2838 = vrot.lane.b32.xlu0 %v2836, 96
    %v2839 = vpop.permute.xlu0 %2838
    %2841 = vst.msk [vmem:[%s6 + $0x28] sm:$0xff] %vm208, %v2839
    %v2842 = vsel %vm208, %v2839, 0
    %2844 = vmatprep.subr.mxu0 0.0
    %2845 = vmatpush1.msra.mxu0 %v2208
    %2846 = vmatprep.subr.mxu0 0.0
    %2847 = vmatpush1.msra.mxu0 %v2209
    %2848 = vmatprep.subr.mxu0 0.0
    %2849 = vmatpush1.msra.mxu0 %v2210
    %2850 = vmatprep.subr.mxu0 0.0
    %2851 = vmatpush1.msra.mxu0 %v2211
    %2852 = vmatprep.subr.mxu0 0.0
    %2853 = vmatpush1.msra.mxu0 0.0
    %2854 = vmatprep.subr.mxu0 0.0
    %2855 = vmatpush1.msra.mxu0 0.0
    %2856 = vmatprep.subr.mxu0 0.0
    %2857 = vmatpush1.msra.mxu0 0.0
    %2858 = vmatprep.subr.mxu0 0.0
    %2859 = vmatpush1.msra.mxu0 0.0
    %2860 = vmatprep.subr.mxu0 0.0
    %2861 = vmatpush1.msra.mxu0 0.0
    %2862 = vmatprep.subr.mxu0 0.0
    %2863 = vmatpush1.msra.mxu0 0.0
    %2864 = vmatprep.subr.mxu0 0.0
    %2865 = vmatpush1.msra.mxu0 0.0
    %2866 = vmatprep.subr.mxu0 0.0
    %2867 = vmatpush1.msra.mxu0 0.0
    %2868 = vmatprep.subr.mxu0 0.0
    %2869 = vmatpush1.msra.mxu0 0.0
    %2870 = vmatprep.subr.mxu0 0.0
    %2871 = vmatpush1.msra.mxu0 0.0
    %2872 = vmatprep.subr.mxu0 0.0
    %2873 = vmatpush1.msra.mxu0 0.0
    %2874 = vmatprep.subr.mxu0 0.0
    %2875 = vmatpush1.msra.mxu0 0.0
    %2876 = vmatprep.subr.mxu0 0.0
    %2877 = vmatpush1.msra.mxu0 0.0
    %2878 = vmatprep.subr.mxu0 0.0
    %2879 = vmatpush1.msra.mxu0 0.0
    %2880 = vmatprep.subr.mxu0 0.0
    %2881 = vmatpush1.msra.mxu0 0.0
    %2882 = vmatprep.subr.mxu0 0.0
    %2883 = vmatpush1.msra.mxu0 0.0
    %2884 = vmatprep.subr.mxu0 0.0
    %2885 = vmatpush1.msra.mxu0 0.0
    %2886 = vmatprep.subr.mxu0 0.0
    %2887 = vmatpush1.msra.mxu0 0.0
    %2888 = vmatprep.subr.mxu0 0.0
    %2889 = vmatpush1.msra.mxu0 0.0
    %2890 = vmatprep.subr.mxu0 0.0
    %2891 = vmatpush1.msra.mxu0 0.0
    %2892 = vmatprep.subr.mxu0 0.0
    %2893 = vmatpush1.msra.mxu0 0.0
    %2894 = vmatprep.subr.mxu0 0.0
    %2895 = vmatpush1.msra.mxu0 0.0
    %2896 = vmatprep.subr.mxu0 0.0
    %2897 = vmatpush1.msra.mxu0 0.0
    %2898 = vmatprep.subr.mxu0 0.0
    %2899 = vmatpush1.msra.mxu0 0.0
    %2900 = vmatprep.subr.mxu0 0.0
    %2901 = vmatpush1.msra.mxu0 0.0
    %2902 = vmatprep.subr.mxu0 0.0
    %2903 = vmatpush1.msra.mxu0 0.0
    %2904 = vmatprep.subr.mxu0 0.0
    %2905 = vmatpush1.msra.mxu0 0.0
    %2906 = vmatprep.subr.mxu0 0.0
    %2907 = vmatpush1.msra.mxu0 0.0
    %2908 = vmatprep.mubr.f32.mxu0 0.0
    %2909 = vmatmul.mubr.f32.gmra.mrb[0].mxu0 %v2842
    %v2910 = vpop.f32.mrb[0].mxu0
    %v2911 = vadd.f32 %v2218, %v2910
    %v2912 = vpop.f32.mrb[0].mxu0
    %2913 = vdwg.mxu0
    %v2914 = vld [vmem:[#allocation2 + $0x30] sm:$0xff]
    %v2915 = vadd.f32 %v2914, %v2911
    %v2916 = vxor.u32 %v2915, 2147483648
    %v2917 = vmul.f32 %v2916, 1.442695
    %v2918 = vpow.pop %v2917
    %v2919 = vadd.f32 %v2918, 1.0
    %v2920 = vrcp.pop %v2919
    %v2921 = vmul.f32 1.0, %v2920
    %2923 = vrot.lane.b32.xlu0 %v2911, 64
    %v2924 = vpop.permute.xlu0 %2923
    %v2926 = vmul.f32 %v2921, %v2924
    %2928 = vrot.lane.b32.xlu0 %v2926, 64
    %v2929 = vpop.permute.xlu0 %2928
    %v2931 = vadd.f32 %v2914, %v2929
    %v2932 = vtanh.pop %v2931
    %v2933 = vsub.f32 1.0, %v2921
    %2935 = vrot.lane.b32.xlu0 %v2932, 96
    %v2936 = vpop.permute.xlu0 %2935
    %v2938 = vmul.f32 %v2933, %v2936
    %v2939 = vmul.f32 %v2921, %v2836
    %v2940 = vadd.f32 %v2938, %v2939
    %v2941 = vsel %vm41, %v2940, %v2836
    %2943 = vrot.lane.b32.xlu0 %v2941, 96
    %v2944 = vpop.permute.xlu0 %2943
    %2946 = vst.msk [vmem:[%s6 + $0x30] sm:$0xff] %vm208, %v2944
    %v2947 = vsel %vm208, %v2944, 0
    %2949 = vmatprep.subr.mxu0 0.0
    %2950 = vmatpush1.msra.mxu0 %v2208
    %2951 = vmatprep.subr.mxu0 0.0
    %2952 = vmatpush1.msra.mxu0 %v2209
    %2953 = vmatprep.subr.mxu0 0.0
    %2954 = vmatpush1.msra.mxu0 %v2210
    %2955 = vmatprep.subr.mxu0 0.0
    %2956 = vmatpush1.msra.mxu0 %v2211
    %2957 = vmatprep.subr.mxu0 0.0
    %2958 = vmatpush1.msra.mxu0 0.0
    %2959 = vmatprep.subr.mxu0 0.0
    %2960 = vmatpush1.msra.mxu0 0.0
    %2961 = vmatprep.subr.mxu0 0.0
    %2962 = vmatpush1.msra.mxu0 0.0
    %2963 = vmatprep.subr.mxu0 0.0
    %2964 = vmatpush1.msra.mxu0 0.0
    %2965 = vmatprep.subr.mxu0 0.0
    %2966 = vmatpush1.msra.mxu0 0.0
    %2967 = vmatprep.subr.mxu0 0.0
    %2968 = vmatpush1.msra.mxu0 0.0
    %2969 = vmatprep.subr.mxu0 0.0
    %2970 = vmatpush1.msra.mxu0 0.0
    %2971 = vmatprep.subr.mxu0 0.0
    %2972 = vmatpush1.msra.mxu0 0.0
    %2973 = vmatprep.subr.mxu0 0.0
    %2974 = vmatpush1.msra.mxu0 0.0
    %2975 = vmatprep.subr.mxu0 0.0
    %2976 = vmatpush1.msra.mxu0 0.0
    %2977 = vmatprep.subr.mxu0 0.0
    %2978 = vmatpush1.msra.mxu0 0.0
    %2979 = vmatprep.subr.mxu0 0.0
    %2980 = vmatpush1.msra.mxu0 0.0
    %2981 = vmatprep.subr.mxu0 0.0
    %2982 = vmatpush1.msra.mxu0 0.0
    %2983 = vmatprep.subr.mxu0 0.0
    %2984 = vmatpush1.msra.mxu0 0.0
    %2985 = vmatprep.subr.mxu0 0.0
    %2986 = vmatpush1.msra.mxu0 0.0
    %2987 = vmatprep.subr.mxu0 0.0
    %2988 = vmatpush1.msra.mxu0 0.0
    %2989 = vmatprep.subr.mxu0 0.0
    %2990 = vmatpush1.msra.mxu0 0.0
    %2991 = vmatprep.subr.mxu0 0.0
    %2992 = vmatpush1.msra.mxu0 0.0
    %2993 = vmatprep.subr.mxu0 0.0
    %2994 = vmatpush1.msra.mxu0 0.0
    %2995 = vmatprep.subr.mxu0 0.0
    %2996 = vmatpush1.msra.mxu0 0.0
    %2997 = vmatprep.subr.mxu0 0.0
    %2998 = vmatpush1.msra.mxu0 0.0
    %2999 = vmatprep.subr.mxu0 0.0
    %3000 = vmatpush1.msra.mxu0 0.0
    %3001 = vmatprep.subr.mxu0 0.0
    %3002 = vmatpush1.msra.mxu0 0.0
    %3003 = vmatprep.subr.mxu0 0.0
    %3004 = vmatpush1.msra.mxu0 0.0
    %3005 = vmatprep.subr.mxu0 0.0
    %3006 = vmatpush1.msra.mxu0 0.0
    %3007 = vmatprep.subr.mxu0 0.0
    %3008 = vmatpush1.msra.mxu0 0.0
    %3009 = vmatprep.subr.mxu0 0.0
    %3010 = vmatpush1.msra.mxu0 0.0
    %3011 = vmatprep.subr.mxu0 0.0
    %3012 = vmatpush1.msra.mxu0 0.0
    %3013 = vmatprep.mubr.f32.mxu0 0.0
    %3014 = vmatmul.mubr.f32.gmra.mrb[0].mxu0 %v2947
    %v3015 = vpop.f32.mrb[0].mxu0
    %v3016 = vadd.f32 %v2218, %v3015
    %v3017 = vpop.f32.mrb[0].mxu0
    %3018 = vdwg.mxu0
    %v3019 = vld [vmem:[#allocation2 + $0x38] sm:$0xff]
    %v3020 = vadd.f32 %v3019, %v3016
    %v3021 = vxor.u32 %v3020, 2147483648
    %v3022 = vmul.f32 %v3021, 1.442695
    %v3023 = vpow.pop %v3022
    %v3024 = vadd.f32 %v3023, 1.0
    %v3025 = vrcp.pop %v3024
    %v3026 = vmul.f32 1.0, %v3025
    %3028 = vrot.lane.b32.xlu0 %v3016, 64
    %v3029 = vpop.permute.xlu0 %3028
    %v3031 = vmul.f32 %v3026, %v3029
    %3033 = vrot.lane.b32.xlu0 %v3031, 64
    %v3034 = vpop.permute.xlu0 %3033
    %v3036 = vadd.f32 %v3019, %v3034
    %v3037 = vtanh.pop %v3036
    %v3038 = vsub.f32 1.0, %v3026
    %3040 = vrot.lane.b32.xlu0 %v3037, 96
    %v3041 = vpop.permute.xlu0 %3040
    %v3043 = vmul.f32 %v3038, %v3041
    %v3044 = vmul.f32 %v3026, %v2941
    %v3045 = vadd.f32 %v3043, %v3044
    %v3046 = vsel %vm41, %v3045, %v2836
    %3048 = vrot.lane.b32.xlu0 %v3046, 96
    %v3049 = vpop.permute.xlu0 %3048
    %3051 = vst.msk [vmem:[%s6 + $0x38] sm:$0xff] %vm208, %v3049
    %s3052 = scalar_lea.vmem %s7, 16
    %3053 = vst.msk [vmem:[%s3052] sm:$0xff] %vm208, %v3049
    // Predicated region
    $region30: #{rnn_module_forward.1} parent=1 // pred_check
      _
    $region31: #{rnn_module_forward.1} parent=1 // pred_check_branch
      %3055 = sbr.rel (0) target = $region33
    $region32: #{rnn_module_forward.1} parent=1 // pred_region
      _
    $region33: #{rnn_module_forward.1} parent=1 // pred_fallthru
      _
    // Predicated region
    $region34: #{rnn_module_forward.1} parent=1 // pred_check
      _
    $region35: #{rnn_module_forward.1} parent=1 // pred_check_branch
      %3057 = sbr.rel (0) target = $region37
    $region36: #{rnn_module_forward.1} parent=1 // pred_region
      _
    $region37: #{rnn_module_forward.1} parent=1 // pred_fallthru
      _
    // Predicated region
    $region38: #{rnn_module_forward.1} parent=1 // pred_check
      _
    $region39: #{rnn_module_forward.1} parent=1 // pred_check_branch
      %3059 = sbr.rel (0) target = $region41
    $region40: #{rnn_module_forward.1} parent=1 // pred_region
      _
    $region41: #{rnn_module_forward.1} parent=1 // pred_fallthru
      _
    // Predicated region
    $region42: #{rnn_module_forward.1} parent=1 // pred_check
      _
    $region43: #{rnn_module_forward.1} parent=1 // pred_check_branch
      %3061 = sbr.rel (0) target = $region45
    $region44: #{rnn_module_forward.1} parent=1 // pred_region
      _
    $region45: #{rnn_module_forward.1} parent=1 // pred_fallthru
      _
    %3062 = vsyncpa [#allocation4], 1

</llo_original>
